<compile_context>
chip_gen: v7x
topology: tpu7x:2x2x1
jax: 0.10.0
libtpu: 0.0.40
codegen_flags: <defaults>
</compile_context>

<pallas_src>
import math
import functools

import jax
import jax.numpy as jnp
from jax.experimental import pallas as pl
from jax.experimental.pallas import tpu as pltpu

# ---- small, self-consistent GPTConfig ----
VOCAB = 64
BLOCK_SIZE = 16
N_LAYER = 2
N_HEAD = 4
N_EMBD = 32
MLP_RATIO = 4
LN_EPS = 1e-5
QKV_PAD = 128          # 3*N_EMBD = 96 output columns zero-padded to 128 lanes


# ---------------- in-kernel helpers ----------------

def _layernorm(z, w):
    """z: [M, C] f32, w: [1, C] f32; LayerNorm(eps=1e-5), weight only (bias=False)."""
    mean = jnp.mean(z, axis=-1, keepdims=True)
    zc = z - mean
    var = jnp.mean(zc * zc, axis=-1, keepdims=True)
    return zc * jax.lax.rsqrt(var + LN_EPS) * w


def _erf(x):
    # TODO(synk): lax.erf Mosaic lowering is not guaranteed; exact erf-GELU uses the
    # Abramowitz & Stegun 7.1.26 approximation (max abs err ~1.5e-7) built from
    # exp (EUP), approx reciprocal (EUP) and VPU mul/add/where only.
    a1, a2, a3, a4, a5 = 0.254829592, -0.284496736, 1.421413741, -1.453152027, 1.061405429
    p = 0.3275911
    sgn = jnp.where(x >= 0.0, 1.0, -1.0)
    z = jnp.abs(x)
    t = pl.reciprocal(1.0 + p * z, approx=True)          # EUP, frees VALU slots
    poly = ((((a5 * t + a4) * t + a3) * t + a2) * t + a1) * t
    return sgn * (1.0 - poly * jnp.exp(-z * z))


def _gelu_exact(x):
    return 0.5 * x * (1.0 + _erf(x * (1.0 / math.sqrt(2.0))))


# ---------------- fused whole-model kernel ----------------

def _gpt_kernel(idx_ref, wte_ref, wte_t_ref, pos_ref, bias_ref,
                ln1_ref, wattn_ref, waproj_ref,
                ln2_ref, wfc_ref, wmproj_ref,
                lnf_ref, out_ref, *, B, T):
    BT = B * T
    C = N_EMBD
    H = N_HEAD
    hd = C // H
    V = VOCAB

    # --- embeddings (token gather done as one-hot matmul; pos table precomputed) ---
    idx = idx_ref[...]                                            # [BT, 1] int32
    wte = wte_ref[...]                                            # [V, C] f32 (tied weights)
    tok_cols = jax.lax.broadcasted_iota(jnp.int32, (BT, V), 1)
    tok_oh = (tok_cols == idx).astype(jnp.float32)                # one-hot -> MXU
    x = jnp.dot(tok_oh, wte, preferred_element_type=jnp.float32)  # [BT, C]
    x = x + pos_ref[...]                                          # dropout p=0 (eval)

    bias = bias_ref[...]                                          # [BT, BT] additive mask

    for l in range(N_LAYER):
        # --- attention block ---
        h = _layernorm(x, ln1_ref[l])                             # [BT, C]
        # qkv: [BT, QKV_PAD]; q columns pre-scaled by 1/sqrt(hd), cols 96..128 are zero pad
        qkv = jnp.dot(h, wattn_ref[l], preferred_element_type=jnp.float32)

        y_heads = []
        for hh in range(H):
            c0 = hh * hd
            q = qkv[:, c0:c0 + hd]                                # [BT, hd] (scale folded in)
            k = qkv[:, C + c0:C + c0 + hd]                        # [BT, hd]
            v = qkv[:, 2 * C + c0:2 * C + c0 + hd]                # [BT, hd]
            # one scores matmul for ALL batch rows; cross-batch terms masked by bias
            s = jax.lax.dot_general(q, k, (((1,), (1,)), ((), ())),
                                    preferred_element_type=jnp.float32) + bias   # [BT, BT]
            s = s - jnp.max(s, axis=-1, keepdims=True)            # diag always unmasked
            p = jnp.exp(s)                                        # masked entries -> exactly 0
            p = p * pl.reciprocal(jnp.sum(p, axis=-1, keepdims=True), approx=True)
            y_heads.append(jnp.dot(p, v, preferred_element_type=jnp.float32))    # [BT, hd]

        y = jnp.concatenate(y_heads, axis=1)                      # lane concat -> [BT, C]
        x = x + jnp.dot(y, waproj_ref[l], preferred_element_type=jnp.float32)    # 1 proj matmul

        # --- MLP block ---
        h = _layernorm(x, ln2_ref[l])
        h = jnp.dot(h, wfc_ref[l], preferred_element_type=jnp.float32)           # [BT, 4C]
        h = _gelu_exact(h)
        x = x + jnp.dot(h, wmproj_ref[l], preferred_element_type=jnp.float32)    # [BT, C]

    x = _layernorm(x, lnf_ref[...])                               # [BT, C]

    # targets=None path: tied lm_head on ALL rows (same MXU pass), then keep last pos per batch
    logits = jnp.dot(x, wte_t_ref[...], preferred_element_type=jnp.float32)      # [BT, V]
    out_ref[...] = jnp.concatenate(
        [logits[b * T + T - 1:b * T + T, :] for b in range(B)], axis=0
    ).astype(out_ref.dtype)


# ---------------- parameters (deterministic, module-matching shapes) ----------------

def init_params(key):
    ks = iter(jax.random.split(key, 2 + 4 * N_LAYER))
    std = 0.02
    attn_proj_std = 0.02 / math.sqrt(2 * N_LAYER)   # only attention c_proj.weight
    C = N_EMBD
    scale = 1.0 / math.sqrt(C // N_HEAD)

    wte = jax.random.normal(next(ks), (VOCAB, C), jnp.float32) * std
    wpe = jax.random.normal(next(ks), (BLOCK_SIZE, C), jnp.float32) * std

    # nn.Linear stores [out, in]; pre-transpose ONCE to [in, out] so kernel does x @ w.
    w_attn, w_attn_proj, w_fc, w_mlp_proj = [], [], [], []
    for _ in range(N_LAYER):
        wa = (jax.random.normal(next(ks), (3 * C, C), jnp.float32) * std).T      # [C, 3C]
        wa = wa.at[:, :C].multiply(scale)          # fold 1/sqrt(hd) into q columns (exact math)
        wa = jnp.concatenate([wa, jnp.zeros((C, QKV_PAD - 3 * C), jnp.float32)], axis=1)
        w_attn.append(wa)                                                        # [C, 128]
        w_attn_proj.append((jax.random.normal(next(ks), (C, C), jnp.float32) * attn_proj_std).T)
        w_fc.append((jax.random.normal(next(ks), (MLP_RATIO * C, C), jnp.float32) * std).T)
        w_mlp_proj.append((jax.random.normal(next(ks), (C, MLP_RATIO * C), jnp.float32) * std).T)

    return {
        "wte": wte,                                  # [V, C]  (embedding side)
        "wte_t": wte.T,                              # [C, V]  (pre-transposed tied lm_head)
        "wpe": wpe,                                  # [BLOCK_SIZE, C]
        "ln1_w": jnp.ones((N_LAYER, 1, C), jnp.float32),
        "ln2_w": jnp.ones((N_LAYER, 1, C), jnp.float32),
        "lnf_w": jnp.ones((1, C), jnp.float32),
        "w_attn": jnp.stack(w_attn),                 # [L, C, 128]
        "w_attn_proj": jnp.stack(w_attn_proj),       # [L, C, C]
        "w_fc": jnp.stack(w_fc),                     # [L, C, 4C]
        "w_mlp_proj": jnp.stack(w_mlp_proj),         # [L, 4C, C]
    }


# ---------------- forward ----------------

def gpt_forward(params, idx):
    B, T = idx.shape
    assert T <= BLOCK_SIZE
    BT = B * T
    C, H, V = N_EMBD, N_HEAD, VOCAB
    hd = C // H

    idx2d = idx.reshape(BT, 1).astype(jnp.int32)
    # position table hoisted out of the kernel (param-only data)
    pos_bt = jnp.tile(params["wpe"][:T], (B, 1))                                  # [BT, C]
    # causal AND same-batch additive bias, constant per (B, T) -> folded at compile time
    r = jnp.arange(BT)
    valid = ((r[:, None] // T) == (r[None, :] // T)) & ((r[None, :] % T) <= (r[:, None] % T))
    attn_bias = jnp.where(valid, 0.0, -1e30).astype(jnp.float32)                  # [BT, BT]

    in_arrays = [
        idx2d, params["wte"], params["wte_t"], pos_bt, attn_bias,
        params["ln1_w"], params["w_attn"], params["w_attn_proj"],
        params["ln2_w"], params["w_fc"], params["w_mlp_proj"],
        params["lnf_w"],
    ]

    def full_spec(shape):
        n = len(shape)
        return pl.BlockSpec(shape, lambda i, _n=n: (0,) * _n)

    # advisory cost hint for XLA's scheduler
    flops = 2 * BT * V * C                                   # one-hot token embedding
    flops += N_LAYER * (2 * BT * C * (3 * C)                 # qkv
                        + H * 2 * (2 * BT * BT * hd)         # scores + PV
                        + 2 * BT * C * C                     # attn proj
                        + 2 * (2 * BT * C * (MLP_RATIO * C)))  # fc + mlp proj
    flops += 2 * BT * C * V                                  # lm_head
    transcendentals = N_LAYER * (2 * H * BT * BT + 2 * BT * MLP_RATIO * C)
    bytes_accessed = sum(int(a.size) * a.dtype.itemsize for a in in_arrays) + B * V * 4

    logits = pl.pallas_call(
        functools.partial(_gpt_kernel, B=B, T=T),
        out_shape=jax.ShapeDtypeStruct((B, VOCAB), jnp.float32),
        grid=(1,),
        in_specs=[full_spec(a.shape) for a in in_arrays],
        out_specs=full_spec((B, VOCAB)),
        compiler_params=pltpu.CompilerParams(dimension_semantics=("arbitrary",)),
        cost_estimate=pl.CostEstimate(flops=flops, transcendentals=transcendentals,
                                      bytes_accessed=bytes_accessed),
    )(*in_arrays)

    # targets=None branch of the reference: logits [B, 1, vocab], loss=None
    return logits.reshape(B, 1, VOCAB), None


if __name__ == "__main__":
    key = jax.random.PRNGKey(0)
    pkey, ikey = jax.random.split(key)
    params = init_params(pkey)

    B, T = 2, 8
    idx = jax.random.randint(ikey, (B, T), 0, VOCAB, dtype=jnp.int32)

    fwd = jax.jit(gpt_forward)
    logits, loss = fwd(params, idx)
    logits = jax.block_until_ready(logits)
    assert logits.shape == (B, 1, VOCAB), logits.shape
    assert loss is None
    assert bool(jnp.all(jnp.isfinite(logits)))
    print("KERNEL_OK")
</pallas_src>

<mosaic_0001>
module attributes {stable_mosaic.version = 11 : i64} {
  func.func @_gpt_kernel(%arg0: i32, %arg1: memref<16x1xi32, #tpu.memory_space<vmem>>, %arg2: memref<64x32xf32, #tpu.memory_space<vmem>>, %arg3: memref<32x64xf32, #tpu.memory_space<vmem>>, %arg4: memref<16x32xf32, #tpu.memory_space<vmem>>, %arg5: memref<16x16xf32, #tpu.memory_space<vmem>>, %arg6: memref<2x1x32xf32, #tpu.memory_space<vmem>>, %arg7: memref<2x32x128xf32, #tpu.memory_space<vmem>>, %arg8: memref<2x32x32xf32, #tpu.memory_space<vmem>>, %arg9: memref<2x1x32xf32, #tpu.memory_space<vmem>>, %arg10: memref<2x32x128xf32, #tpu.memory_space<vmem>>, %arg11: memref<2x128x32xf32, #tpu.memory_space<vmem>>, %arg12: memref<1x32xf32, #tpu.memory_space<vmem>>, %arg13: memref<2x64xf32, #tpu.memory_space<vmem>>) attributes {dimension_semantics = [#tpu.dimension_semantics<arbitrary>], iteration_bounds = array<i64: 1>, scalar_prefetch = 0 : i64, scratch_operands = 0 : i64, tpu.core_type = #tpu.core_type<tc>, window_params = [{pipeline_mode = #tpu.pipeline_mode<synchronous>, transform_indices = @transform_0, window_bounds = array<i64: 16, 1>}, {pipeline_mode = #tpu.pipeline_mode<synchronous>, transform_indices = @transform_1, window_bounds = array<i64: 64, 32>}, {pipeline_mode = #tpu.pipeline_mode<synchronous>, transform_indices = @transform_2, window_bounds = array<i64: 32, 64>}, {pipeline_mode = #tpu.pipeline_mode<synchronous>, transform_indices = @transform_3, window_bounds = array<i64: 16, 32>}, {pipeline_mode = #tpu.pipeline_mode<synchronous>, transform_indices = @transform_4, window_bounds = array<i64: 16, 16>}, {pipeline_mode = #tpu.pipeline_mode<synchronous>, transform_indices = @transform_5, window_bounds = array<i64: 2, 1, 32>}, {pipeline_mode = #tpu.pipeline_mode<synchronous>, transform_indices = @transform_6, window_bounds = array<i64: 2, 32, 128>}, {pipeline_mode = #tpu.pipeline_mode<synchronous>, transform_indices = @transform_7, window_bounds = array<i64: 2, 32, 32>}, {pipeline_mode = #tpu.pipeline_mode<synchronous>, transform_indices = @transform_8, window_bounds = array<i64: 2, 1, 32>}, {pipeline_mode = #tpu.pipeline_mode<synchronous>, transform_indices = @transform_9, window_bounds = array<i64: 2, 32, 128>}, {pipeline_mode = #tpu.pipeline_mode<synchronous>, transform_indices = @transform_10, window_bounds = array<i64: 2, 128, 32>}, {pipeline_mode = #tpu.pipeline_mode<synchronous>, transform_indices = @transform_11, window_bounds = array<i64: 1, 32>}, {pipeline_mode = #tpu.pipeline_mode<synchronous>, transform_indices = @transform_12, window_bounds = array<i64: 2, 64>}]} {
    %c0 = arith.constant 0 : index
    %c0_0 = arith.constant 0 : index
    %0 = vector.load %arg1[%c0, %c0_0] : memref<16x1xi32, #tpu.memory_space<vmem>>, vector<16x1xi32>
    %c0_1 = arith.constant 0 : index
    %c0_2 = arith.constant 0 : index
    %1 = vector.load %arg2[%c0_1, %c0_2] : memref<64x32xf32, #tpu.memory_space<vmem>>, vector<64x32xf32>
    %2 = tpu.iota {dimensions = array<i32: 1>} : vector<16x64xi32>
    %3 = vector.broadcast %0 : vector<16x1xi32> to vector<16x64xi32>
    %4 = arith.cmpi eq, %2, %3 : vector<16x64xi32>
    %5 = arith.extui %4 : vector<16x64xi1> to vector<16x64xi32>
    %6 = arith.sitofp %5 : vector<16x64xi32> to vector<16x64xf32>
    %cst = arith.constant dense<0.000000e+00> : vector<16x32xf32>
    %7 = tpu.matmul %6, %1, %cst {dimension_numbers = #tpu.dot_dimension_numbers<[1], [0], [0], [1], [0, 0, 1, 1], [], []>} : vector<16x64xf32>, vector<64x32xf32>, vector<16x32xf32> -> vector<16x32xf32>
    %c0_3 = arith.constant 0 : index
    %c0_4 = arith.constant 0 : index
    %8 = vector.load %arg4[%c0_3, %c0_4] : memref<16x32xf32, #tpu.memory_space<vmem>>, vector<16x32xf32>
    %9 = arith.addf %7, %8 : vector<16x32xf32>
    %c0_5 = arith.constant 0 : index
    %c0_6 = arith.constant 0 : index
    %10 = vector.load %arg5[%c0_5, %c0_6] : memref<16x16xf32, #tpu.memory_space<vmem>>, vector<16x16xf32>
    %c0_7 = arith.constant 0 : index
    %c0_8 = arith.constant 0 : index
    %c0_9 = arith.constant 0 : index
    %11 = vector.load %arg6[%c0_7, %c0_8, %c0_9] : memref<2x1x32xf32, #tpu.memory_space<vmem>>, vector<1x1x32xf32>
    %12 = vector.shape_cast %11 : vector<1x1x32xf32> to vector<1x32xf32>
    %cst_10 = arith.constant dense<0.000000e+00> : vector<16xf32>
    %13 = vector.multi_reduction <add>, %9, %cst_10 [1] : vector<16x32xf32> to vector<16xf32>
    %14 = vector.shape_cast %13 : vector<16xf32> to vector<16x1xf32>
    %cst_11 = arith.constant 3.200000e+01 : f32
    %15 = vector.broadcast %cst_11 : f32 to vector<16x1xf32>
    %16 = arith.divf %14, %15 : vector<16x1xf32>
    %17 = vector.broadcast %16 : vector<16x1xf32> to vector<16x32xf32>
    %18 = arith.subf %9, %17 : vector<16x32xf32>
    %19 = arith.mulf %18, %18 : vector<16x32xf32>
    %cst_12 = arith.constant dense<0.000000e+00> : vector<16xf32>
    %20 = vector.multi_reduction <add>, %19, %cst_12 [1] : vector<16x32xf32> to vector<16xf32>
    %21 = vector.shape_cast %20 : vector<16xf32> to vector<16x1xf32>
    %cst_13 = arith.constant 3.200000e+01 : f32
    %22 = vector.broadcast %cst_13 : f32 to vector<16x1xf32>
    %23 = arith.divf %21, %22 : vector<16x1xf32>
    %cst_14 = arith.constant 9.99999974E-6 : f32
    %24 = vector.broadcast %cst_14 : f32 to vector<16x1xf32>
    %25 = arith.addf %23, %24 : vector<16x1xf32>
    %26 = math.rsqrt %25 : vector<16x1xf32>
    %27 = vector.broadcast %26 : vector<16x1xf32> to vector<16x32xf32>
    %28 = arith.mulf %18, %27 : vector<16x32xf32>
    %29 = vector.broadcast %12 : vector<1x32xf32> to vector<16x32xf32>
    %30 = arith.mulf %28, %29 : vector<16x32xf32>
    %c0_15 = arith.constant 0 : index
    %c0_16 = arith.constant 0 : index
    %c0_17 = arith.constant 0 : index
    %31 = vector.load %arg7[%c0_15, %c0_16, %c0_17] : memref<2x32x128xf32, #tpu.memory_space<vmem>>, vector<1x32x128xf32>
    %32 = vector.shape_cast %31 : vector<1x32x128xf32> to vector<32x128xf32>
    %cst_18 = arith.constant dense<0.000000e+00> : vector<16x128xf32>
    %33 = tpu.matmul %30, %32, %cst_18 {dimension_numbers = #tpu.dot_dimension_numbers<[1], [0], [0], [1], [0, 0, 1, 1], [], []>} : vector<16x32xf32>, vector<32x128xf32>, vector<16x128xf32> -> vector<16x128xf32>
    %34 = vector.extract_strided_slice %33 {offsets = [0, 0], sizes = [16, 8], strides = [1, 1]} : vector<16x128xf32> to vector<16x8xf32>
    %35 = vector.extract_strided_slice %33 {offsets = [0, 32], sizes = [16, 8], strides = [1, 1]} : vector<16x128xf32> to vector<16x8xf32>
    %36 = vector.extract_strided_slice %33 {offsets = [0, 64], sizes = [16, 8], strides = [1, 1]} : vector<16x128xf32> to vector<16x8xf32>
    %cst_19 = arith.constant dense<0.000000e+00> : vector<16x16xf32>
    %37 = tpu.matmul %34, %35, %cst_19 {dimension_numbers = #tpu.dot_dimension_numbers<[1], [1], [0], [0], [0, 0, 1, 0], [], []>} : vector<16x8xf32>, vector<16x8xf32>, vector<16x16xf32> -> vector<16x16xf32>
    %38 = arith.addf %37, %10 : vector<16x16xf32>
    %cst_20 = arith.constant dense<0xFF800000> : vector<16xf32>
    %39 = vector.multi_reduction <maximumf>, %38, %cst_20 [1] : vector<16x16xf32> to vector<16xf32>
    %40 = vector.shape_cast %39 : vector<16xf32> to vector<16x1xf32>
    %41 = vector.broadcast %40 : vector<16x1xf32> to vector<16x16xf32>
    %42 = arith.subf %38, %41 : vector<16x16xf32>
    %43 = math.exp %42 : vector<16x16xf32>
    %cst_21 = arith.constant dense<0.000000e+00> : vector<16xf32>
    %44 = vector.multi_reduction <add>, %43, %cst_21 [1] : vector<16x16xf32> to vector<16xf32>
    %45 = vector.shape_cast %44 : vector<16xf32> to vector<16x1xf32>
    %46 = tpu.reciprocal %45 {approx = true} : vector<16x1xf32> -> vector<16x1xf32>
    %47 = vector.broadcast %46 : vector<16x1xf32> to vector<16x16xf32>
    %48 = arith.mulf %43, %47 : vector<16x16xf32>
    %cst_22 = arith.constant dense<0.000000e+00> : vector<16x8xf32>
    %49 = tpu.matmul %48, %36, %cst_22 {dimension_numbers = #tpu.dot_dimension_numbers<[1], [0], [0], [1], [0, 0, 1, 1], [], []>} : vector<16x16xf32>, vector<16x8xf32>, vector<16x8xf32> -> vector<16x8xf32>
    %50 = vector.extract_strided_slice %33 {offsets = [0, 8], sizes = [16, 8], strides = [1, 1]} : vector<16x128xf32> to vector<16x8xf32>
    %51 = vector.extract_strided_slice %33 {offsets = [0, 40], sizes = [16, 8], strides = [1, 1]} : vector<16x128xf32> to vector<16x8xf32>
    %52 = vector.extract_strided_slice %33 {offsets = [0, 72], sizes = [16, 8], strides = [1, 1]} : vector<16x128xf32> to vector<16x8xf32>
    %cst_23 = arith.constant dense<0.000000e+00> : vector<16x16xf32>
    %53 = tpu.matmul %50, %51, %cst_23 {dimension_numbers = #tpu.dot_dimension_numbers<[1], [1], [0], [0], [0, 0, 1, 0], [], []>} : vector<16x8xf32>, vector<16x8xf32>, vector<16x16xf32> -> vector<16x16xf32>
    %54 = arith.addf %53, %10 : vector<16x16xf32>
    %cst_24 = arith.constant dense<0xFF800000> : vector<16xf32>
    %55 = vector.multi_reduction <maximumf>, %54, %cst_24 [1] : vector<16x16xf32> to vector<16xf32>
    %56 = vector.shape_cast %55 : vector<16xf32> to vector<16x1xf32>
    %57 = vector.broadcast %56 : vector<16x1xf32> to vector<16x16xf32>
    %58 = arith.subf %54, %57 : vector<16x16xf32>
    %59 = math.exp %58 : vector<16x16xf32>
    %cst_25 = arith.constant dense<0.000000e+00> : vector<16xf32>
    %60 = vector.multi_reduction <add>, %59, %cst_25 [1] : vector<16x16xf32> to vector<16xf32>
    %61 = vector.shape_cast %60 : vector<16xf32> to vector<16x1xf32>
    %62 = tpu.reciprocal %61 {approx = true} : vector<16x1xf32> -> vector<16x1xf32>
    %63 = vector.broadcast %62 : vector<16x1xf32> to vector<16x16xf32>
    %64 = arith.mulf %59, %63 : vector<16x16xf32>
    %cst_26 = arith.constant dense<0.000000e+00> : vector<16x8xf32>
    %65 = tpu.matmul %64, %52, %cst_26 {dimension_numbers = #tpu.dot_dimension_numbers<[1], [0], [0], [1], [0, 0, 1, 1], [], []>} : vector<16x16xf32>, vector<16x8xf32>, vector<16x8xf32> -> vector<16x8xf32>
    %66 = vector.extract_strided_slice %33 {offsets = [0, 16], sizes = [16, 8], strides = [1, 1]} : vector<16x128xf32> to vector<16x8xf32>
    %67 = vector.extract_strided_slice %33 {offsets = [0, 48], sizes = [16, 8], strides = [1, 1]} : vector<16x128xf32> to vector<16x8xf32>
    %68 = vector.extract_strided_slice %33 {offsets = [0, 80], sizes = [16, 8], strides = [1, 1]} : vector<16x128xf32> to vector<16x8xf32>
    %cst_27 = arith.constant dense<0.000000e+00> : vector<16x16xf32>
    %69 = tpu.matmul %66, %67, %cst_27 {dimension_numbers = #tpu.dot_dimension_numbers<[1], [1], [0], [0], [0, 0, 1, 0], [], []>} : vector<16x8xf32>, vector<16x8xf32>, vector<16x16xf32> -> vector<16x16xf32>
    %70 = arith.addf %69, %10 : vector<16x16xf32>
    %cst_28 = arith.constant dense<0xFF800000> : vector<16xf32>
    %71 = vector.multi_reduction <maximumf>, %70, %cst_28 [1] : vector<16x16xf32> to vector<16xf32>
    %72 = vector.shape_cast %71 : vector<16xf32> to vector<16x1xf32>
    %73 = vector.broadcast %72 : vector<16x1xf32> to vector<16x16xf32>
    %74 = arith.subf %70, %73 : vector<16x16xf32>
    %75 = math.exp %74 : vector<16x16xf32>
    %cst_29 = arith.constant dense<0.000000e+00> : vector<16xf32>
    %76 = vector.multi_reduction <add>, %75, %cst_29 [1] : vector<16x16xf32> to vector<16xf32>
    %77 = vector.shape_cast %76 : vector<16xf32> to vector<16x1xf32>
    %78 = tpu.reciprocal %77 {approx = true} : vector<16x1xf32> -> vector<16x1xf32>
    %79 = vector.broadcast %78 : vector<16x1xf32> to vector<16x16xf32>
    %80 = arith.mulf %75, %79 : vector<16x16xf32>
    %cst_30 = arith.constant dense<0.000000e+00> : vector<16x8xf32>
    %81 = tpu.matmul %80, %68, %cst_30 {dimension_numbers = #tpu.dot_dimension_numbers<[1], [0], [0], [1], [0, 0, 1, 1], [], []>} : vector<16x16xf32>, vector<16x8xf32>, vector<16x8xf32> -> vector<16x8xf32>
    %82 = vector.extract_strided_slice %33 {offsets = [0, 24], sizes = [16, 8], strides = [1, 1]} : vector<16x128xf32> to vector<16x8xf32>
    %83 = vector.extract_strided_slice %33 {offsets = [0, 56], sizes = [16, 8], strides = [1, 1]} : vector<16x128xf32> to vector<16x8xf32>
    %84 = vector.extract_strided_slice %33 {offsets = [0, 88], sizes = [16, 8], strides = [1, 1]} : vector<16x128xf32> to vector<16x8xf32>
    %cst_31 = arith.constant dense<0.000000e+00> : vector<16x16xf32>
    %85 = tpu.matmul %82, %83, %cst_31 {dimension_numbers = #tpu.dot_dimension_numbers<[1], [1], [0], [0], [0, 0, 1, 0], [], []>} : vector<16x8xf32>, vector<16x8xf32>, vector<16x16xf32> -> vector<16x16xf32>
    %86 = arith.addf %85, %10 : vector<16x16xf32>
    %cst_32 = arith.constant dense<0xFF800000> : vector<16xf32>
    %87 = vector.multi_reduction <maximumf>, %86, %cst_32 [1] : vector<16x16xf32> to vector<16xf32>
    %88 = vector.shape_cast %87 : vector<16xf32> to vector<16x1xf32>
    %89 = vector.broadcast %88 : vector<16x1xf32> to vector<16x16xf32>
    %90 = arith.subf %86, %89 : vector<16x16xf32>
    %91 = math.exp %90 : vector<16x16xf32>
    %cst_33 = arith.constant dense<0.000000e+00> : vector<16xf32>
    %92 = vector.multi_reduction <add>, %91, %cst_33 [1] : vector<16x16xf32> to vector<16xf32>
    %93 = vector.shape_cast %92 : vector<16xf32> to vector<16x1xf32>
    %94 = tpu.reciprocal %93 {approx = true} : vector<16x1xf32> -> vector<16x1xf32>
    %95 = vector.broadcast %94 : vector<16x1xf32> to vector<16x16xf32>
    %96 = arith.mulf %91, %95 : vector<16x16xf32>
    %cst_34 = arith.constant dense<0.000000e+00> : vector<16x8xf32>
    %97 = tpu.matmul %96, %84, %cst_34 {dimension_numbers = #tpu.dot_dimension_numbers<[1], [0], [0], [1], [0, 0, 1, 1], [], []>} : vector<16x16xf32>, vector<16x8xf32>, vector<16x8xf32> -> vector<16x8xf32>
    %98 = tpu.concatenate %49, %65, %81, %97 in 1 : vector<16x8xf32>, vector<16x8xf32>, vector<16x8xf32>, vector<16x8xf32> -> vector<16x32xf32>
    %c0_35 = arith.constant 0 : index
    %c0_36 = arith.constant 0 : index
    %c0_37 = arith.constant 0 : index
    %99 = vector.load %arg8[%c0_35, %c0_36, %c0_37] : memref<2x32x32xf32, #tpu.memory_space<vmem>>, vector<1x32x32xf32>
    %100 = vector.shape_cast %99 : vector<1x32x32xf32> to vector<32x32xf32>
    %cst_38 = arith.constant dense<0.000000e+00> : vector<16x32xf32>
    %101 = tpu.matmul %98, %100, %cst_38 {dimension_numbers = #tpu.dot_dimension_numbers<[1], [0], [0], [1], [0, 0, 1, 1], [], []>} : vector<16x32xf32>, vector<32x32xf32>, vector<16x32xf32> -> vector<16x32xf32>
    %102 = arith.addf %9, %101 : vector<16x32xf32>
    %c0_39 = arith.constant 0 : index
    %c0_40 = arith.constant 0 : index
    %c0_41 = arith.constant 0 : index
    %103 = vector.load %arg9[%c0_39, %c0_40, %c0_41] : memref<2x1x32xf32, #tpu.memory_space<vmem>>, vector<1x1x32xf32>
    %104 = vector.shape_cast %103 : vector<1x1x32xf32> to vector<1x32xf32>
    %cst_42 = arith.constant dense<0.000000e+00> : vector<16xf32>
    %105 = vector.multi_reduction <add>, %102, %cst_42 [1] : vector<16x32xf32> to vector<16xf32>
    %106 = vector.shape_cast %105 : vector<16xf32> to vector<16x1xf32>
    %cst_43 = arith.constant 3.200000e+01 : f32
    %107 = vector.broadcast %cst_43 : f32 to vector<16x1xf32>
    %108 = arith.divf %106, %107 : vector<16x1xf32>
    %109 = vector.broadcast %108 : vector<16x1xf32> to vector<16x32xf32>
    %110 = arith.subf %102, %109 : vector<16x32xf32>
    %111 = arith.mulf %110, %110 : vector<16x32xf32>
    %cst_44 = arith.constant dense<0.000000e+00> : vector<16xf32>
    %112 = vector.multi_reduction <add>, %111, %cst_44 [1] : vector<16x32xf32> to vector<16xf32>
    %113 = vector.shape_cast %112 : vector<16xf32> to vector<16x1xf32>
    %cst_45 = arith.constant 3.200000e+01 : f32
    %114 = vector.broadcast %cst_45 : f32 to vector<16x1xf32>
    %115 = arith.divf %113, %114 : vector<16x1xf32>
    %cst_46 = arith.constant 9.99999974E-6 : f32
    %116 = vector.broadcast %cst_46 : f32 to vector<16x1xf32>
    %117 = arith.addf %115, %116 : vector<16x1xf32>
    %118 = math.rsqrt %117 : vector<16x1xf32>
    %119 = vector.broadcast %118 : vector<16x1xf32> to vector<16x32xf32>
    %120 = arith.mulf %110, %119 : vector<16x32xf32>
    %121 = vector.broadcast %104 : vector<1x32xf32> to vector<16x32xf32>
    %122 = arith.mulf %120, %121 : vector<16x32xf32>
    %c0_47 = arith.constant 0 : index
    %c0_48 = arith.constant 0 : index
    %c0_49 = arith.constant 0 : index
    %123 = vector.load %arg10[%c0_47, %c0_48, %c0_49] : memref<2x32x128xf32, #tpu.memory_space<vmem>>, vector<1x32x128xf32>
    %124 = vector.shape_cast %123 : vector<1x32x128xf32> to vector<32x128xf32>
    %cst_50 = arith.constant dense<0.000000e+00> : vector<16x128xf32>
    %125 = tpu.matmul %122, %124, %cst_50 {dimension_numbers = #tpu.dot_dimension_numbers<[1], [0], [0], [1], [0, 0, 1, 1], [], []>} : vector<16x32xf32>, vector<32x128xf32>, vector<16x128xf32> -> vector<16x128xf32>
    %cst_51 = arith.constant 5.000000e-01 : f32
    %126 = vector.broadcast %cst_51 : f32 to vector<16x128xf32>
    %127 = arith.mulf %126, %125 : vector<16x128xf32>
    %cst_52 = arith.constant 0.707106769 : f32
    %128 = vector.broadcast %cst_52 : f32 to vector<16x128xf32>
    %129 = arith.mulf %125, %128 : vector<16x128xf32>
    %cst_53 = arith.constant 0.000000e+00 : f32
    %130 = vector.broadcast %cst_53 : f32 to vector<16x128xf32>
    %131 = arith.cmpf oge, %129, %130 : vector<16x128xf32>
    %cst_54 = arith.constant 1.000000e+00 : f32
    %cst_55 = arith.constant -1.000000e+00 : f32
    %132 = vector.broadcast %cst_54 : f32 to vector<16x128xf32>
    %133 = vector.broadcast %cst_55 : f32 to vector<16x128xf32>
    %134 = arith.select %131, %132, %133 : vector<16x128xi1>, vector<16x128xf32>
    %135 = math.absf %129 : vector<16x128xf32>
    %cst_56 = arith.constant 0.327591091 : f32
    %136 = vector.broadcast %cst_56 : f32 to vector<16x128xf32>
    %137 = arith.mulf %136, %135 : vector<16x128xf32>
    %cst_57 = arith.constant 1.000000e+00 : f32
    %138 = vector.broadcast %cst_57 : f32 to vector<16x128xf32>
    %139 = arith.addf %138, %137 : vector<16x128xf32>
    %140 = tpu.reciprocal %139 {approx = true} : vector<16x128xf32> -> vector<16x128xf32>
    %cst_58 = arith.constant 1.06140542 : f32
    %141 = vector.broadcast %cst_58 : f32 to vector<16x128xf32>
    %142 = arith.mulf %141, %140 : vector<16x128xf32>
    %cst_59 = arith.constant -1.45315206 : f32
    %143 = vector.broadcast %cst_59 : f32 to vector<16x128xf32>
    %144 = arith.addf %142, %143 : vector<16x128xf32>
    %145 = arith.mulf %144, %140 : vector<16x128xf32>
    %cst_60 = arith.constant 1.42141378 : f32
    %146 = vector.broadcast %cst_60 : f32 to vector<16x128xf32>
    %147 = arith.addf %145, %146 : vector<16x128xf32>
    %148 = arith.mulf %147, %140 : vector<16x128xf32>
    %cst_61 = arith.constant -0.284496725 : f32
    %149 = vector.broadcast %cst_61 : f32 to vector<16x128xf32>
    %150 = arith.addf %148, %149 : vector<16x128xf32>
    %151 = arith.mulf %150, %140 : vector<16x128xf32>
    %cst_62 = arith.constant 0.254829586 : f32
    %152 = vector.broadcast %cst_62 : f32 to vector<16x128xf32>
    %153 = arith.addf %151, %152 : vector<16x128xf32>
    %154 = arith.mulf %153, %140 : vector<16x128xf32>
    %cst_63 = arith.constant 0.000000e+00 : f32
    %155 = vector.broadcast %cst_63 : f32 to vector<16x128xf32>
    %156 = arith.subf %155, %135 : vector<16x128xf32>
    %157 = arith.mulf %156, %135 : vector<16x128xf32>
    %158 = math.exp %157 : vector<16x128xf32>
    %159 = arith.mulf %154, %158 : vector<16x128xf32>
    %cst_64 = arith.constant 1.000000e+00 : f32
    %160 = vector.broadcast %cst_64 : f32 to vector<16x128xf32>
    %161 = arith.subf %160, %159 : vector<16x128xf32>
    %162 = arith.mulf %134, %161 : vector<16x128xf32>
    %cst_65 = arith.constant 1.000000e+00 : f32
    %163 = vector.broadcast %cst_65 : f32 to vector<16x128xf32>
    %164 = arith.addf %163, %162 : vector<16x128xf32>
    %165 = arith.mulf %127, %164 : vector<16x128xf32>
    %c0_66 = arith.constant 0 : index
    %c0_67 = arith.constant 0 : index
    %c0_68 = arith.constant 0 : index
    %166 = vector.load %arg11[%c0_66, %c0_67, %c0_68] : memref<2x128x32xf32, #tpu.memory_space<vmem>>, vector<1x128x32xf32>
    %167 = vector.shape_cast %166 : vector<1x128x32xf32> to vector<128x32xf32>
    %cst_69 = arith.constant dense<0.000000e+00> : vector<16x32xf32>
    %168 = tpu.matmul %165, %167, %cst_69 {dimension_numbers = #tpu.dot_dimension_numbers<[1], [0], [0], [1], [0, 0, 1, 1], [], []>} : vector<16x128xf32>, vector<128x32xf32>, vector<16x32xf32> -> vector<16x32xf32>
    %169 = arith.addf %102, %168 : vector<16x32xf32>
    %c1 = arith.constant 1 : index
    %c0_70 = arith.constant 0 : index
    %c0_71 = arith.constant 0 : index
    %170 = vector.load %arg6[%c1, %c0_70, %c0_71] : memref<2x1x32xf32, #tpu.memory_space<vmem>>, vector<1x1x32xf32>
    %171 = vector.shape_cast %170 : vector<1x1x32xf32> to vector<1x32xf32>
    %cst_72 = arith.constant dense<0.000000e+00> : vector<16xf32>
    %172 = vector.multi_reduction <add>, %169, %cst_72 [1] : vector<16x32xf32> to vector<16xf32>
    %173 = vector.shape_cast %172 : vector<16xf32> to vector<16x1xf32>
    %cst_73 = arith.constant 3.200000e+01 : f32
    %174 = vector.broadcast %cst_73 : f32 to vector<16x1xf32>
    %175 = arith.divf %173, %174 : vector<16x1xf32>
    %176 = vector.broadcast %175 : vector<16x1xf32> to vector<16x32xf32>
    %177 = arith.subf %169, %176 : vector<16x32xf32>
    %178 = arith.mulf %177, %177 : vector<16x32xf32>
    %cst_74 = arith.constant dense<0.000000e+00> : vector<16xf32>
    %179 = vector.multi_reduction <add>, %178, %cst_74 [1] : vector<16x32xf32> to vector<16xf32>
    %180 = vector.shape_cast %179 : vector<16xf32> to vector<16x1xf32>
    %cst_75 = arith.constant 3.200000e+01 : f32
    %181 = vector.broadcast %cst_75 : f32 to vector<16x1xf32>
    %182 = arith.divf %180, %181 : vector<16x1xf32>
    %cst_76 = arith.constant 9.99999974E-6 : f32
    %183 = vector.broadcast %cst_76 : f32 to vector<16x1xf32>
    %184 = arith.addf %182, %183 : vector<16x1xf32>
    %185 = math.rsqrt %184 : vector<16x1xf32>
    %186 = vector.broadcast %185 : vector<16x1xf32> to vector<16x32xf32>
    %187 = arith.mulf %177, %186 : vector<16x32xf32>
    %188 = vector.broadcast %171 : vector<1x32xf32> to vector<16x32xf32>
    %189 = arith.mulf %187, %188 : vector<16x32xf32>
    %c1_77 = arith.constant 1 : index
    %c0_78 = arith.constant 0 : index
    %c0_79 = arith.constant 0 : index
    %190 = vector.load %arg7[%c1_77, %c0_78, %c0_79] : memref<2x32x128xf32, #tpu.memory_space<vmem>>, vector<1x32x128xf32>
    %191 = vector.shape_cast %190 : vector<1x32x128xf32> to vector<32x128xf32>
    %cst_80 = arith.constant dense<0.000000e+00> : vector<16x128xf32>
    %192 = tpu.matmul %189, %191, %cst_80 {dimension_numbers = #tpu.dot_dimension_numbers<[1], [0], [0], [1], [0, 0, 1, 1], [], []>} : vector<16x32xf32>, vector<32x128xf32>, vector<16x128xf32> -> vector<16x128xf32>
    %193 = vector.extract_strided_slice %192 {offsets = [0, 0], sizes = [16, 8], strides = [1, 1]} : vector<16x128xf32> to vector<16x8xf32>
    %194 = vector.extract_strided_slice %192 {offsets = [0, 32], sizes = [16, 8], strides = [1, 1]} : vector<16x128xf32> to vector<16x8xf32>
    %195 = vector.extract_strided_slice %192 {offsets = [0, 64], sizes = [16, 8], strides = [1, 1]} : vector<16x128xf32> to vector<16x8xf32>
    %cst_81 = arith.constant dense<0.000000e+00> : vector<16x16xf32>
    %196 = tpu.matmul %193, %194, %cst_81 {dimension_numbers = #tpu.dot_dimension_numbers<[1], [1], [0], [0], [0, 0, 1, 0], [], []>} : vector<16x8xf32>, vector<16x8xf32>, vector<16x16xf32> -> vector<16x16xf32>
    %197 = arith.addf %196, %10 : vector<16x16xf32>
    %cst_82 = arith.constant dense<0xFF800000> : vector<16xf32>
    %198 = vector.multi_reduction <maximumf>, %197, %cst_82 [1] : vector<16x16xf32> to vector<16xf32>
    %199 = vector.shape_cast %198 : vector<16xf32> to vector<16x1xf32>
    %200 = vector.broadcast %199 : vector<16x1xf32> to vector<16x16xf32>
    %201 = arith.subf %197, %200 : vector<16x16xf32>
    %202 = math.exp %201 : vector<16x16xf32>
    %cst_83 = arith.constant dense<0.000000e+00> : vector<16xf32>
    %203 = vector.multi_reduction <add>, %202, %cst_83 [1] : vector<16x16xf32> to vector<16xf32>
    %204 = vector.shape_cast %203 : vector<16xf32> to vector<16x1xf32>
    %205 = tpu.reciprocal %204 {approx = true} : vector<16x1xf32> -> vector<16x1xf32>
    %206 = vector.broadcast %205 : vector<16x1xf32> to vector<16x16xf32>
    %207 = arith.mulf %202, %206 : vector<16x16xf32>
    %cst_84 = arith.constant dense<0.000000e+00> : vector<16x8xf32>
    %208 = tpu.matmul %207, %195, %cst_84 {dimension_numbers = #tpu.dot_dimension_numbers<[1], [0], [0], [1], [0, 0, 1, 1], [], []>} : vector<16x16xf32>, vector<16x8xf32>, vector<16x8xf32> -> vector<16x8xf32>
    %209 = vector.extract_strided_slice %192 {offsets = [0, 8], sizes = [16, 8], strides = [1, 1]} : vector<16x128xf32> to vector<16x8xf32>
    %210 = vector.extract_strided_slice %192 {offsets = [0, 40], sizes = [16, 8], strides = [1, 1]} : vector<16x128xf32> to vector<16x8xf32>
    %211 = vector.extract_strided_slice %192 {offsets = [0, 72], sizes = [16, 8], strides = [1, 1]} : vector<16x128xf32> to vector<16x8xf32>
    %cst_85 = arith.constant dense<0.000000e+00> : vector<16x16xf32>
    %212 = tpu.matmul %209, %210, %cst_85 {dimension_numbers = #tpu.dot_dimension_numbers<[1], [1], [0], [0], [0, 0, 1, 0], [], []>} : vector<16x8xf32>, vector<16x8xf32>, vector<16x16xf32> -> vector<16x16xf32>
    %213 = arith.addf %212, %10 : vector<16x16xf32>
    %cst_86 = arith.constant dense<0xFF800000> : vector<16xf32>
    %214 = vector.multi_reduction <maximumf>, %213, %cst_86 [1] : vector<16x16xf32> to vector<16xf32>
    %215 = vector.shape_cast %214 : vector<16xf32> to vector<16x1xf32>
    %216 = vector.broadcast %215 : vector<16x1xf32> to vector<16x16xf32>
    %217 = arith.subf %213, %216 : vector<16x16xf32>
    %218 = math.exp %217 : vector<16x16xf32>
    %cst_87 = arith.constant dense<0.000000e+00> : vector<16xf32>
    %219 = vector.multi_reduction <add>, %218, %cst_87 [1] : vector<16x16xf32> to vector<16xf32>
    %220 = vector.shape_cast %219 : vector<16xf32> to vector<16x1xf32>
    %221 = tpu.reciprocal %220 {approx = true} : vector<16x1xf32> -> vector<16x1xf32>
    %222 = vector.broadcast %221 : vector<16x1xf32> to vector<16x16xf32>
    %223 = arith.mulf %218, %222 : vector<16x16xf32>
    %cst_88 = arith.constant dense<0.000000e+00> : vector<16x8xf32>
    %224 = tpu.matmul %223, %211, %cst_88 {dimension_numbers = #tpu.dot_dimension_numbers<[1], [0], [0], [1], [0, 0, 1, 1], [], []>} : vector<16x16xf32>, vector<16x8xf32>, vector<16x8xf32> -> vector<16x8xf32>
    %225 = vector.extract_strided_slice %192 {offsets = [0, 16], sizes = [16, 8], strides = [1, 1]} : vector<16x128xf32> to vector<16x8xf32>
    %226 = vector.extract_strided_slice %192 {offsets = [0, 48], sizes = [16, 8], strides = [1, 1]} : vector<16x128xf32> to vector<16x8xf32>
    %227 = vector.extract_strided_slice %192 {offsets = [0, 80], sizes = [16, 8], strides = [1, 1]} : vector<16x128xf32> to vector<16x8xf32>
    %cst_89 = arith.constant dense<0.000000e+00> : vector<16x16xf32>
    %228 = tpu.matmul %225, %226, %cst_89 {dimension_numbers = #tpu.dot_dimension_numbers<[1], [1], [0], [0], [0, 0, 1, 0], [], []>} : vector<16x8xf32>, vector<16x8xf32>, vector<16x16xf32> -> vector<16x16xf32>
    %229 = arith.addf %228, %10 : vector<16x16xf32>
    %cst_90 = arith.constant dense<0xFF800000> : vector<16xf32>
    %230 = vector.multi_reduction <maximumf>, %229, %cst_90 [1] : vector<16x16xf32> to vector<16xf32>
    %231 = vector.shape_cast %230 : vector<16xf32> to vector<16x1xf32>
    %232 = vector.broadcast %231 : vector<16x1xf32> to vector<16x16xf32>
    %233 = arith.subf %229, %232 : vector<16x16xf32>
    %234 = math.exp %233 : vector<16x16xf32>
    %cst_91 = arith.constant dense<0.000000e+00> : vector<16xf32>
    %235 = vector.multi_reduction <add>, %234, %cst_91 [1] : vector<16x16xf32> to vector<16xf32>
    %236 = vector.shape_cast %235 : vector<16xf32> to vector<16x1xf32>
    %237 = tpu.reciprocal %236 {approx = true} : vector<16x1xf32> -> vector<16x1xf32>
    %238 = vector.broadcast %237 : vector<16x1xf32> to vector<16x16xf32>
    %239 = arith.mulf %234, %238 : vector<16x16xf32>
    %cst_92 = arith.constant dense<0.000000e+00> : vector<16x8xf32>
    %240 = tpu.matmul %239, %227, %cst_92 {dimension_numbers = #tpu.dot_dimension_numbers<[1], [0], [0], [1], [0, 0, 1, 1], [], []>} : vector<16x16xf32>, vector<16x8xf32>, vector<16x8xf32> -> vector<16x8xf32>
    %241 = vector.extract_strided_slice %192 {offsets = [0, 24], sizes = [16, 8], strides = [1, 1]} : vector<16x128xf32> to vector<16x8xf32>
    %242 = vector.extract_strided_slice %192 {offsets = [0, 56], sizes = [16, 8], strides = [1, 1]} : vector<16x128xf32> to vector<16x8xf32>
    %243 = vector.extract_strided_slice %192 {offsets = [0, 88], sizes = [16, 8], strides = [1, 1]} : vector<16x128xf32> to vector<16x8xf32>
    %cst_93 = arith.constant dense<0.000000e+00> : vector<16x16xf32>
    %244 = tpu.matmul %241, %242, %cst_93 {dimension_numbers = #tpu.dot_dimension_numbers<[1], [1], [0], [0], [0, 0, 1, 0], [], []>} : vector<16x8xf32>, vector<16x8xf32>, vector<16x16xf32> -> vector<16x16xf32>
    %245 = arith.addf %244, %10 : vector<16x16xf32>
    %cst_94 = arith.constant dense<0xFF800000> : vector<16xf32>
    %246 = vector.multi_reduction <maximumf>, %245, %cst_94 [1] : vector<16x16xf32> to vector<16xf32>
    %247 = vector.shape_cast %246 : vector<16xf32> to vector<16x1xf32>
    %248 = vector.broadcast %247 : vector<16x1xf32> to vector<16x16xf32>
    %249 = arith.subf %245, %248 : vector<16x16xf32>
    %250 = math.exp %249 : vector<16x16xf32>
    %cst_95 = arith.constant dense<0.000000e+00> : vector<16xf32>
    %251 = vector.multi_reduction <add>, %250, %cst_95 [1] : vector<16x16xf32> to vector<16xf32>
    %252 = vector.shape_cast %251 : vector<16xf32> to vector<16x1xf32>
    %253 = tpu.reciprocal %252 {approx = true} : vector<16x1xf32> -> vector<16x1xf32>
    %254 = vector.broadcast %253 : vector<16x1xf32> to vector<16x16xf32>
    %255 = arith.mulf %250, %254 : vector<16x16xf32>
    %cst_96 = arith.constant dense<0.000000e+00> : vector<16x8xf32>
    %256 = tpu.matmul %255, %243, %cst_96 {dimension_numbers = #tpu.dot_dimension_numbers<[1], [0], [0], [1], [0, 0, 1, 1], [], []>} : vector<16x16xf32>, vector<16x8xf32>, vector<16x8xf32> -> vector<16x8xf32>
    %257 = tpu.concatenate %208, %224, %240, %256 in 1 : vector<16x8xf32>, vector<16x8xf32>, vector<16x8xf32>, vector<16x8xf32> -> vector<16x32xf32>
    %c1_97 = arith.constant 1 : index
    %c0_98 = arith.constant 0 : index
    %c0_99 = arith.constant 0 : index
    %258 = vector.load %arg8[%c1_97, %c0_98, %c0_99] : memref<2x32x32xf32, #tpu.memory_space<vmem>>, vector<1x32x32xf32>
    %259 = vector.shape_cast %258 : vector<1x32x32xf32> to vector<32x32xf32>
    %cst_100 = arith.constant dense<0.000000e+00> : vector<16x32xf32>
    %260 = tpu.matmul %257, %259, %cst_100 {dimension_numbers = #tpu.dot_dimension_numbers<[1], [0], [0], [1], [0, 0, 1, 1], [], []>} : vector<16x32xf32>, vector<32x32xf32>, vector<16x32xf32> -> vector<16x32xf32>
    %261 = arith.addf %169, %260 : vector<16x32xf32>
    %c1_101 = arith.constant 1 : index
    %c0_102 = arith.constant 0 : index
    %c0_103 = arith.constant 0 : index
    %262 = vector.load %arg9[%c1_101, %c0_102, %c0_103] : memref<2x1x32xf32, #tpu.memory_space<vmem>>, vector<1x1x32xf32>
    %263 = vector.shape_cast %262 : vector<1x1x32xf32> to vector<1x32xf32>
    %cst_104 = arith.constant dense<0.000000e+00> : vector<16xf32>
    %264 = vector.multi_reduction <add>, %261, %cst_104 [1] : vector<16x32xf32> to vector<16xf32>
    %265 = vector.shape_cast %264 : vector<16xf32> to vector<16x1xf32>
    %cst_105 = arith.constant 3.200000e+01 : f32
    %266 = vector.broadcast %cst_105 : f32 to vector<16x1xf32>
    %267 = arith.divf %265, %266 : vector<16x1xf32>
    %268 = vector.broadcast %267 : vector<16x1xf32> to vector<16x32xf32>
    %269 = arith.subf %261, %268 : vector<16x32xf32>
    %270 = arith.mulf %269, %269 : vector<16x32xf32>
    %cst_106 = arith.constant dense<0.000000e+00> : vector<16xf32>
    %271 = vector.multi_reduction <add>, %270, %cst_106 [1] : vector<16x32xf32> to vector<16xf32>
    %272 = vector.shape_cast %271 : vector<16xf32> to vector<16x1xf32>
    %cst_107 = arith.constant 3.200000e+01 : f32
    %273 = vector.broadcast %cst_107 : f32 to vector<16x1xf32>
    %274 = arith.divf %272, %273 : vector<16x1xf32>
    %cst_108 = arith.constant 9.99999974E-6 : f32
    %275 = vector.broadcast %cst_108 : f32 to vector<16x1xf32>
    %276 = arith.addf %274, %275 : vector<16x1xf32>
    %277 = math.rsqrt %276 : vector<16x1xf32>
    %278 = vector.broadcast %277 : vector<16x1xf32> to vector<16x32xf32>
    %279 = arith.mulf %269, %278 : vector<16x32xf32>
    %280 = vector.broadcast %263 : vector<1x32xf32> to vector<16x32xf32>
    %281 = arith.mulf %279, %280 : vector<16x32xf32>
    %c1_109 = arith.constant 1 : index
    %c0_110 = arith.constant 0 : index
    %c0_111 = arith.constant 0 : index
    %282 = vector.load %arg10[%c1_109, %c0_110, %c0_111] : memref<2x32x128xf32, #tpu.memory_space<vmem>>, vector<1x32x128xf32>
    %283 = vector.shape_cast %282 : vector<1x32x128xf32> to vector<32x128xf32>
    %cst_112 = arith.constant dense<0.000000e+00> : vector<16x128xf32>
    %284 = tpu.matmul %281, %283, %cst_112 {dimension_numbers = #tpu.dot_dimension_numbers<[1], [0], [0], [1], [0, 0, 1, 1], [], []>} : vector<16x32xf32>, vector<32x128xf32>, vector<16x128xf32> -> vector<16x128xf32>
    %cst_113 = arith.constant 5.000000e-01 : f32
    %285 = vector.broadcast %cst_113 : f32 to vector<16x128xf32>
    %286 = arith.mulf %285, %284 : vector<16x128xf32>
    %cst_114 = arith.constant 0.707106769 : f32
    %287 = vector.broadcast %cst_114 : f32 to vector<16x128xf32>
    %288 = arith.mulf %284, %287 : vector<16x128xf32>
    %cst_115 = arith.constant 0.000000e+00 : f32
    %289 = vector.broadcast %cst_115 : f32 to vector<16x128xf32>
    %290 = arith.cmpf oge, %288, %289 : vector<16x128xf32>
    %cst_116 = arith.constant 1.000000e+00 : f32
    %cst_117 = arith.constant -1.000000e+00 : f32
    %291 = vector.broadcast %cst_116 : f32 to vector<16x128xf32>
    %292 = vector.broadcast %cst_117 : f32 to vector<16x128xf32>
    %293 = arith.select %290, %291, %292 : vector<16x128xi1>, vector<16x128xf32>
    %294 = math.absf %288 : vector<16x128xf32>
    %cst_118 = arith.constant 0.327591091 : f32
    %295 = vector.broadcast %cst_118 : f32 to vector<16x128xf32>
    %296 = arith.mulf %295, %294 : vector<16x128xf32>
    %cst_119 = arith.constant 1.000000e+00 : f32
    %297 = vector.broadcast %cst_119 : f32 to vector<16x128xf32>
    %298 = arith.addf %297, %296 : vector<16x128xf32>
    %299 = tpu.reciprocal %298 {approx = true} : vector<16x128xf32> -> vector<16x128xf32>
    %cst_120 = arith.constant 1.06140542 : f32
    %300 = vector.broadcast %cst_120 : f32 to vector<16x128xf32>
    %301 = arith.mulf %300, %299 : vector<16x128xf32>
    %cst_121 = arith.constant -1.45315206 : f32
    %302 = vector.broadcast %cst_121 : f32 to vector<16x128xf32>
    %303 = arith.addf %301, %302 : vector<16x128xf32>
    %304 = arith.mulf %303, %299 : vector<16x128xf32>
    %cst_122 = arith.constant 1.42141378 : f32
    %305 = vector.broadcast %cst_122 : f32 to vector<16x128xf32>
    %306 = arith.addf %304, %305 : vector<16x128xf32>
    %307 = arith.mulf %306, %299 : vector<16x128xf32>
    %cst_123 = arith.constant -0.284496725 : f32
    %308 = vector.broadcast %cst_123 : f32 to vector<16x128xf32>
    %309 = arith.addf %307, %308 : vector<16x128xf32>
    %310 = arith.mulf %309, %299 : vector<16x128xf32>
    %cst_124 = arith.constant 0.254829586 : f32
    %311 = vector.broadcast %cst_124 : f32 to vector<16x128xf32>
    %312 = arith.addf %310, %311 : vector<16x128xf32>
    %313 = arith.mulf %312, %299 : vector<16x128xf32>
    %cst_125 = arith.constant 0.000000e+00 : f32
    %314 = vector.broadcast %cst_125 : f32 to vector<16x128xf32>
    %315 = arith.subf %314, %294 : vector<16x128xf32>
    %316 = arith.mulf %315, %294 : vector<16x128xf32>
    %317 = math.exp %316 : vector<16x128xf32>
    %318 = arith.mulf %313, %317 : vector<16x128xf32>
    %cst_126 = arith.constant 1.000000e+00 : f32
    %319 = vector.broadcast %cst_126 : f32 to vector<16x128xf32>
    %320 = arith.subf %319, %318 : vector<16x128xf32>
    %321 = arith.mulf %293, %320 : vector<16x128xf32>
    %cst_127 = arith.constant 1.000000e+00 : f32
    %322 = vector.broadcast %cst_127 : f32 to vector<16x128xf32>
    %323 = arith.addf %322, %321 : vector<16x128xf32>
    %324 = arith.mulf %286, %323 : vector<16x128xf32>
    %c1_128 = arith.constant 1 : index
    %c0_129 = arith.constant 0 : index
    %c0_130 = arith.constant 0 : index
    %325 = vector.load %arg11[%c1_128, %c0_129, %c0_130] : memref<2x128x32xf32, #tpu.memory_space<vmem>>, vector<1x128x32xf32>
    %326 = vector.shape_cast %325 : vector<1x128x32xf32> to vector<128x32xf32>
    %cst_131 = arith.constant dense<0.000000e+00> : vector<16x32xf32>
    %327 = tpu.matmul %324, %326, %cst_131 {dimension_numbers = #tpu.dot_dimension_numbers<[1], [0], [0], [1], [0, 0, 1, 1], [], []>} : vector<16x128xf32>, vector<128x32xf32>, vector<16x32xf32> -> vector<16x32xf32>
    %328 = arith.addf %261, %327 : vector<16x32xf32>
    %c0_132 = arith.constant 0 : index
    %c0_133 = arith.constant 0 : index
    %329 = vector.load %arg12[%c0_132, %c0_133] : memref<1x32xf32, #tpu.memory_space<vmem>>, vector<1x32xf32>
    %cst_134 = arith.constant dense<0.000000e+00> : vector<16xf32>
    %330 = vector.multi_reduction <add>, %328, %cst_134 [1] : vector<16x32xf32> to vector<16xf32>
    %331 = vector.shape_cast %330 : vector<16xf32> to vector<16x1xf32>
    %cst_135 = arith.constant 3.200000e+01 : f32
    %332 = vector.broadcast %cst_135 : f32 to vector<16x1xf32>
    %333 = arith.divf %331, %332 : vector<16x1xf32>
    %334 = vector.broadcast %333 : vector<16x1xf32> to vector<16x32xf32>
    %335 = arith.subf %328, %334 : vector<16x32xf32>
    %336 = arith.mulf %335, %335 : vector<16x32xf32>
    %cst_136 = arith.constant dense<0.000000e+00> : vector<16xf32>
    %337 = vector.multi_reduction <add>, %336, %cst_136 [1] : vector<16x32xf32> to vector<16xf32>
    %338 = vector.shape_cast %337 : vector<16xf32> to vector<16x1xf32>
    %cst_137 = arith.constant 3.200000e+01 : f32
    %339 = vector.broadcast %cst_137 : f32 to vector<16x1xf32>
    %340 = arith.divf %338, %339 : vector<16x1xf32>
    %cst_138 = arith.constant 9.99999974E-6 : f32
    %341 = vector.broadcast %cst_138 : f32 to vector<16x1xf32>
    %342 = arith.addf %340, %341 : vector<16x1xf32>
    %343 = math.rsqrt %342 : vector<16x1xf32>
    %344 = vector.broadcast %343 : vector<16x1xf32> to vector<16x32xf32>
    %345 = arith.mulf %335, %344 : vector<16x32xf32>
    %346 = vector.broadcast %329 : vector<1x32xf32> to vector<16x32xf32>
    %347 = arith.mulf %345, %346 : vector<16x32xf32>
    %c0_139 = arith.constant 0 : index
    %c0_140 = arith.constant 0 : index
    %348 = vector.load %arg3[%c0_139, %c0_140] : memref<32x64xf32, #tpu.memory_space<vmem>>, vector<32x64xf32>
    %cst_141 = arith.constant dense<0.000000e+00> : vector<16x64xf32>
    %349 = tpu.matmul %347, %348, %cst_141 {dimension_numbers = #tpu.dot_dimension_numbers<[1], [0], [0], [1], [0, 0, 1, 1], [], []>} : vector<16x32xf32>, vector<32x64xf32>, vector<16x64xf32> -> vector<16x64xf32>
    %350 = vector.extract_strided_slice %349 {offsets = [7, 0], sizes = [1, 64], strides = [1, 1]} : vector<16x64xf32> to vector<1x64xf32>
    %351 = vector.extract_strided_slice %349 {offsets = [15, 0], sizes = [1, 64], strides = [1, 1]} : vector<16x64xf32> to vector<1x64xf32>
    %352 = tpu.concatenate %350, %351 in 0 : vector<1x64xf32>, vector<1x64xf32> -> vector<2x64xf32>
    %c0_142 = arith.constant 0 : index
    %c0_143 = arith.constant 0 : index
    %353 = vector.load %arg13[%c0_142, %c0_143] : memref<2x64xf32, #tpu.memory_space<vmem>>, vector<2x64xf32>
    tpu.vector_store %arg13[%c0_142, %c0_143], %352 {strides = array<i32>} : memref<2x64xf32, #tpu.memory_space<vmem>>, vector<2x64xf32>,
    return
  }
  func.func @transform_0(%arg0: i32) -> (i32, i32) {
    %c0_i32 = arith.constant 0 : i32
    %c0_i32_0 = arith.constant 0 : i32
    %c0_i32_1 = arith.constant 0 : i32
    return %c0_i32, %c0_i32_0 : i32, i32
  }
  func.func @transform_1(%arg0: i32) -> (i32, i32) {
    %c0_i32 = arith.constant 0 : i32
    %c0_i32_0 = arith.constant 0 : i32
    %c0_i32_1 = arith.constant 0 : i32
    return %c0_i32, %c0_i32_0 : i32, i32
  }
  func.func @transform_2(%arg0: i32) -> (i32, i32) {
    %c0_i32 = arith.constant 0 : i32
    %c0_i32_0 = arith.constant 0 : i32
    %c0_i32_1 = arith.constant 0 : i32
    return %c0_i32, %c0_i32_0 : i32, i32
  }
  func.func @transform_3(%arg0: i32) -> (i32, i32) {
    %c0_i32 = arith.constant 0 : i32
    %c0_i32_0 = arith.constant 0 : i32
    %c0_i32_1 = arith.constant 0 : i32
    return %c0_i32, %c0_i32_0 : i32, i32
  }
  func.func @transform_4(%arg0: i32) -> (i32, i32) {
    %c0_i32 = arith.constant 0 : i32
    %c0_i32_0 = arith.constant 0 : i32
    %c0_i32_1 = arith.constant 0 : i32
    return %c0_i32, %c0_i32_0 : i32, i32
  }
  func.func @transform_5(%arg0: i32) -> (i32, i32, i32) {
    %c0_i32 = arith.constant 0 : i32
    %c0_i32_0 = arith.constant 0 : i32
    %c0_i32_1 = arith.constant 0 : i32
    %c0_i32_2 = arith.constant 0 : i32
    return %c0_i32, %c0_i32_0, %c0_i32_1 : i32, i32, i32
  }
  func.func @transform_6(%arg0: i32) -> (i32, i32, i32) {
    %c0_i32 = arith.constant 0 : i32
    %c0_i32_0 = arith.constant 0 : i32
    %c0_i32_1 = arith.constant 0 : i32
    %c0_i32_2 = arith.constant 0 : i32
    return %c0_i32, %c0_i32_0, %c0_i32_1 : i32, i32, i32
  }
  func.func @transform_7(%arg0: i32) -> (i32, i32, i32) {
    %c0_i32 = arith.constant 0 : i32
    %c0_i32_0 = arith.constant 0 : i32
    %c0_i32_1 = arith.constant 0 : i32
    %c0_i32_2 = arith.constant 0 : i32
    return %c0_i32, %c0_i32_0, %c0_i32_1 : i32, i32, i32
  }
  func.func @transform_8(%arg0: i32) -> (i32, i32, i32) {
    %c0_i32 = arith.constant 0 : i32
    %c0_i32_0 = arith.constant 0 : i32
    %c0_i32_1 = arith.constant 0 : i32
    %c0_i32_2 = arith.constant 0 : i32
    return %c0_i32, %c0_i32_0, %c0_i32_1 : i32, i32, i32
  }
  func.func @transform_9(%arg0: i32) -> (i32, i32, i32) {
    %c0_i32 = arith.constant 0 : i32
    %c0_i32_0 = arith.constant 0 : i32
    %c0_i32_1 = arith.constant 0 : i32
    %c0_i32_2 = arith.constant 0 : i32
    return %c0_i32, %c0_i32_0, %c0_i32_1 : i32, i32, i32
  }
  func.func @transform_10(%arg0: i32) -> (i32, i32, i32) {
    %c0_i32 = arith.constant 0 : i32
    %c0_i32_0 = arith.constant 0 : i32
    %c0_i32_1 = arith.constant 0 : i32
    %c0_i32_2 = arith.constant 0 : i32
    return %c0_i32, %c0_i32_0, %c0_i32_1 : i32, i32, i32
  }
  func.func @transform_11(%arg0: i32) -> (i32, i32) {
    %c0_i32 = arith.constant 0 : i32
    %c0_i32_0 = arith.constant 0 : i32
    %c0_i32_1 = arith.constant 0 : i32
    return %c0_i32, %c0_i32_0 : i32, i32
  }
  func.func @transform_12(%arg0: i32) -> (i32, i32) {
    %c0_i32 = arith.constant 0 : i32
    %c0_i32_0 = arith.constant 0 : i32
    %c0_i32_1 = arith.constant 0 : i32
    return %c0_i32, %c0_i32_0 : i32, i32
  }
}

</mosaic_0001>

<llo_original>
// kernel: gpt_forward.1
$region0: #{gpt_forward.1}
  #allocation0 [shape = 'u32[]', space=smem, size = 0x4, offset = 0x4, fixed_abs, tag = 'smem constant byte address 0x4 - core index']
  #allocation1 [shape = 'u32[144,128]{1,0:T(1,128)}', space=vmem, size = 0x12000, scoped, tag = 'internal scratch']
  %s0 = inlined_call_operand.vmem [shape: s32[16,1], index: 0, kind: input, shape index: {}]
  %s1 = inlined_call_operand.vmem [shape: f32[64,32], index: 1, kind: input, shape index: {}]
  %s2 = inlined_call_operand.vmem [shape: f32[32,64], index: 2, kind: input, shape index: {}]
  %s3 = inlined_call_operand.vmem [shape: f32[16,32], index: 3, kind: input, shape index: {}]
  %s4 = inlined_call_operand.vmem [shape: f32[16,16], index: 4, kind: input, shape index: {}]
  %s5 = inlined_call_operand.vmem [shape: f32[2,1,32], index: 5, kind: input, shape index: {}]
  %s6 = inlined_call_operand.vmem [shape: f32[2,32,128], index: 6, kind: input, shape index: {}]
  %s7 = inlined_call_operand.vmem [shape: f32[2,32,32], index: 7, kind: input, shape index: {}]
  %s8 = inlined_call_operand.vmem [shape: f32[2,1,32], index: 8, kind: input, shape index: {}]
  %s9 = inlined_call_operand.vmem [shape: f32[2,32,128], index: 9, kind: input, shape index: {}]
  %s10 = inlined_call_operand.vmem [shape: f32[2,128,32], index: 10, kind: input, shape index: {}]
  %s11 = inlined_call_operand.vmem [shape: f32[1,32], index: 11, kind: input, shape index: {}]
  %s12 = inlined_call_operand.hbm [shape: f32[2,64], index: 12, kind: output, shape index: {}]
  %s13 = sld [smem:[#allocation0]]
  $region58: #{gpt_forward.1} parent=0
    _
  %s15 = ssub.s32 1, %s13
  %s16 = scalar_select 0, %s15, %s13
  $region1: #{gpt_forward.1} parent=0
    #allocation2 [shape = 'u8[1024]{0}', space=vmem, size = 0x400, scoped, tag = 'output window, operand 0, single buffered']
    #allocation3 [shape = 's32[1]{0}', space=sflag, size = 0x4, scoped, tag = 'scoped memory for gpt_forward.1']
    %17 = vsyncpa [#allocation3], 0
    // Predicated region
    $region2: #{gpt_forward.1} parent=1 // pred_check
      _
    $region3: #{gpt_forward.1} parent=1 // pred_check_branch
      %19 = sbr.rel (0) target = $region5
    $region4: #{gpt_forward.1} parent=1 // pred_region
      _
    $region5: #{gpt_forward.1} parent=1 // pred_fallthru
      _
    // Predicated region
    $region6: #{gpt_forward.1} parent=1 // pred_check
      _
    $region7: #{gpt_forward.1} parent=1 // pred_check_branch
      %21 = sbr.rel (0) target = $region9
    $region8: #{gpt_forward.1} parent=1 // pred_region
      _
    $region9: #{gpt_forward.1} parent=1 // pred_fallthru
      _
    // Predicated region
    $region10: #{gpt_forward.1} parent=1 // pred_check
      _
    $region11: #{gpt_forward.1} parent=1 // pred_check_branch
      %23 = sbr.rel (0) target = $region13
    $region12: #{gpt_forward.1} parent=1 // pred_region
      _
    $region13: #{gpt_forward.1} parent=1 // pred_fallthru
      _
    // Predicated region
    $region14: #{gpt_forward.1} parent=1 // pred_check
      _
    $region15: #{gpt_forward.1} parent=1 // pred_check_branch
      %25 = sbr.rel (0) target = $region17
    $region16: #{gpt_forward.1} parent=1 // pred_region
      _
    $region17: #{gpt_forward.1} parent=1 // pred_fallthru
      _
    // Predicated region
    $region18: #{gpt_forward.1} parent=1 // pred_check
      _
    $region19: #{gpt_forward.1} parent=1 // pred_check_branch
      %27 = sbr.rel (0) target = $region21
    $region20: #{gpt_forward.1} parent=1 // pred_region
      _
    $region21: #{gpt_forward.1} parent=1 // pred_fallthru
      _
    // Predicated region
    $region22: #{gpt_forward.1} parent=1 // pred_check
      _
    $region23: #{gpt_forward.1} parent=1 // pred_check_branch
      %29 = sbr.rel (0) target = $region25
    $region24: #{gpt_forward.1} parent=1 // pred_region
      _
    $region25: #{gpt_forward.1} parent=1 // pred_fallthru
      _
    // Predicated region
    $region26: #{gpt_forward.1} parent=1 // pred_check
      _
    $region27: #{gpt_forward.1} parent=1 // pred_check_branch
      %31 = sbr.rel (0) target = $region29
    $region28: #{gpt_forward.1} parent=1 // pred_region
      _
    $region29: #{gpt_forward.1} parent=1 // pred_fallthru
      _
    // Predicated region
    $region30: #{gpt_forward.1} parent=1 // pred_check
      _
    $region31: #{gpt_forward.1} parent=1 // pred_check_branch
      %33 = sbr.rel (0) target = $region33
    $region32: #{gpt_forward.1} parent=1 // pred_region
      _
    $region33: #{gpt_forward.1} parent=1 // pred_fallthru
      _
    // Predicated region
    $region34: #{gpt_forward.1} parent=1 // pred_check
      _
    $region35: #{gpt_forward.1} parent=1 // pred_check_branch
      %35 = sbr.rel (0) target = $region37
    $region36: #{gpt_forward.1} parent=1 // pred_region
      _
    $region37: #{gpt_forward.1} parent=1 // pred_fallthru
      _
    // Predicated region
    $region38: #{gpt_forward.1} parent=1 // pred_check
      _
    $region39: #{gpt_forward.1} parent=1 // pred_check_branch
      %37 = sbr.rel (0) target = $region41
    $region40: #{gpt_forward.1} parent=1 // pred_region
      _
    $region41: #{gpt_forward.1} parent=1 // pred_fallthru
      _
    // Predicated region
    $region42: #{gpt_forward.1} parent=1 // pred_check
      _
    $region43: #{gpt_forward.1} parent=1 // pred_check_branch
      %39 = sbr.rel (0) target = $region45
    $region44: #{gpt_forward.1} parent=1 // pred_region
      _
    $region45: #{gpt_forward.1} parent=1 // pred_fallthru
      _
    // Predicated region
    $region46: #{gpt_forward.1} parent=1 // pred_check
      _
    $region47: #{gpt_forward.1} parent=1 // pred_check_branch
      %41 = sbr.rel (0) target = $region49
    $region48: #{gpt_forward.1} parent=1 // pred_region
      _
    $region49: #{gpt_forward.1} parent=1 // pred_fallthru
      _
    %v42 = vld [vmem:[%s0] sm:$0xff]
    %v43 = vld [vmem:[%s0 + $0x8] sm:$0xff]
    %v44 = vld [vmem:[%s1] sm:$0xff]
    %v45 = vld [vmem:[%s1 + $0x8] sm:$0xff]
    %v46 = vld [vmem:[%s1 + $0x10] sm:$0xff]
    %v47 = vld [vmem:[%s1 + $0x18] sm:$0xff]
    %v48 = vld [vmem:[%s1 + $0x20] sm:$0xff]
    %v49 = vld [vmem:[%s1 + $0x28] sm:$0xff]
    %v50 = vld [vmem:[%s1 + $0x30] sm:$0xff]
    %v51 = vld [vmem:[%s1 + $0x38] sm:$0xff]
    %v52 = vlaneseq
    %v53 = vand.u32 %v52, 127
    %54 = vset.pattern.permute.xlu0 0
    %55 = vperm.xlu0 %54, %v42
    %v56 = vpop.permute.xlu0 %55
    %57 = vset.pattern.permute.xlu0 0
    %58 = vperm.xlu0 %57, %v43
    %v59 = vpop.permute.xlu0 %58
    %vm60 = vcmp.eq.s32.totalorder %v53, %v56
    %vm61 = vcmp.eq.s32.totalorder %v53, %v59
    %v62 = vsel %vm60, 1, 0
    %v63 = vsel %vm61, 1, 0
    %v64 = vcvt.s32.f32 %v62
    %v65 = vcvt.s32.f32 %v63
    %v66 = vld [vmem:[%s3] sm:$0xff]
    %v67 = vld [vmem:[%s3 + $0x8] sm:$0xff]
    %vm68 = vcmask 523264
    %v70 = vsel %vm68, %v64, 0
    %v73 = vsel %vm68, %v65, 0
    %75 = vmatprep.subr.mxu0 0.0
    %76 = vmatpush1.msra.mxu0 %v44
    %77 = vmatprep.subr.mxu0 0.0
    %78 = vmatpush1.msra.mxu0 %v45
    %79 = vmatprep.subr.mxu0 0.0
    %80 = vmatpush1.msra.mxu0 %v46
    %81 = vmatprep.subr.mxu0 0.0
    %82 = vmatpush1.msra.mxu0 %v47
    %83 = vmatprep.subr.mxu0 0.0
    %84 = vmatpush1.msra.mxu0 %v48
    %85 = vmatprep.subr.mxu0 0.0
    %86 = vmatpush1.msra.mxu0 %v49
    %87 = vmatprep.subr.mxu0 0.0
    %88 = vmatpush1.msra.mxu0 %v50
    %89 = vmatprep.subr.mxu0 0.0
    %90 = vmatpush1.msra.mxu0 %v51
    %91 = vmatprep.subr.mxu0 0.0
    %92 = vmatpush1.msra.mxu0 0.0
    %93 = vmatprep.subr.mxu0 0.0
    %94 = vmatpush1.msra.mxu0 0.0
    %95 = vmatprep.subr.mxu0 0.0
    %96 = vmatpush1.msra.mxu0 0.0
    %97 = vmatprep.subr.mxu0 0.0
    %98 = vmatpush1.msra.mxu0 0.0
    %99 = vmatprep.subr.mxu0 0.0
    %100 = vmatpush1.msra.mxu0 0.0
    %101 = vmatprep.subr.mxu0 0.0
    %102 = vmatpush1.msra.mxu0 0.0
    %103 = vmatprep.subr.mxu0 0.0
    %104 = vmatpush1.msra.mxu0 0.0
    %105 = vmatprep.subr.mxu0 0.0
    %106 = vmatpush1.msra.mxu0 0.0
    %107 = vmatprep.subr.mxu0 0.0
    %108 = vmatpush1.msra.mxu0 0.0
    %109 = vmatprep.subr.mxu0 0.0
    %110 = vmatpush1.msra.mxu0 0.0
    %111 = vmatprep.subr.mxu0 0.0
    %112 = vmatpush1.msra.mxu0 0.0
    %113 = vmatprep.subr.mxu0 0.0
    %114 = vmatpush1.msra.mxu0 0.0
    %115 = vmatprep.subr.mxu0 0.0
    %116 = vmatpush1.msra.mxu0 0.0
    %117 = vmatprep.subr.mxu0 0.0
    %118 = vmatpush1.msra.mxu0 0.0
    %119 = vmatprep.subr.mxu0 0.0
    %120 = vmatpush1.msra.mxu0 0.0
    %121 = vmatprep.subr.mxu0 0.0
    %122 = vmatpush1.msra.mxu0 0.0
    %123 = vmatprep.subr.mxu0 0.0
    %124 = vmatpush1.msra.mxu0 0.0
    %125 = vmatprep.subr.mxu0 0.0
    %126 = vmatpush1.msra.mxu0 0.0
    %127 = vmatprep.subr.mxu0 0.0
    %128 = vmatpush1.msra.mxu0 0.0
    %129 = vmatprep.subr.mxu0 0.0
    %130 = vmatpush1.msra.mxu0 0.0
    %131 = vmatprep.subr.mxu0 0.0
    %132 = vmatpush1.msra.mxu0 0.0
    %133 = vmatprep.subr.mxu0 0.0
    %134 = vmatpush1.msra.mxu0 0.0
    %135 = vmatprep.subr.mxu0 0.0
    %136 = vmatpush1.msra.mxu0 0.0
    %137 = vmatprep.subr.mxu0 0.0
    %138 = vmatpush1.msra.mxu0 0.0
    %139 = vmatprep.mubr.f32.mxu0 0.0
    %140 = vmatmul.mubr.f32.gmra.mrb[0].mxu0 %v70
    %v141 = vpop.f32.mrb[0].mxu0
    %v142 = vadd.f32 %v66, %v141
    %v143 = vpop.f32.mrb[0].mxu0
    %144 = vmatprep.mubr.f32.mxu0 0.0
    %145 = vmatmul.mubr.f32.gmra.mrb[0].mxu0 %v73
    %v146 = vpop.f32.mrb[0].mxu0
    %v147 = vadd.f32 %v67, %v146
    %v148 = vpop.f32.mrb[0].mxu0
    %149 = vdwg.mxu0
    %v150 = vld [vmem:[%s4] sm:$0xff]
    %v151 = vld [vmem:[%s4 + $0x8] sm:$0xff]
    %v152 = vld [vmem:[%s5] sm:$0x1]
    %vm153 = vcmask 261120
    %v154 = vsel %vm153, %v142, 0.0
    %155 = vadd.xlane.f32.xlu0 %v154
    %v156 = vpop.xlane.xlu0 %155
    %v157 = vsel %vm153, %v147, 0.0
    %158 = vadd.xlane.f32.xlu0 %v157
    %v159 = vpop.xlane.xlu0 %158
    %v160 = vrcp.pop 32.0
    %v161 = vmul.f32 %v156, %v160
    %v162 = vmul.f32 %v159, %v160
    %v163 = vsub.f32 %v142, %v161
    %v164 = vsub.f32 %v147, %v162
    %v165 = vmul.f32 %v163, %v163
    %v166 = vmul.f32 %v164, %v164
    %v167 = vsel %vm153, %v165, 0.0
    %168 = vadd.xlane.f32.xlu0 %v167
    %v169 = vpop.xlane.xlu0 %168
    %v170 = vsel %vm153, %v166, 0.0
    %171 = vadd.xlane.f32.xlu0 %v170
    %v172 = vpop.xlane.xlu0 %171
    %v173 = vmul.f32 %v169, %v160
    %v174 = vmul.f32 %v172, %v160
    %v175 = vadd.f32 %v173, 1e-05
    %v176 = vadd.f32 %v174, 1e-05
    %v177 = vrsqrt.pop %v175
    %v178 = vrsqrt.pop %v176
    %v179 = vmul.f32 %v163, %v177
    %v180 = vmul.f32 %v164, %v178
    %v182 = vlaneseq
    %v183 = vshrl.u32 %v182, 7
    %v184 = vsub.s32 0, %v183
    %v185 = vrot.slane %v152, %v184
    %v187 = vmul.f32 %v179, %v185
    %v188 = vmul.f32 %v180, %v185
    %v189 = vld [vmem:[%s6] sm:$0xff]
    %v190 = vld [vmem:[%s6 + $0x8] sm:$0xff]
    %v191 = vld [vmem:[%s6 + $0x10] sm:$0xff]
    %v192 = vld [vmem:[%s6 + $0x18] sm:$0xff]
    %v194 = vsel %vm153, %v187, 0
    %v197 = vsel %vm153, %v188, 0
    %199 = vmatprep.subr.mxu0 0.0
    %200 = vmatpush1.msra.mxu0 %v189
    %201 = vmatprep.subr.mxu0 0.0
    %202 = vmatpush1.msra.mxu0 %v190
    %203 = vmatprep.subr.mxu0 0.0
    %204 = vmatpush1.msra.mxu0 %v191
    %205 = vmatprep.subr.mxu0 0.0
    %206 = vmatpush1.msra.mxu0 %v192
    %207 = vmatprep.subr.mxu0 0.0
    %208 = vmatpush1.msra.mxu0 0.0
    %209 = vmatprep.subr.mxu0 0.0
    %210 = vmatpush1.msra.mxu0 0.0
    %211 = vmatprep.subr.mxu0 0.0
    %212 = vmatpush1.msra.mxu0 0.0
    %213 = vmatprep.subr.mxu0 0.0
    %214 = vmatpush1.msra.mxu0 0.0
    %215 = vmatprep.subr.mxu0 0.0
    %216 = vmatpush1.msra.mxu0 0.0
    %217 = vmatprep.subr.mxu0 0.0
    %218 = vmatpush1.msra.mxu0 0.0
    %219 = vmatprep.subr.mxu0 0.0
    %220 = vmatpush1.msra.mxu0 0.0
    %221 = vmatprep.subr.mxu0 0.0
    %222 = vmatpush1.msra.mxu0 0.0
    %223 = vmatprep.subr.mxu0 0.0
    %224 = vmatpush1.msra.mxu0 0.0
    %225 = vmatprep.subr.mxu0 0.0
    %226 = vmatpush1.msra.mxu0 0.0
    %227 = vmatprep.subr.mxu0 0.0
    %228 = vmatpush1.msra.mxu0 0.0
    %229 = vmatprep.subr.mxu0 0.0
    %230 = vmatpush1.msra.mxu0 0.0
    %231 = vmatprep.subr.mxu0 0.0
    %232 = vmatpush1.msra.mxu0 0.0
    %233 = vmatprep.subr.mxu0 0.0
    %234 = vmatpush1.msra.mxu0 0.0
    %235 = vmatprep.subr.mxu0 0.0
    %236 = vmatpush1.msra.mxu0 0.0
    %237 = vmatprep.subr.mxu0 0.0
    %238 = vmatpush1.msra.mxu0 0.0
    %239 = vmatprep.subr.mxu0 0.0
    %240 = vmatpush1.msra.mxu0 0.0
    %241 = vmatprep.subr.mxu0 0.0
    %242 = vmatpush1.msra.mxu0 0.0
    %243 = vmatprep.subr.mxu0 0.0
    %244 = vmatpush1.msra.mxu0 0.0
    %245 = vmatprep.subr.mxu0 0.0
    %246 = vmatpush1.msra.mxu0 0.0
    %247 = vmatprep.subr.mxu0 0.0
    %248 = vmatpush1.msra.mxu0 0.0
    %249 = vmatprep.subr.mxu0 0.0
    %250 = vmatpush1.msra.mxu0 0.0
    %251 = vmatprep.subr.mxu0 0.0
    %252 = vmatpush1.msra.mxu0 0.0
    %253 = vmatprep.subr.mxu0 0.0
    %254 = vmatpush1.msra.mxu0 0.0
    %255 = vmatprep.subr.mxu0 0.0
    %256 = vmatpush1.msra.mxu0 0.0
    %257 = vmatprep.subr.mxu0 0.0
    %258 = vmatpush1.msra.mxu0 0.0
    %259 = vmatprep.subr.mxu0 0.0
    %260 = vmatpush1.msra.mxu0 0.0
    %261 = vmatprep.subr.mxu0 0.0
    %262 = vmatpush1.msra.mxu0 0.0
    %263 = vmatprep.mubr.f32.mxu0 0.0
    %264 = vmatmul.mubr.f32.gmra.mrb[0].mxu0 %v194
    %v265 = vpop.f32.mrb[0].mxu0
    %v266 = vadd.f32 0.0, %v265
    %v267 = vpop.f32.mrb[0].mxu0
    %268 = vmatprep.mubr.f32.mxu0 0.0
    %269 = vmatmul.mubr.f32.gmra.mrb[0].mxu0 %v197
    %v270 = vpop.f32.mrb[0].mxu0
    %v271 = vadd.f32 0.0, %v270
    %v272 = vpop.f32.mrb[0].mxu0
    %273 = vdwg.mxu0
    %276 = vrot.lane.b32.xlu0 %v266, 96
    %v277 = vpop.permute.xlu0 %276
    %278 = vrot.lane.b32.xlu0 %v271, 96
    %v279 = vpop.permute.xlu0 %278
    %vm280 = vcmask 64512
    %v281 = vsel %vm280, %v266, 0
    %v283 = vsel %vm280, %v271, 0
    %v285 = vsel %vm280, %v277, 0
    %v287 = vsel %vm280, %v279, 0
    %289 = vmatprep.subr.mxu0 0.0
    %290 = vmatpush1.xpose.msra.mxu0 %v285
    %291 = vmatprep.subr.mxu0 0.0
    %292 = vmatpush1.xpose.msra.mxu0 %v287
    %293 = vmatprep.subr.mxu0 0.0
    %294 = vmatpush1.xpose.msra.mxu0 0.0
    %295 = vmatprep.subr.mxu0 0.0
    %296 = vmatpush1.xpose.msra.mxu0 0.0
    %297 = vmatprep.subr.mxu0 0.0
    %298 = vmatpush1.xpose.msra.mxu0 0.0
    %299 = vmatprep.subr.mxu0 0.0
    %300 = vmatpush1.xpose.msra.mxu0 0.0
    %301 = vmatprep.subr.mxu0 0.0
    %302 = vmatpush1.xpose.msra.mxu0 0.0
    %303 = vmatprep.subr.mxu0 0.0
    %304 = vmatpush1.xpose.msra.mxu0 0.0
    %305 = vmatprep.subr.mxu0 0.0
    %306 = vmatpush1.xpose.msra.mxu0 0.0
    %307 = vmatprep.subr.mxu0 0.0
    %308 = vmatpush1.xpose.msra.mxu0 0.0
    %309 = vmatprep.subr.mxu0 0.0
    %310 = vmatpush1.xpose.msra.mxu0 0.0
    %311 = vmatprep.subr.mxu0 0.0
    %312 = vmatpush1.xpose.msra.mxu0 0.0
    %313 = vmatprep.subr.mxu0 0.0
    %314 = vmatpush1.xpose.msra.mxu0 0.0
    %315 = vmatprep.subr.mxu0 0.0
    %316 = vmatpush1.xpose.msra.mxu0 0.0
    %317 = vmatprep.subr.mxu0 0.0
    %318 = vmatpush1.xpose.msra.mxu0 0.0
    %319 = vmatprep.subr.mxu0 0.0
    %320 = vmatpush1.xpose.msra.mxu0 0.0
    %321 = vmatprep.subr.mxu0 0.0
    %322 = vmatpush1.xpose.msra.mxu0 0.0
    %323 = vmatprep.subr.mxu0 0.0
    %324 = vmatpush1.xpose.msra.mxu0 0.0
    %325 = vmatprep.subr.mxu0 0.0
    %326 = vmatpush1.xpose.msra.mxu0 0.0
    %327 = vmatprep.subr.mxu0 0.0
    %328 = vmatpush1.xpose.msra.mxu0 0.0
    %329 = vmatprep.subr.mxu0 0.0
    %330 = vmatpush1.xpose.msra.mxu0 0.0
    %331 = vmatprep.subr.mxu0 0.0
    %332 = vmatpush1.xpose.msra.mxu0 0.0
    %333 = vmatprep.subr.mxu0 0.0
    %334 = vmatpush1.xpose.msra.mxu0 0.0
    %335 = vmatprep.subr.mxu0 0.0
    %336 = vmatpush1.xpose.msra.mxu0 0.0
    %337 = vmatprep.subr.mxu0 0.0
    %338 = vmatpush1.xpose.msra.mxu0 0.0
    %339 = vmatprep.subr.mxu0 0.0
    %340 = vmatpush1.xpose.msra.mxu0 0.0
    %341 = vmatprep.subr.mxu0 0.0
    %342 = vmatpush1.xpose.msra.mxu0 0.0
    %343 = vmatprep.subr.mxu0 0.0
    %344 = vmatpush1.xpose.msra.mxu0 0.0
    %345 = vmatprep.subr.mxu0 0.0
    %346 = vmatpush1.xpose.msra.mxu0 0.0
    %347 = vmatprep.subr.mxu0 0.0
    %348 = vmatpush1.xpose.msra.mxu0 0.0
    %349 = vmatprep.subr.mxu0 0.0
    %350 = vmatpush1.xpose.msra.mxu0 0.0
    %351 = vmatprep.subr.mxu0 0.0
    %352 = vmatpush1.xpose.msra.mxu0 0.0
    %353 = vmatprep.mubr.f32.mxu0 0.0
    %354 = vmatmul.mubr.f32.gmra.mrb[0].mxu0 %v281
    %v355 = vpop.f32.mrb[0].mxu0
    %v356 = vadd.f32 %v150, %v355
    %v357 = vpop.f32.mrb[0].mxu0
    %358 = vmatprep.mubr.f32.mxu0 0.0
    %359 = vmatmul.mubr.f32.gmra.mrb[0].mxu0 %v283
    %v360 = vpop.f32.mrb[0].mxu0
    %v361 = vadd.f32 %v151, %v360
    %v362 = vpop.f32.mrb[0].mxu0
    %363 = vdwg.mxu0
    %vm364 = vcmask 130048
    %v365 = vsel %vm364, %v356, -inf
    %366 = vmax.xlane.f32.xlu0 %v365
    %v367 = vpop.xlane.xlu0 %366
    %v368 = vsel %vm364, %v361, -inf
    %369 = vmax.xlane.f32.xlu0 %v368
    %v370 = vpop.xlane.xlu0 %369
    %v371 = vsub.f32 %v356, %v367
    %v372 = vsub.f32 %v361, %v370
    %v373 = vmul.f32 %v371, 1.442695
    %v374 = vpow.pop %v373
    %v375 = vmul.f32 %v372, 1.442695
    %v376 = vpow.pop %v375
    %v377 = vsel %vm364, %v374, 0.0
    %378 = vadd.xlane.f32.xlu0 %v377
    %v379 = vpop.xlane.xlu0 %378
    %v380 = vsel %vm364, %v376, 0.0
    %381 = vadd.xlane.f32.xlu0 %v380
    %v382 = vpop.xlane.xlu0 %381
    %v383 = vrcp.pop %v379
    %v384 = vrcp.pop %v382
    %v385 = vmul.f32 %v374, %v383
    %v386 = vmul.f32 %v376, %v384
    %387 = vrot.lane.b32.xlu0 %v266, 64
    %v388 = vpop.permute.xlu0 %387
    %389 = vrot.lane.b32.xlu0 %v271, 64
    %v390 = vpop.permute.xlu0 %389
    %v394 = vsel %vm364, %v385, 0
    %v397 = vsel %vm364, %v386, 0
    %399 = vmatprep.subr.mxu0 0.0
    %400 = vmatpush1.msra.mxu0 %v388
    %401 = vmatprep.subr.mxu0 0.0
    %402 = vmatpush1.msra.mxu0 %v390
    %403 = vmatprep.subr.mxu0 0.0
    %404 = vmatpush1.msra.mxu0 0.0
    %405 = vmatprep.subr.mxu0 0.0
    %406 = vmatpush1.msra.mxu0 0.0
    %407 = vmatprep.subr.mxu0 0.0
    %408 = vmatpush1.msra.mxu0 0.0
    %409 = vmatprep.subr.mxu0 0.0
    %410 = vmatpush1.msra.mxu0 0.0
    %411 = vmatprep.subr.mxu0 0.0
    %412 = vmatpush1.msra.mxu0 0.0
    %413 = vmatprep.subr.mxu0 0.0
    %414 = vmatpush1.msra.mxu0 0.0
    %415 = vmatprep.subr.mxu0 0.0
    %416 = vmatpush1.msra.mxu0 0.0
    %417 = vmatprep.subr.mxu0 0.0
    %418 = vmatpush1.msra.mxu0 0.0
    %419 = vmatprep.subr.mxu0 0.0
    %420 = vmatpush1.msra.mxu0 0.0
    %421 = vmatprep.subr.mxu0 0.0
    %422 = vmatpush1.msra.mxu0 0.0
    %423 = vmatprep.subr.mxu0 0.0
    %424 = vmatpush1.msra.mxu0 0.0
    %425 = vmatprep.subr.mxu0 0.0
    %426 = vmatpush1.msra.mxu0 0.0
    %427 = vmatprep.subr.mxu0 0.0
    %428 = vmatpush1.msra.mxu0 0.0
    %429 = vmatprep.subr.mxu0 0.0
    %430 = vmatpush1.msra.mxu0 0.0
    %431 = vmatprep.subr.mxu0 0.0
    %432 = vmatpush1.msra.mxu0 0.0
    %433 = vmatprep.subr.mxu0 0.0
    %434 = vmatpush1.msra.mxu0 0.0
    %435 = vmatprep.subr.mxu0 0.0
    %436 = vmatpush1.msra.mxu0 0.0
    %437 = vmatprep.subr.mxu0 0.0
    %438 = vmatpush1.msra.mxu0 0.0
    %439 = vmatprep.subr.mxu0 0.0
    %440 = vmatpush1.msra.mxu0 0.0
    %441 = vmatprep.subr.mxu0 0.0
    %442 = vmatpush1.msra.mxu0 0.0
    %443 = vmatprep.subr.mxu0 0.0
    %444 = vmatpush1.msra.mxu0 0.0
    %445 = vmatprep.subr.mxu0 0.0
    %446 = vmatpush1.msra.mxu0 0.0
    %447 = vmatprep.subr.mxu0 0.0
    %448 = vmatpush1.msra.mxu0 0.0
    %449 = vmatprep.subr.mxu0 0.0
    %450 = vmatpush1.msra.mxu0 0.0
    %451 = vmatprep.subr.mxu0 0.0
    %452 = vmatpush1.msra.mxu0 0.0
    %453 = vmatprep.subr.mxu0 0.0
    %454 = vmatpush1.msra.mxu0 0.0
    %455 = vmatprep.subr.mxu0 0.0
    %456 = vmatpush1.msra.mxu0 0.0
    %457 = vmatprep.subr.mxu0 0.0
    %458 = vmatpush1.msra.mxu0 0.0
    %459 = vmatprep.subr.mxu0 0.0
    %460 = vmatpush1.msra.mxu0 0.0
    %461 = vmatprep.subr.mxu0 0.0
    %462 = vmatpush1.msra.mxu0 0.0
    %463 = vmatprep.mubr.f32.mxu0 0.0
    %464 = vmatmul.mubr.f32.gmra.mrb[0].mxu0 %v394
    %v465 = vpop.f32.mrb[0].mxu0
    %v466 = vadd.f32 0.0, %v465
    %v467 = vpop.f32.mrb[0].mxu0
    %468 = vmatprep.mubr.f32.mxu0 0.0
    %469 = vmatmul.mubr.f32.gmra.mrb[0].mxu0 %v397
    %v470 = vpop.f32.mrb[0].mxu0
    %v471 = vadd.f32 0.0, %v470
    %v472 = vpop.f32.mrb[0].mxu0
    %473 = vdwg.mxu0
    %474 = vrot.lane.b32.xlu0 %v266, 120
    %v475 = vpop.permute.xlu0 %474
    %476 = vrot.lane.b32.xlu0 %v271, 120
    %v477 = vpop.permute.xlu0 %476
    %478 = vrot.lane.b32.xlu0 %v266, 88
    %v479 = vpop.permute.xlu0 %478
    %480 = vrot.lane.b32.xlu0 %v271, 88
    %v481 = vpop.permute.xlu0 %480
    %v482 = vsel %vm280, %v475, 0
    %v484 = vsel %vm280, %v477, 0
    %v486 = vsel %vm280, %v479, 0
    %v488 = vsel %vm280, %v481, 0
    %490 = vmatprep.subr.mxu0 0.0
    %491 = vmatpush1.xpose.msra.mxu0 %v486
    %492 = vmatprep.subr.mxu0 0.0
    %493 = vmatpush1.xpose.msra.mxu0 %v488
    %494 = vmatprep.subr.mxu0 0.0
    %495 = vmatpush1.xpose.msra.mxu0 0.0
    %496 = vmatprep.subr.mxu0 0.0
    %497 = vmatpush1.xpose.msra.mxu0 0.0
    %498 = vmatprep.subr.mxu0 0.0
    %499 = vmatpush1.xpose.msra.mxu0 0.0
    %500 = vmatprep.subr.mxu0 0.0
    %501 = vmatpush1.xpose.msra.mxu0 0.0
    %502 = vmatprep.subr.mxu0 0.0
    %503 = vmatpush1.xpose.msra.mxu0 0.0
    %504 = vmatprep.subr.mxu0 0.0
    %505 = vmatpush1.xpose.msra.mxu0 0.0
    %506 = vmatprep.subr.mxu0 0.0
    %507 = vmatpush1.xpose.msra.mxu0 0.0
    %508 = vmatprep.subr.mxu0 0.0
    %509 = vmatpush1.xpose.msra.mxu0 0.0
    %510 = vmatprep.subr.mxu0 0.0
    %511 = vmatpush1.xpose.msra.mxu0 0.0
    %512 = vmatprep.subr.mxu0 0.0
    %513 = vmatpush1.xpose.msra.mxu0 0.0
    %514 = vmatprep.subr.mxu0 0.0
    %515 = vmatpush1.xpose.msra.mxu0 0.0
    %516 = vmatprep.subr.mxu0 0.0
    %517 = vmatpush1.xpose.msra.mxu0 0.0
    %518 = vmatprep.subr.mxu0 0.0
    %519 = vmatpush1.xpose.msra.mxu0 0.0
    %520 = vmatprep.subr.mxu0 0.0
    %521 = vmatpush1.xpose.msra.mxu0 0.0
    %522 = vmatprep.subr.mxu0 0.0
    %523 = vmatpush1.xpose.msra.mxu0 0.0
    %524 = vmatprep.subr.mxu0 0.0
    %525 = vmatpush1.xpose.msra.mxu0 0.0
    %526 = vmatprep.subr.mxu0 0.0
    %527 = vmatpush1.xpose.msra.mxu0 0.0
    %528 = vmatprep.subr.mxu0 0.0
    %529 = vmatpush1.xpose.msra.mxu0 0.0
    %530 = vmatprep.subr.mxu0 0.0
    %531 = vmatpush1.xpose.msra.mxu0 0.0
    %532 = vmatprep.subr.mxu0 0.0
    %533 = vmatpush1.xpose.msra.mxu0 0.0
    %534 = vmatprep.subr.mxu0 0.0
    %535 = vmatpush1.xpose.msra.mxu0 0.0
    %536 = vmatprep.subr.mxu0 0.0
    %537 = vmatpush1.xpose.msra.mxu0 0.0
    %538 = vmatprep.subr.mxu0 0.0
    %539 = vmatpush1.xpose.msra.mxu0 0.0
    %540 = vmatprep.subr.mxu0 0.0
    %541 = vmatpush1.xpose.msra.mxu0 0.0
    %542 = vmatprep.subr.mxu0 0.0
    %543 = vmatpush1.xpose.msra.mxu0 0.0
    %544 = vmatprep.subr.mxu0 0.0
    %545 = vmatpush1.xpose.msra.mxu0 0.0
    %546 = vmatprep.subr.mxu0 0.0
    %547 = vmatpush1.xpose.msra.mxu0 0.0
    %548 = vmatprep.subr.mxu0 0.0
    %549 = vmatpush1.xpose.msra.mxu0 0.0
    %550 = vmatprep.subr.mxu0 0.0
    %551 = vmatpush1.xpose.msra.mxu0 0.0
    %552 = vmatprep.subr.mxu0 0.0
    %553 = vmatpush1.xpose.msra.mxu0 0.0
    %554 = vmatprep.mubr.f32.mxu0 0.0
    %555 = vmatmul.mubr.f32.gmra.mrb[0].mxu0 %v482
    %v556 = vpop.f32.mrb[0].mxu0
    %v557 = vadd.f32 %v150, %v556
    %v558 = vpop.f32.mrb[0].mxu0
    %559 = vmatprep.mubr.f32.mxu0 0.0
    %560 = vmatmul.mubr.f32.gmra.mrb[0].mxu0 %v484
    %v561 = vpop.f32.mrb[0].mxu0
    %v562 = vadd.f32 %v151, %v561
    %v563 = vpop.f32.mrb[0].mxu0
    %564 = vdwg.mxu0
    %v565 = vsel %vm364, %v557, -inf
    %566 = vmax.xlane.f32.xlu0 %v565
    %v567 = vpop.xlane.xlu0 %566
    %v568 = vsel %vm364, %v562, -inf
    %569 = vmax.xlane.f32.xlu0 %v568
    %v570 = vpop.xlane.xlu0 %569
    %v571 = vsub.f32 %v557, %v567
    %v572 = vsub.f32 %v562, %v570
    %v573 = vmul.f32 %v571, 1.442695
    %v574 = vpow.pop %v573
    %v575 = vmul.f32 %v572, 1.442695
    %v576 = vpow.pop %v575
    %v577 = vsel %vm364, %v574, 0.0
    %578 = vadd.xlane.f32.xlu0 %v577
    %v579 = vpop.xlane.xlu0 %578
    %v580 = vsel %vm364, %v576, 0.0
    %581 = vadd.xlane.f32.xlu0 %v580
    %v582 = vpop.xlane.xlu0 %581
    %v583 = vrcp.pop %v579
    %v584 = vrcp.pop %v582
    %v585 = vmul.f32 %v574, %v583
    %v586 = vmul.f32 %v576, %v584
    %587 = vrot.lane.b32.xlu0 %v266, 56
    %v588 = vpop.permute.xlu0 %587
    %589 = vrot.lane.b32.xlu0 %v271, 56
    %v590 = vpop.permute.xlu0 %589
    %v594 = vsel %vm364, %v585, 0
    %v597 = vsel %vm364, %v586, 0
    %599 = vmatprep.subr.mxu0 0.0
    %600 = vmatpush1.msra.mxu0 %v588
    %601 = vmatprep.subr.mxu0 0.0
    %602 = vmatpush1.msra.mxu0 %v590
    %603 = vmatprep.subr.mxu0 0.0
    %604 = vmatpush1.msra.mxu0 0.0
    %605 = vmatprep.subr.mxu0 0.0
    %606 = vmatpush1.msra.mxu0 0.0
    %607 = vmatprep.subr.mxu0 0.0
    %608 = vmatpush1.msra.mxu0 0.0
    %609 = vmatprep.subr.mxu0 0.0
    %610 = vmatpush1.msra.mxu0 0.0
    %611 = vmatprep.subr.mxu0 0.0
    %612 = vmatpush1.msra.mxu0 0.0
    %613 = vmatprep.subr.mxu0 0.0
    %614 = vmatpush1.msra.mxu0 0.0
    %615 = vmatprep.subr.mxu0 0.0
    %616 = vmatpush1.msra.mxu0 0.0
    %617 = vmatprep.subr.mxu0 0.0
    %618 = vmatpush1.msra.mxu0 0.0
    %619 = vmatprep.subr.mxu0 0.0
    %620 = vmatpush1.msra.mxu0 0.0
    %621 = vmatprep.subr.mxu0 0.0
    %622 = vmatpush1.msra.mxu0 0.0
    %623 = vmatprep.subr.mxu0 0.0
    %624 = vmatpush1.msra.mxu0 0.0
    %625 = vmatprep.subr.mxu0 0.0
    %626 = vmatpush1.msra.mxu0 0.0
    %627 = vmatprep.subr.mxu0 0.0
    %628 = vmatpush1.msra.mxu0 0.0
    %629 = vmatprep.subr.mxu0 0.0
    %630 = vmatpush1.msra.mxu0 0.0
    %631 = vmatprep.subr.mxu0 0.0
    %632 = vmatpush1.msra.mxu0 0.0
    %633 = vmatprep.subr.mxu0 0.0
    %634 = vmatpush1.msra.mxu0 0.0
    %635 = vmatprep.subr.mxu0 0.0
    %636 = vmatpush1.msra.mxu0 0.0
    %637 = vmatprep.subr.mxu0 0.0
    %638 = vmatpush1.msra.mxu0 0.0
    %639 = vmatprep.subr.mxu0 0.0
    %640 = vmatpush1.msra.mxu0 0.0
    %641 = vmatprep.subr.mxu0 0.0
    %642 = vmatpush1.msra.mxu0 0.0
    %643 = vmatprep.subr.mxu0 0.0
    %644 = vmatpush1.msra.mxu0 0.0
    %645 = vmatprep.subr.mxu0 0.0
    %646 = vmatpush1.msra.mxu0 0.0
    %647 = vmatprep.subr.mxu0 0.0
    %648 = vmatpush1.msra.mxu0 0.0
    %649 = vmatprep.subr.mxu0 0.0
    %650 = vmatpush1.msra.mxu0 0.0
    %651 = vmatprep.subr.mxu0 0.0
    %652 = vmatpush1.msra.mxu0 0.0
    %653 = vmatprep.subr.mxu0 0.0
    %654 = vmatpush1.msra.mxu0 0.0
    %655 = vmatprep.subr.mxu0 0.0
    %656 = vmatpush1.msra.mxu0 0.0
    %657 = vmatprep.subr.mxu0 0.0
    %658 = vmatpush1.msra.mxu0 0.0
    %659 = vmatprep.subr.mxu0 0.0
    %660 = vmatpush1.msra.mxu0 0.0
    %661 = vmatprep.subr.mxu0 0.0
    %662 = vmatpush1.msra.mxu0 0.0
    %663 = vmatprep.mubr.f32.mxu0 0.0
    %664 = vmatmul.mubr.f32.gmra.mrb[0].mxu0 %v594
    %v665 = vpop.f32.mrb[0].mxu0
    %v666 = vadd.f32 0.0, %v665
    %v667 = vpop.f32.mrb[0].mxu0
    %668 = vmatprep.mubr.f32.mxu0 0.0
    %669 = vmatmul.mubr.f32.gmra.mrb[0].mxu0 %v597
    %v670 = vpop.f32.mrb[0].mxu0
    %v671 = vadd.f32 0.0, %v670
    %v672 = vpop.f32.mrb[0].mxu0
    %673 = vdwg.mxu0
    %674 = vrot.lane.b32.xlu0 %v266, 112
    %v675 = vpop.permute.xlu0 %674
    %676 = vrot.lane.b32.xlu0 %v271, 112
    %v677 = vpop.permute.xlu0 %676
    %678 = vrot.lane.b32.xlu0 %v266, 80
    %v679 = vpop.permute.xlu0 %678
    %680 = vrot.lane.b32.xlu0 %v271, 80
    %v681 = vpop.permute.xlu0 %680
    %v682 = vsel %vm280, %v675, 0
    %v684 = vsel %vm280, %v677, 0
    %v686 = vsel %vm280, %v679, 0
    %v688 = vsel %vm280, %v681, 0
    %690 = vmatprep.subr.mxu0 0.0
    %691 = vmatpush1.xpose.msra.mxu0 %v686
    %692 = vmatprep.subr.mxu0 0.0
    %693 = vmatpush1.xpose.msra.mxu0 %v688
    %694 = vmatprep.subr.mxu0 0.0
    %695 = vmatpush1.xpose.msra.mxu0 0.0
    %696 = vmatprep.subr.mxu0 0.0
    %697 = vmatpush1.xpose.msra.mxu0 0.0
    %698 = vmatprep.subr.mxu0 0.0
    %699 = vmatpush1.xpose.msra.mxu0 0.0
    %700 = vmatprep.subr.mxu0 0.0
    %701 = vmatpush1.xpose.msra.mxu0 0.0
    %702 = vmatprep.subr.mxu0 0.0
    %703 = vmatpush1.xpose.msra.mxu0 0.0
    %704 = vmatprep.subr.mxu0 0.0
    %705 = vmatpush1.xpose.msra.mxu0 0.0
    %706 = vmatprep.subr.mxu0 0.0
    %707 = vmatpush1.xpose.msra.mxu0 0.0
    %708 = vmatprep.subr.mxu0 0.0
    %709 = vmatpush1.xpose.msra.mxu0 0.0
    %710 = vmatprep.subr.mxu0 0.0
    %711 = vmatpush1.xpose.msra.mxu0 0.0
    %712 = vmatprep.subr.mxu0 0.0
    %713 = vmatpush1.xpose.msra.mxu0 0.0
    %714 = vmatprep.subr.mxu0 0.0
    %715 = vmatpush1.xpose.msra.mxu0 0.0
    %716 = vmatprep.subr.mxu0 0.0
    %717 = vmatpush1.xpose.msra.mxu0 0.0
    %718 = vmatprep.subr.mxu0 0.0
    %719 = vmatpush1.xpose.msra.mxu0 0.0
    %720 = vmatprep.subr.mxu0 0.0
    %721 = vmatpush1.xpose.msra.mxu0 0.0
    %722 = vmatprep.subr.mxu0 0.0
    %723 = vmatpush1.xpose.msra.mxu0 0.0
    %724 = vmatprep.subr.mxu0 0.0
    %725 = vmatpush1.xpose.msra.mxu0 0.0
    %726 = vmatprep.subr.mxu0 0.0
    %727 = vmatpush1.xpose.msra.mxu0 0.0
    %728 = vmatprep.subr.mxu0 0.0
    %729 = vmatpush1.xpose.msra.mxu0 0.0
    %730 = vmatprep.subr.mxu0 0.0
    %731 = vmatpush1.xpose.msra.mxu0 0.0
    %732 = vmatprep.subr.mxu0 0.0
    %733 = vmatpush1.xpose.msra.mxu0 0.0
    %734 = vmatprep.subr.mxu0 0.0
    %735 = vmatpush1.xpose.msra.mxu0 0.0
    %736 = vmatprep.subr.mxu0 0.0
    %737 = vmatpush1.xpose.msra.mxu0 0.0
    %738 = vmatprep.subr.mxu0 0.0
    %739 = vmatpush1.xpose.msra.mxu0 0.0
    %740 = vmatprep.subr.mxu0 0.0
    %741 = vmatpush1.xpose.msra.mxu0 0.0
    %742 = vmatprep.subr.mxu0 0.0
    %743 = vmatpush1.xpose.msra.mxu0 0.0
    %744 = vmatprep.subr.mxu0 0.0
    %745 = vmatpush1.xpose.msra.mxu0 0.0
    %746 = vmatprep.subr.mxu0 0.0
    %747 = vmatpush1.xpose.msra.mxu0 0.0
    %748 = vmatprep.subr.mxu0 0.0
    %749 = vmatpush1.xpose.msra.mxu0 0.0
    %750 = vmatprep.subr.mxu0 0.0
    %751 = vmatpush1.xpose.msra.mxu0 0.0
    %752 = vmatprep.subr.mxu0 0.0
    %753 = vmatpush1.xpose.msra.mxu0 0.0
    %754 = vmatprep.mubr.f32.mxu0 0.0
    %755 = vmatmul.mubr.f32.gmra.mrb[0].mxu0 %v682
    %v756 = vpop.f32.mrb[0].mxu0
    %v757 = vadd.f32 %v150, %v756
    %v758 = vpop.f32.mrb[0].mxu0
    %759 = vmatprep.mubr.f32.mxu0 0.0
    %760 = vmatmul.mubr.f32.gmra.mrb[0].mxu0 %v684
    %v761 = vpop.f32.mrb[0].mxu0
    %v762 = vadd.f32 %v151, %v761
    %v763 = vpop.f32.mrb[0].mxu0
    %764 = vdwg.mxu0
    %v765 = vsel %vm364, %v757, -inf
    %766 = vmax.xlane.f32.xlu0 %v765
    %v767 = vpop.xlane.xlu0 %766
    %v768 = vsel %vm364, %v762, -inf
    %769 = vmax.xlane.f32.xlu0 %v768
    %v770 = vpop.xlane.xlu0 %769
    %v771 = vsub.f32 %v757, %v767
    %v772 = vsub.f32 %v762, %v770
    %v773 = vmul.f32 %v771, 1.442695
    %v774 = vpow.pop %v773
    %v775 = vmul.f32 %v772, 1.442695
    %v776 = vpow.pop %v775
    %v777 = vsel %vm364, %v774, 0.0
    %778 = vadd.xlane.f32.xlu0 %v777
    %v779 = vpop.xlane.xlu0 %778
    %v780 = vsel %vm364, %v776, 0.0
    %781 = vadd.xlane.f32.xlu0 %v780
    %v782 = vpop.xlane.xlu0 %781
    %v783 = vrcp.pop %v779
    %v784 = vrcp.pop %v782
    %v785 = vmul.f32 %v774, %v783
    %v786 = vmul.f32 %v776, %v784
    %787 = vrot.lane.b32.xlu0 %v266, 48
    %v788 = vpop.permute.xlu0 %787
    %789 = vrot.lane.b32.xlu0 %v271, 48
    %v790 = vpop.permute.xlu0 %789
    %v794 = vsel %vm364, %v785, 0
    %v797 = vsel %vm364, %v786, 0
    %799 = vmatprep.subr.mxu0 0.0
    %800 = vmatpush1.msra.mxu0 %v788
    %801 = vmatprep.subr.mxu0 0.0
    %802 = vmatpush1.msra.mxu0 %v790
    %803 = vmatprep.subr.mxu0 0.0
    %804 = vmatpush1.msra.mxu0 0.0
    %805 = vmatprep.subr.mxu0 0.0
    %806 = vmatpush1.msra.mxu0 0.0
    %807 = vmatprep.subr.mxu0 0.0
    %808 = vmatpush1.msra.mxu0 0.0
    %809 = vmatprep.subr.mxu0 0.0
    %810 = vmatpush1.msra.mxu0 0.0
    %811 = vmatprep.subr.mxu0 0.0
    %812 = vmatpush1.msra.mxu0 0.0
    %813 = vmatprep.subr.mxu0 0.0
    %814 = vmatpush1.msra.mxu0 0.0
    %815 = vmatprep.subr.mxu0 0.0
    %816 = vmatpush1.msra.mxu0 0.0
    %817 = vmatprep.subr.mxu0 0.0
    %818 = vmatpush1.msra.mxu0 0.0
    %819 = vmatprep.subr.mxu0 0.0
    %820 = vmatpush1.msra.mxu0 0.0
    %821 = vmatprep.subr.mxu0 0.0
    %822 = vmatpush1.msra.mxu0 0.0
    %823 = vmatprep.subr.mxu0 0.0
    %824 = vmatpush1.msra.mxu0 0.0
    %825 = vmatprep.subr.mxu0 0.0
    %826 = vmatpush1.msra.mxu0 0.0
    %827 = vmatprep.subr.mxu0 0.0
    %828 = vmatpush1.msra.mxu0 0.0
    %829 = vmatprep.subr.mxu0 0.0
    %830 = vmatpush1.msra.mxu0 0.0
    %831 = vmatprep.subr.mxu0 0.0
    %832 = vmatpush1.msra.mxu0 0.0
    %833 = vmatprep.subr.mxu0 0.0
    %834 = vmatpush1.msra.mxu0 0.0
    %835 = vmatprep.subr.mxu0 0.0
    %836 = vmatpush1.msra.mxu0 0.0
    %837 = vmatprep.subr.mxu0 0.0
    %838 = vmatpush1.msra.mxu0 0.0
    %839 = vmatprep.subr.mxu0 0.0
    %840 = vmatpush1.msra.mxu0 0.0
    %841 = vmatprep.subr.mxu0 0.0
    %842 = vmatpush1.msra.mxu0 0.0
    %843 = vmatprep.subr.mxu0 0.0
    %844 = vmatpush1.msra.mxu0 0.0
    %845 = vmatprep.subr.mxu0 0.0
    %846 = vmatpush1.msra.mxu0 0.0
    %847 = vmatprep.subr.mxu0 0.0
    %848 = vmatpush1.msra.mxu0 0.0
    %849 = vmatprep.subr.mxu0 0.0
    %850 = vmatpush1.msra.mxu0 0.0
    %851 = vmatprep.subr.mxu0 0.0
    %852 = vmatpush1.msra.mxu0 0.0
    %853 = vmatprep.subr.mxu0 0.0
    %854 = vmatpush1.msra.mxu0 0.0
    %855 = vmatprep.subr.mxu0 0.0
    %856 = vmatpush1.msra.mxu0 0.0
    %857 = vmatprep.subr.mxu0 0.0
    %858 = vmatpush1.msra.mxu0 0.0
    %859 = vmatprep.subr.mxu0 0.0
    %860 = vmatpush1.msra.mxu0 0.0
    %861 = vmatprep.subr.mxu0 0.0
    %862 = vmatpush1.msra.mxu0 0.0
    %863 = vmatprep.mubr.f32.mxu0 0.0
    %864 = vmatmul.mubr.f32.gmra.mrb[0].mxu0 %v794
    %v865 = vpop.f32.mrb[0].mxu0
    %v866 = vadd.f32 0.0, %v865
    %v867 = vpop.f32.mrb[0].mxu0
    %868 = vmatprep.mubr.f32.mxu0 0.0
    %869 = vmatmul.mubr.f32.gmra.mrb[0].mxu0 %v797
    %v870 = vpop.f32.mrb[0].mxu0
    %v871 = vadd.f32 0.0, %v870
    %v872 = vpop.f32.mrb[0].mxu0
    %873 = vdwg.mxu0
    %874 = vrot.lane.b32.xlu0 %v266, 104
    %v875 = vpop.permute.xlu0 %874
    %876 = vrot.lane.b32.xlu0 %v271, 104
    %v877 = vpop.permute.xlu0 %876
    %878 = vrot.lane.b32.xlu0 %v266, 72
    %v879 = vpop.permute.xlu0 %878
    %880 = vrot.lane.b32.xlu0 %v271, 72
    %v881 = vpop.permute.xlu0 %880
    %v882 = vsel %vm280, %v875, 0
    %v884 = vsel %vm280, %v877, 0
    %v886 = vsel %vm280, %v879, 0
    %v888 = vsel %vm280, %v881, 0
    %890 = vmatprep.subr.mxu0 0.0
    %891 = vmatpush1.xpose.msra.mxu0 %v886
    %892 = vmatprep.subr.mxu0 0.0
    %893 = vmatpush1.xpose.msra.mxu0 %v888
    %894 = vmatprep.subr.mxu0 0.0
    %895 = vmatpush1.xpose.msra.mxu0 0.0
    %896 = vmatprep.subr.mxu0 0.0
    %897 = vmatpush1.xpose.msra.mxu0 0.0
    %898 = vmatprep.subr.mxu0 0.0
    %899 = vmatpush1.xpose.msra.mxu0 0.0
    %900 = vmatprep.subr.mxu0 0.0
    %901 = vmatpush1.xpose.msra.mxu0 0.0
    %902 = vmatprep.subr.mxu0 0.0
    %903 = vmatpush1.xpose.msra.mxu0 0.0
    %904 = vmatprep.subr.mxu0 0.0
    %905 = vmatpush1.xpose.msra.mxu0 0.0
    %906 = vmatprep.subr.mxu0 0.0
    %907 = vmatpush1.xpose.msra.mxu0 0.0
    %908 = vmatprep.subr.mxu0 0.0
    %909 = vmatpush1.xpose.msra.mxu0 0.0
    %910 = vmatprep.subr.mxu0 0.0
    %911 = vmatpush1.xpose.msra.mxu0 0.0
    %912 = vmatprep.subr.mxu0 0.0
    %913 = vmatpush1.xpose.msra.mxu0 0.0
    %914 = vmatprep.subr.mxu0 0.0
    %915 = vmatpush1.xpose.msra.mxu0 0.0
    %916 = vmatprep.subr.mxu0 0.0
    %917 = vmatpush1.xpose.msra.mxu0 0.0
    %918 = vmatprep.subr.mxu0 0.0
    %919 = vmatpush1.xpose.msra.mxu0 0.0
    %920 = vmatprep.subr.mxu0 0.0
    %921 = vmatpush1.xpose.msra.mxu0 0.0
    %922 = vmatprep.subr.mxu0 0.0
    %923 = vmatpush1.xpose.msra.mxu0 0.0
    %924 = vmatprep.subr.mxu0 0.0
    %925 = vmatpush1.xpose.msra.mxu0 0.0
    %926 = vmatprep.subr.mxu0 0.0
    %927 = vmatpush1.xpose.msra.mxu0 0.0
    %928 = vmatprep.subr.mxu0 0.0
    %929 = vmatpush1.xpose.msra.mxu0 0.0
    %930 = vmatprep.subr.mxu0 0.0
    %931 = vmatpush1.xpose.msra.mxu0 0.0
    %932 = vmatprep.subr.mxu0 0.0
    %933 = vmatpush1.xpose.msra.mxu0 0.0
    %934 = vmatprep.subr.mxu0 0.0
    %935 = vmatpush1.xpose.msra.mxu0 0.0
    %936 = vmatprep.subr.mxu0 0.0
    %937 = vmatpush1.xpose.msra.mxu0 0.0
    %938 = vmatprep.subr.mxu0 0.0
    %939 = vmatpush1.xpose.msra.mxu0 0.0
    %940 = vmatprep.subr.mxu0 0.0
    %941 = vmatpush1.xpose.msra.mxu0 0.0
    %942 = vmatprep.subr.mxu0 0.0
    %943 = vmatpush1.xpose.msra.mxu0 0.0
    %944 = vmatprep.subr.mxu0 0.0
    %945 = vmatpush1.xpose.msra.mxu0 0.0
    %946 = vmatprep.subr.mxu0 0.0
    %947 = vmatpush1.xpose.msra.mxu0 0.0
    %948 = vmatprep.subr.mxu0 0.0
    %949 = vmatpush1.xpose.msra.mxu0 0.0
    %950 = vmatprep.subr.mxu0 0.0
    %951 = vmatpush1.xpose.msra.mxu0 0.0
    %952 = vmatprep.subr.mxu0 0.0
    %953 = vmatpush1.xpose.msra.mxu0 0.0
    %954 = vmatprep.mubr.f32.mxu0 0.0
    %955 = vmatmul.mubr.f32.gmra.mrb[0].mxu0 %v882
    %v956 = vpop.f32.mrb[0].mxu0
    %v957 = vadd.f32 %v150, %v956
    %v958 = vpop.f32.mrb[0].mxu0
    %959 = vmatprep.mubr.f32.mxu0 0.0
    %960 = vmatmul.mubr.f32.gmra.mrb[0].mxu0 %v884
    %v961 = vpop.f32.mrb[0].mxu0
    %v962 = vadd.f32 %v151, %v961
    %v963 = vpop.f32.mrb[0].mxu0
    %964 = vdwg.mxu0
    %v965 = vsel %vm364, %v957, -inf
    %966 = vmax.xlane.f32.xlu0 %v965
    %v967 = vpop.xlane.xlu0 %966
    %v968 = vsel %vm364, %v962, -inf
    %969 = vmax.xlane.f32.xlu0 %v968
    %v970 = vpop.xlane.xlu0 %969
    %v971 = vsub.f32 %v957, %v967
    %v972 = vsub.f32 %v962, %v970
    %v973 = vmul.f32 %v971, 1.442695
    %v974 = vpow.pop %v973
    %v975 = vmul.f32 %v972, 1.442695
    %v976 = vpow.pop %v975
    %v977 = vsel %vm364, %v974, 0.0
    %978 = vadd.xlane.f32.xlu0 %v977
    %v979 = vpop.xlane.xlu0 %978
    %v980 = vsel %vm364, %v976, 0.0
    %981 = vadd.xlane.f32.xlu0 %v980
    %v982 = vpop.xlane.xlu0 %981
    %v983 = vrcp.pop %v979
    %v984 = vrcp.pop %v982
    %v985 = vmul.f32 %v974, %v983
    %v986 = vmul.f32 %v976, %v984
    %987 = vrot.lane.b32.xlu0 %v266, 40
    %v988 = vpop.permute.xlu0 %987
    %989 = vrot.lane.b32.xlu0 %v271, 40
    %v990 = vpop.permute.xlu0 %989
    %v994 = vsel %vm364, %v985, 0
    %v997 = vsel %vm364, %v986, 0
    %999 = vmatprep.subr.mxu0 0.0
    %1000 = vmatpush1.msra.mxu0 %v988
    %1001 = vmatprep.subr.mxu0 0.0
    %1002 = vmatpush1.msra.mxu0 %v990
    %1003 = vmatprep.subr.mxu0 0.0
    %1004 = vmatpush1.msra.mxu0 0.0
    %1005 = vmatprep.subr.mxu0 0.0
    %1006 = vmatpush1.msra.mxu0 0.0
    %1007 = vmatprep.subr.mxu0 0.0
    %1008 = vmatpush1.msra.mxu0 0.0
    %1009 = vmatprep.subr.mxu0 0.0
    %1010 = vmatpush1.msra.mxu0 0.0
    %1011 = vmatprep.subr.mxu0 0.0
    %1012 = vmatpush1.msra.mxu0 0.0
    %1013 = vmatprep.subr.mxu0 0.0
    %1014 = vmatpush1.msra.mxu0 0.0
    %1015 = vmatprep.subr.mxu0 0.0
    %1016 = vmatpush1.msra.mxu0 0.0
    %1017 = vmatprep.subr.mxu0 0.0
    %1018 = vmatpush1.msra.mxu0 0.0
    %1019 = vmatprep.subr.mxu0 0.0
    %1020 = vmatpush1.msra.mxu0 0.0
    %1021 = vmatprep.subr.mxu0 0.0
    %1022 = vmatpush1.msra.mxu0 0.0
    %1023 = vmatprep.subr.mxu0 0.0
    %1024 = vmatpush1.msra.mxu0 0.0
    %1025 = vmatprep.subr.mxu0 0.0
    %1026 = vmatpush1.msra.mxu0 0.0
    %1027 = vmatprep.subr.mxu0 0.0
    %1028 = vmatpush1.msra.mxu0 0.0
    %1029 = vmatprep.subr.mxu0 0.0
    %1030 = vmatpush1.msra.mxu0 0.0
    %1031 = vmatprep.subr.mxu0 0.0
    %1032 = vmatpush1.msra.mxu0 0.0
    %1033 = vmatprep.subr.mxu0 0.0
    %1034 = vmatpush1.msra.mxu0 0.0
    %1035 = vmatprep.subr.mxu0 0.0
    %1036 = vmatpush1.msra.mxu0 0.0
    %1037 = vmatprep.subr.mxu0 0.0
    %1038 = vmatpush1.msra.mxu0 0.0
    %1039 = vmatprep.subr.mxu0 0.0
    %1040 = vmatpush1.msra.mxu0 0.0
    %1041 = vmatprep.subr.mxu0 0.0
    %1042 = vmatpush1.msra.mxu0 0.0
    %1043 = vmatprep.subr.mxu0 0.0
    %1044 = vmatpush1.msra.mxu0 0.0
    %1045 = vmatprep.subr.mxu0 0.0
    %1046 = vmatpush1.msra.mxu0 0.0
    %1047 = vmatprep.subr.mxu0 0.0
    %1048 = vmatpush1.msra.mxu0 0.0
    %1049 = vmatprep.subr.mxu0 0.0
    %1050 = vmatpush1.msra.mxu0 0.0
    %1051 = vmatprep.subr.mxu0 0.0
    %1052 = vmatpush1.msra.mxu0 0.0
    %1053 = vmatprep.subr.mxu0 0.0
    %1054 = vmatpush1.msra.mxu0 0.0
    %1055 = vmatprep.subr.mxu0 0.0
    %1056 = vmatpush1.msra.mxu0 0.0
    %1057 = vmatprep.subr.mxu0 0.0
    %1058 = vmatpush1.msra.mxu0 0.0
    %1059 = vmatprep.subr.mxu0 0.0
    %1060 = vmatpush1.msra.mxu0 0.0
    %1061 = vmatprep.subr.mxu0 0.0
    %1062 = vmatpush1.msra.mxu0 0.0
    %1063 = vmatprep.mubr.f32.mxu0 0.0
    %1064 = vmatmul.mubr.f32.gmra.mrb[0].mxu0 %v994
    %v1065 = vpop.f32.mrb[0].mxu0
    %v1066 = vadd.f32 0.0, %v1065
    %v1067 = vpop.f32.mrb[0].mxu0
    %1068 = vmatprep.mubr.f32.mxu0 0.0
    %1069 = vmatmul.mubr.f32.gmra.mrb[0].mxu0 %v997
    %v1070 = vpop.f32.mrb[0].mxu0
    %v1071 = vadd.f32 0.0, %v1070
    %v1072 = vpop.f32.mrb[0].mxu0
    %1073 = vdwg.mxu0
    %1076 = vrot.lane.b32.xlu0 %v666, 8
    %v1077 = vpop.permute.xlu0 %1076
    %1078 = vrot.lane.b32.xlu0 %v671, 8
    %v1079 = vpop.permute.xlu0 %1078
    %1084 = vrot.lane.b32.xlu0 %v866, 16
    %v1085 = vpop.permute.xlu0 %1084
    %1086 = vrot.lane.b32.xlu0 %v871, 16
    %v1087 = vpop.permute.xlu0 %1086
    %1092 = vrot.lane.b32.xlu0 %v1066, 24
    %v1093 = vpop.permute.xlu0 %1092
    %1094 = vrot.lane.b32.xlu0 %v1071, 24
    %v1095 = vpop.permute.xlu0 %1094
    %v1098 = vsel %vm280, %v466, %v1077
    %v1099 = vsel %vm280, %v471, %v1079
    %v1100 = vsel %vm364, %v1098, %v1085
    %v1101 = vsel %vm364, %v1099, %v1087
    %vm1102 = vcmask 195584
    %v1103 = vsel %vm1102, %v1100, %v1093
    %v1104 = vsel %vm1102, %v1101, %v1095
    %v1105 = vld [vmem:[%s7] sm:$0xff]
    %v1106 = vld [vmem:[%s7 + $0x8] sm:$0xff]
    %v1107 = vld [vmem:[%s7 + $0x10] sm:$0xff]
    %v1108 = vld [vmem:[%s7 + $0x18] sm:$0xff]
    %v1110 = vsel %vm153, %v1103, 0
    %v1113 = vsel %vm153, %v1104, 0
    %1115 = vmatprep.subr.mxu0 0.0
    %1116 = vmatpush1.msra.mxu0 %v1105
    %1117 = vmatprep.subr.mxu0 0.0
    %1118 = vmatpush1.msra.mxu0 %v1106
    %1119 = vmatprep.subr.mxu0 0.0
    %1120 = vmatpush1.msra.mxu0 %v1107
    %1121 = vmatprep.subr.mxu0 0.0
    %1122 = vmatpush1.msra.mxu0 %v1108
    %1123 = vmatprep.subr.mxu0 0.0
    %1124 = vmatpush1.msra.mxu0 0.0
    %1125 = vmatprep.subr.mxu0 0.0
    %1126 = vmatpush1.msra.mxu0 0.0
    %1127 = vmatprep.subr.mxu0 0.0
    %1128 = vmatpush1.msra.mxu0 0.0
    %1129 = vmatprep.subr.mxu0 0.0
    %1130 = vmatpush1.msra.mxu0 0.0
    %1131 = vmatprep.subr.mxu0 0.0
    %1132 = vmatpush1.msra.mxu0 0.0
    %1133 = vmatprep.subr.mxu0 0.0
    %1134 = vmatpush1.msra.mxu0 0.0
    %1135 = vmatprep.subr.mxu0 0.0
    %1136 = vmatpush1.msra.mxu0 0.0
    %1137 = vmatprep.subr.mxu0 0.0
    %1138 = vmatpush1.msra.mxu0 0.0
    %1139 = vmatprep.subr.mxu0 0.0
    %1140 = vmatpush1.msra.mxu0 0.0
    %1141 = vmatprep.subr.mxu0 0.0
    %1142 = vmatpush1.msra.mxu0 0.0
    %1143 = vmatprep.subr.mxu0 0.0
    %1144 = vmatpush1.msra.mxu0 0.0
    %1145 = vmatprep.subr.mxu0 0.0
    %1146 = vmatpush1.msra.mxu0 0.0
    %1147 = vmatprep.subr.mxu0 0.0
    %1148 = vmatpush1.msra.mxu0 0.0
    %1149 = vmatprep.subr.mxu0 0.0
    %1150 = vmatpush1.msra.mxu0 0.0
    %1151 = vmatprep.subr.mxu0 0.0
    %1152 = vmatpush1.msra.mxu0 0.0
    %1153 = vmatprep.subr.mxu0 0.0
    %1154 = vmatpush1.msra.mxu0 0.0
    %1155 = vmatprep.subr.mxu0 0.0
    %1156 = vmatpush1.msra.mxu0 0.0
    %1157 = vmatprep.subr.mxu0 0.0
    %1158 = vmatpush1.msra.mxu0 0.0
    %1159 = vmatprep.subr.mxu0 0.0
    %1160 = vmatpush1.msra.mxu0 0.0
    %1161 = vmatprep.subr.mxu0 0.0
    %1162 = vmatpush1.msra.mxu0 0.0
    %1163 = vmatprep.subr.mxu0 0.0
    %1164 = vmatpush1.msra.mxu0 0.0
    %1165 = vmatprep.subr.mxu0 0.0
    %1166 = vmatpush1.msra.mxu0 0.0
    %1167 = vmatprep.subr.mxu0 0.0
    %1168 = vmatpush1.msra.mxu0 0.0
    %1169 = vmatprep.subr.mxu0 0.0
    %1170 = vmatpush1.msra.mxu0 0.0
    %1171 = vmatprep.subr.mxu0 0.0
    %1172 = vmatpush1.msra.mxu0 0.0
    %1173 = vmatprep.subr.mxu0 0.0
    %1174 = vmatpush1.msra.mxu0 0.0
    %1175 = vmatprep.subr.mxu0 0.0
    %1176 = vmatpush1.msra.mxu0 0.0
    %1177 = vmatprep.subr.mxu0 0.0
    %1178 = vmatpush1.msra.mxu0 0.0
    %1179 = vmatprep.mubr.f32.mxu0 0.0
    %1180 = vmatmul.mubr.f32.gmra.mrb[0].mxu0 %v1110
    %v1181 = vpop.f32.mrb[0].mxu0
    %v1182 = vadd.f32 0.0, %v1181
    %v1183 = vpop.f32.mrb[0].mxu0
    %1184 = vmatprep.mubr.f32.mxu0 0.0
    %1185 = vmatmul.mubr.f32.gmra.mrb[0].mxu0 %v1113
    %v1186 = vpop.f32.mrb[0].mxu0
    %v1187 = vadd.f32 0.0, %v1186
    %v1188 = vpop.f32.mrb[0].mxu0
    %1189 = vdwg.mxu0
    %v1190 = vadd.f32 %v142, %v1182
    %v1191 = vadd.f32 %v147, %v1187
    %v1192 = vld [vmem:[%s8] sm:$0x1]
    %v1193 = vsel %vm153, %v1190, 0.0
    %1194 = vadd.xlane.f32.xlu0 %v1193
    %v1195 = vpop.xlane.xlu0 %1194
    %v1196 = vsel %vm153, %v1191, 0.0
    %1197 = vadd.xlane.f32.xlu0 %v1196
    %v1198 = vpop.xlane.xlu0 %1197
    %v1199 = vmul.f32 %v1195, %v160
    %v1200 = vmul.f32 %v1198, %v160
    %v1201 = vsub.f32 %v1190, %v1199
    %v1202 = vsub.f32 %v1191, %v1200
    %v1203 = vmul.f32 %v1201, %v1201
    %v1204 = vmul.f32 %v1202, %v1202
    %v1205 = vsel %vm153, %v1203, 0.0
    %1206 = vadd.xlane.f32.xlu0 %v1205
    %v1207 = vpop.xlane.xlu0 %1206
    %v1208 = vsel %vm153, %v1204, 0.0
    %1209 = vadd.xlane.f32.xlu0 %v1208
    %v1210 = vpop.xlane.xlu0 %1209
    %v1211 = vmul.f32 %v1207, %v160
    %v1212 = vmul.f32 %v1210, %v160
    %v1213 = vadd.f32 %v1211, 1e-05
    %v1214 = vadd.f32 %v1212, 1e-05
    %v1215 = vrsqrt.pop %v1213
    %v1216 = vrsqrt.pop %v1214
    %v1217 = vmul.f32 %v1201, %v1215
    %v1218 = vmul.f32 %v1202, %v1216
    %v1220 = vlaneseq
    %v1221 = vshrl.u32 %v1220, 7
    %v1222 = vsub.s32 0, %v1221
    %v1223 = vrot.slane %v1192, %v1222
    %v1225 = vmul.f32 %v1217, %v1223
    %v1226 = vmul.f32 %v1218, %v1223
    %v1227 = vld [vmem:[%s9] sm:$0xff]
    %v1228 = vld [vmem:[%s9 + $0x8] sm:$0xff]
    %v1229 = vld [vmem:[%s9 + $0x10] sm:$0xff]
    %v1230 = vld [vmem:[%s9 + $0x18] sm:$0xff]
    %v1232 = vsel %vm153, %v1225, 0
    %v1235 = vsel %vm153, %v1226, 0
    %1237 = vmatprep.subr.mxu0 0.0
    %1238 = vmatpush1.msra.mxu0 %v1227
    %1239 = vmatprep.subr.mxu0 0.0
    %1240 = vmatpush1.msra.mxu0 %v1228
    %1241 = vmatprep.subr.mxu0 0.0
    %1242 = vmatpush1.msra.mxu0 %v1229
    %1243 = vmatprep.subr.mxu0 0.0
    %1244 = vmatpush1.msra.mxu0 %v1230
    %1245 = vmatprep.subr.mxu0 0.0
    %1246 = vmatpush1.msra.mxu0 0.0
    %1247 = vmatprep.subr.mxu0 0.0
    %1248 = vmatpush1.msra.mxu0 0.0
    %1249 = vmatprep.subr.mxu0 0.0
    %1250 = vmatpush1.msra.mxu0 0.0
    %1251 = vmatprep.subr.mxu0 0.0
    %1252 = vmatpush1.msra.mxu0 0.0
    %1253 = vmatprep.subr.mxu0 0.0
    %1254 = vmatpush1.msra.mxu0 0.0
    %1255 = vmatprep.subr.mxu0 0.0
    %1256 = vmatpush1.msra.mxu0 0.0
    %1257 = vmatprep.subr.mxu0 0.0
    %1258 = vmatpush1.msra.mxu0 0.0
    %1259 = vmatprep.subr.mxu0 0.0
    %1260 = vmatpush1.msra.mxu0 0.0
    %1261 = vmatprep.subr.mxu0 0.0
    %1262 = vmatpush1.msra.mxu0 0.0
    %1263 = vmatprep.subr.mxu0 0.0
    %1264 = vmatpush1.msra.mxu0 0.0
    %1265 = vmatprep.subr.mxu0 0.0
    %1266 = vmatpush1.msra.mxu0 0.0
    %1267 = vmatprep.subr.mxu0 0.0
    %1268 = vmatpush1.msra.mxu0 0.0
    %1269 = vmatprep.subr.mxu0 0.0
    %1270 = vmatpush1.msra.mxu0 0.0
    %1271 = vmatprep.subr.mxu0 0.0
    %1272 = vmatpush1.msra.mxu0 0.0
    %1273 = vmatprep.subr.mxu0 0.0
    %1274 = vmatpush1.msra.mxu0 0.0
    %1275 = vmatprep.subr.mxu0 0.0
    %1276 = vmatpush1.msra.mxu0 0.0
    %1277 = vmatprep.subr.mxu0 0.0
    %1278 = vmatpush1.msra.mxu0 0.0
    %1279 = vmatprep.subr.mxu0 0.0
    %1280 = vmatpush1.msra.mxu0 0.0
    %1281 = vmatprep.subr.mxu0 0.0
    %1282 = vmatpush1.msra.mxu0 0.0
    %1283 = vmatprep.subr.mxu0 0.0
    %1284 = vmatpush1.msra.mxu0 0.0
    %1285 = vmatprep.subr.mxu0 0.0
    %1286 = vmatpush1.msra.mxu0 0.0
    %1287 = vmatprep.subr.mxu0 0.0
    %1288 = vmatpush1.msra.mxu0 0.0
    %1289 = vmatprep.subr.mxu0 0.0
    %1290 = vmatpush1.msra.mxu0 0.0
    %1291 = vmatprep.subr.mxu0 0.0
    %1292 = vmatpush1.msra.mxu0 0.0
    %1293 = vmatprep.subr.mxu0 0.0
    %1294 = vmatpush1.msra.mxu0 0.0
    %1295 = vmatprep.subr.mxu0 0.0
    %1296 = vmatpush1.msra.mxu0 0.0
    %1297 = vmatprep.subr.mxu0 0.0
    %1298 = vmatpush1.msra.mxu0 0.0
    %1299 = vmatprep.subr.mxu0 0.0
    %1300 = vmatpush1.msra.mxu0 0.0
    %1301 = vmatprep.mubr.f32.mxu0 0.0
    %1302 = vmatmul.mubr.f32.gmra.mrb[0].mxu0 %v1232
    %v1303 = vpop.f32.mrb[0].mxu0
    %v1304 = vadd.f32 0.0, %v1303
    %v1305 = vpop.f32.mrb[0].mxu0
    %1306 = vmatprep.mubr.f32.mxu0 0.0
    %1307 = vmatmul.mubr.f32.gmra.mrb[0].mxu0 %v1235
    %v1308 = vpop.f32.mrb[0].mxu0
    %v1309 = vadd.f32 0.0, %v1308
    %v1310 = vpop.f32.mrb[0].mxu0
    %1311 = vdwg.mxu0
    %v1312 = vmul.f32 %v1304, 0.5
    %v1313 = vmul.f32 %v1309, 0.5
    %v1314 = vmul.f32 %v1304, 0.70710677
    %v1315 = vmul.f32 %v1309, 0.70710677
    %vm1316 = vcmp.ge.f32.partialorder %v1314, 0.0
    %vm1317 = vcmp.ge.f32.partialorder %v1315, 0.0
    %v1318 = vsel %vm1316, 1.0, -1.0
    %v1319 = vsel %vm1317, 1.0, -1.0
    %v1320 = vand.u32 2147483647, %v1314
    %v1321 = vand.u32 2147483647, %v1315
    %v1322 = vmul.f32 %v1320, 0.3275911
    %v1323 = vmul.f32 %v1321, 0.3275911
    %v1324 = vadd.f32 %v1322, 1.0
    %v1325 = vadd.f32 %v1323, 1.0
    %v1326 = vrcp.pop %v1324
    %v1327 = vrcp.pop %v1325
    %v1328 = vmul.f32 %v1326, 1.0614054
    %v1329 = vmul.f32 %v1327, 1.0614054
    %v1330 = vadd.f32 %v1328, -1.4531521
    %v1331 = vadd.f32 %v1329, -1.4531521
    %v1332 = vmul.f32 %v1330, %v1326
    %v1333 = vmul.f32 %v1331, %v1327
    %v1334 = vadd.f32 %v1332, 1.4214138
    %v1335 = vadd.f32 %v1333, 1.4214138
    %v1336 = vmul.f32 %v1334, %v1326
    %v1337 = vmul.f32 %v1335, %v1327
    %v1338 = vadd.f32 %v1336, -0.28449672
    %v1339 = vadd.f32 %v1337, -0.28449672
    %v1340 = vmul.f32 %v1338, %v1326
    %v1341 = vmul.f32 %v1339, %v1327
    %v1342 = vadd.f32 %v1340, 0.2548296
    %v1343 = vadd.f32 %v1341, 0.2548296
    %v1344 = vmul.f32 %v1342, %v1326
    %v1345 = vmul.f32 %v1343, %v1327
    %v1346 = vsub.f32 0.0, %v1320
    %v1347 = vsub.f32 0.0, %v1321
    %v1348 = vmul.f32 %v1346, %v1320
    %v1349 = vmul.f32 %v1347, %v1321
    %v1350 = vmul.f32 %v1348, 1.442695
    %v1351 = vpow.pop %v1350
    %v1352 = vmul.f32 %v1349, 1.442695
    %v1353 = vpow.pop %v1352
    %v1354 = vmul.f32 %v1344, %v1351
    %v1355 = vmul.f32 %v1345, %v1353
    %v1356 = vsub.f32 1.0, %v1354
    %v1357 = vsub.f32 1.0, %v1355
    %v1358 = vmul.f32 %v1318, %v1356
    %v1359 = vmul.f32 %v1319, %v1357
    %v1360 = vadd.f32 %v1358, 1.0
    %v1361 = vadd.f32 %v1359, 1.0
    %v1362 = vmul.f32 %v1312, %v1360
    %v1363 = vmul.f32 %v1313, %v1361
    %v1364 = vld [vmem:[%s10] sm:$0xff]
    %v1365 = vld [vmem:[%s10 + $0x8] sm:$0xff]
    %v1366 = vld [vmem:[%s10 + $0x10] sm:$0xff]
    %v1367 = vld [vmem:[%s10 + $0x18] sm:$0xff]
    %v1368 = vld [vmem:[%s10 + $0x20] sm:$0xff]
    %v1369 = vld [vmem:[%s10 + $0x28] sm:$0xff]
    %v1370 = vld [vmem:[%s10 + $0x30] sm:$0xff]
    %v1371 = vld [vmem:[%s10 + $0x38] sm:$0xff]
    %v1372 = vld [vmem:[%s10 + $0x40] sm:$0xff]
    %v1373 = vld [vmem:[%s10 + $0x48] sm:$0xff]
    %v1374 = vld [vmem:[%s10 + $0x50] sm:$0xff]
    %v1375 = vld [vmem:[%s10 + $0x58] sm:$0xff]
    %v1376 = vld [vmem:[%s10 + $0x60] sm:$0xff]
    %v1377 = vld [vmem:[%s10 + $0x68] sm:$0xff]
    %v1378 = vld [vmem:[%s10 + $0x70] sm:$0xff]
    %v1379 = vld [vmem:[%s10 + $0x78] sm:$0xff]
    %1380 = vmatprep.subr.mxu0 0.0
    %1381 = vmatpush1.msra.mxu0 %v1364
    %1382 = vmatprep.subr.mxu0 0.0
    %1383 = vmatpush1.msra.mxu0 %v1365
    %1384 = vmatprep.subr.mxu0 0.0
    %1385 = vmatpush1.msra.mxu0 %v1366
    %1386 = vmatprep.subr.mxu0 0.0
    %1387 = vmatpush1.msra.mxu0 %v1367
    %1388 = vmatprep.subr.mxu0 0.0
    %1389 = vmatpush1.msra.mxu0 %v1368
    %1390 = vmatprep.subr.mxu0 0.0
    %1391 = vmatpush1.msra.mxu0 %v1369
    %1392 = vmatprep.subr.mxu0 0.0
    %1393 = vmatpush1.msra.mxu0 %v1370
    %1394 = vmatprep.subr.mxu0 0.0
    %1395 = vmatpush1.msra.mxu0 %v1371
    %1396 = vmatprep.subr.mxu0 0.0
    %1397 = vmatpush1.msra.mxu0 %v1372
    %1398 = vmatprep.subr.mxu0 0.0
    %1399 = vmatpush1.msra.mxu0 %v1373
    %1400 = vmatprep.subr.mxu0 0.0
    %1401 = vmatpush1.msra.mxu0 %v1374
    %1402 = vmatprep.subr.mxu0 0.0
    %1403 = vmatpush1.msra.mxu0 %v1375
    %1404 = vmatprep.subr.mxu0 0.0
    %1405 = vmatpush1.msra.mxu0 %v1376
    %1406 = vmatprep.subr.mxu0 0.0
    %1407 = vmatpush1.msra.mxu0 %v1377
    %1408 = vmatprep.subr.mxu0 0.0
    %1409 = vmatpush1.msra.mxu0 %v1378
    %1410 = vmatprep.subr.mxu0 0.0
    %1411 = vmatpush1.msra.mxu0 %v1379
    %1412 = vmatprep.subr.mxu0 0.0
    %1413 = vmatpush1.msra.mxu0 0.0
    %1414 = vmatprep.subr.mxu0 0.0
    %1415 = vmatpush1.msra.mxu0 0.0
    %1416 = vmatprep.subr.mxu0 0.0
    %1417 = vmatpush1.msra.mxu0 0.0
    %1418 = vmatprep.subr.mxu0 0.0
    %1419 = vmatpush1.msra.mxu0 0.0
    %1420 = vmatprep.subr.mxu0 0.0
    %1421 = vmatpush1.msra.mxu0 0.0
    %1422 = vmatprep.subr.mxu0 0.0
    %1423 = vmatpush1.msra.mxu0 0.0
    %1424 = vmatprep.subr.mxu0 0.0
    %1425 = vmatpush1.msra.mxu0 0.0
    %1426 = vmatprep.subr.mxu0 0.0
    %1427 = vmatpush1.msra.mxu0 0.0
    %1428 = vmatprep.subr.mxu0 0.0
    %1429 = vmatpush1.msra.mxu0 0.0
    %1430 = vmatprep.subr.mxu0 0.0
    %1431 = vmatpush1.msra.mxu0 0.0
    %1432 = vmatprep.subr.mxu0 0.0
    %1433 = vmatpush1.msra.mxu0 0.0
    %1434 = vmatprep.subr.mxu0 0.0
    %1435 = vmatpush1.msra.mxu0 0.0
    %1436 = vmatprep.subr.mxu0 0.0
    %1437 = vmatpush1.msra.mxu0 0.0
    %1438 = vmatprep.subr.mxu0 0.0
    %1439 = vmatpush1.msra.mxu0 0.0
    %1440 = vmatprep.subr.mxu0 0.0
    %1441 = vmatpush1.msra.mxu0 0.0
    %1442 = vmatprep.subr.mxu0 0.0
    %1443 = vmatpush1.msra.mxu0 0.0
    %1444 = vmatprep.mubr.f32.mxu0 0.0
    %1445 = vmatmul.mubr.f32.gmra.mrb[0].mxu0 %v1362
    %v1446 = vpop.f32.mrb[0].mxu0
    %v1447 = vadd.f32 0.0, %v1446
    %v1448 = vpop.f32.mrb[0].mxu0
    %1449 = vmatprep.mubr.f32.mxu0 0.0
    %1450 = vmatmul.mubr.f32.gmra.mrb[0].mxu0 %v1363
    %v1451 = vpop.f32.mrb[0].mxu0
    %v1452 = vadd.f32 0.0, %v1451
    %v1453 = vpop.f32.mrb[0].mxu0
    %1454 = vdwg.mxu0
    %v1455 = vadd.f32 %v1190, %v1447
    %v1456 = vadd.f32 %v1191, %v1452
    %s1457 = scalar_lea.vmem %s5, 1
    %v1458 = vld [vmem:[%s1457] sm:$0x1]
    %v1459 = vsel %vm153, %v1455, 0.0
    %1460 = vadd.xlane.f32.xlu0 %v1459
    %v1461 = vpop.xlane.xlu0 %1460
    %v1462 = vsel %vm153, %v1456, 0.0
    %1463 = vadd.xlane.f32.xlu0 %v1462
    %v1464 = vpop.xlane.xlu0 %1463
    %v1465 = vmul.f32 %v1461, %v160
    %v1466 = vmul.f32 %v1464, %v160
    %v1467 = vsub.f32 %v1455, %v1465
    %v1468 = vsub.f32 %v1456, %v1466
    %v1469 = vmul.f32 %v1467, %v1467
    %v1470 = vmul.f32 %v1468, %v1468
    %v1471 = vsel %vm153, %v1469, 0.0
    %1472 = vadd.xlane.f32.xlu0 %v1471
    %v1473 = vpop.xlane.xlu0 %1472
    %v1474 = vsel %vm153, %v1470, 0.0
    %1475 = vadd.xlane.f32.xlu0 %v1474
    %v1476 = vpop.xlane.xlu0 %1475
    %v1477 = vmul.f32 %v1473, %v160
    %v1478 = vmul.f32 %v1476, %v160
    %v1479 = vadd.f32 %v1477, 1e-05
    %v1480 = vadd.f32 %v1478, 1e-05
    %v1481 = vrsqrt.pop %v1479
    %v1482 = vrsqrt.pop %v1480
    %v1483 = vmul.f32 %v1467, %v1481
    %v1484 = vmul.f32 %v1468, %v1482
    %v1486 = vlaneseq
    %v1487 = vshrl.u32 %v1486, 7
    %v1488 = vsub.s32 0, %v1487
    %v1489 = vrot.slane %v1458, %v1488
    %v1491 = vmul.f32 %v1483, %v1489
    %v1492 = vmul.f32 %v1484, %v1489
    %s1493 = scalar_lea.vmem %s6, 32
    %v1494 = vld [vmem:[%s1493] sm:$0xff]
    %v1495 = vld [vmem:[%s1493 + $0x8] sm:$0xff]
    %v1496 = vld [vmem:[%s1493 + $0x10] sm:$0xff]
    %v1497 = vld [vmem:[%s1493 + $0x18] sm:$0xff]
    %v1499 = vsel %vm153, %v1491, 0
    %v1502 = vsel %vm153, %v1492, 0
    %1504 = vmatprep.subr.mxu0 0.0
    %1505 = vmatpush1.msra.mxu0 %v1494
    %1506 = vmatprep.subr.mxu0 0.0
    %1507 = vmatpush1.msra.mxu0 %v1495
    %1508 = vmatprep.subr.mxu0 0.0
    %1509 = vmatpush1.msra.mxu0 %v1496
    %1510 = vmatprep.subr.mxu0 0.0
    %1511 = vmatpush1.msra.mxu0 %v1497
    %1512 = vmatprep.subr.mxu0 0.0
    %1513 = vmatpush1.msra.mxu0 0.0
    %1514 = vmatprep.subr.mxu0 0.0
    %1515 = vmatpush1.msra.mxu0 0.0
    %1516 = vmatprep.subr.mxu0 0.0
    %1517 = vmatpush1.msra.mxu0 0.0
    %1518 = vmatprep.subr.mxu0 0.0
    %1519 = vmatpush1.msra.mxu0 0.0
    %1520 = vmatprep.subr.mxu0 0.0
    %1521 = vmatpush1.msra.mxu0 0.0
    %1522 = vmatprep.subr.mxu0 0.0
    %1523 = vmatpush1.msra.mxu0 0.0
    %1524 = vmatprep.subr.mxu0 0.0
    %1525 = vmatpush1.msra.mxu0 0.0
    %1526 = vmatprep.subr.mxu0 0.0
    %1527 = vmatpush1.msra.mxu0 0.0
    %1528 = vmatprep.subr.mxu0 0.0
    %1529 = vmatpush1.msra.mxu0 0.0
    %1530 = vmatprep.subr.mxu0 0.0
    %1531 = vmatpush1.msra.mxu0 0.0
    %1532 = vmatprep.subr.mxu0 0.0
    %1533 = vmatpush1.msra.mxu0 0.0
    %1534 = vmatprep.subr.mxu0 0.0
    %1535 = vmatpush1.msra.mxu0 0.0
    %1536 = vmatprep.subr.mxu0 0.0
    %1537 = vmatpush1.msra.mxu0 0.0
    %1538 = vmatprep.subr.mxu0 0.0
    %1539 = vmatpush1.msra.mxu0 0.0
    %1540 = vmatprep.subr.mxu0 0.0
    %1541 = vmatpush1.msra.mxu0 0.0
    %1542 = vmatprep.subr.mxu0 0.0
    %1543 = vmatpush1.msra.mxu0 0.0
    %1544 = vmatprep.subr.mxu0 0.0
    %1545 = vmatpush1.msra.mxu0 0.0
    %1546 = vmatprep.subr.mxu0 0.0
    %1547 = vmatpush1.msra.mxu0 0.0
    %1548 = vmatprep.subr.mxu0 0.0
    %1549 = vmatpush1.msra.mxu0 0.0
    %1550 = vmatprep.subr.mxu0 0.0
    %1551 = vmatpush1.msra.mxu0 0.0
    %1552 = vmatprep.subr.mxu0 0.0
    %1553 = vmatpush1.msra.mxu0 0.0
    %1554 = vmatprep.subr.mxu0 0.0
    %1555 = vmatpush1.msra.mxu0 0.0
    %1556 = vmatprep.subr.mxu0 0.0
    %1557 = vmatpush1.msra.mxu0 0.0
    %1558 = vmatprep.subr.mxu0 0.0
    %1559 = vmatpush1.msra.mxu0 0.0
    %1560 = vmatprep.subr.mxu0 0.0
    %1561 = vmatpush1.msra.mxu0 0.0
    %1562 = vmatprep.subr.mxu0 0.0
    %1563 = vmatpush1.msra.mxu0 0.0
    %1564 = vmatprep.subr.mxu0 0.0
    %1565 = vmatpush1.msra.mxu0 0.0
    %1566 = vmatprep.subr.mxu0 0.0
    %1567 = vmatpush1.msra.mxu0 0.0
    %1568 = vmatprep.mubr.f32.mxu0 0.0
    %1569 = vmatmul.mubr.f32.gmra.mrb[0].mxu0 %v1499
    %v1570 = vpop.f32.mrb[0].mxu0
    %v1571 = vadd.f32 0.0, %v1570
    %v1572 = vpop.f32.mrb[0].mxu0
    %1573 = vmatprep.mubr.f32.mxu0 0.0
    %1574 = vmatmul.mubr.f32.gmra.mrb[0].mxu0 %v1502
    %v1575 = vpop.f32.mrb[0].mxu0
    %v1576 = vadd.f32 0.0, %v1575
    %v1577 = vpop.f32.mrb[0].mxu0
    %1578 = vdwg.mxu0
    %1581 = vrot.lane.b32.xlu0 %v1571, 96
    %v1582 = vpop.permute.xlu0 %1581
    %1583 = vrot.lane.b32.xlu0 %v1576, 96
    %v1584 = vpop.permute.xlu0 %1583
    %v1585 = vsel %vm280, %v1571, 0
    %v1587 = vsel %vm280, %v1576, 0
    %v1589 = vsel %vm280, %v1582, 0
    %v1591 = vsel %vm280, %v1584, 0
    %1593 = vmatprep.subr.mxu0 0.0
    %1594 = vmatpush1.xpose.msra.mxu0 %v1589
    %1595 = vmatprep.subr.mxu0 0.0
    %1596 = vmatpush1.xpose.msra.mxu0 %v1591
    %1597 = vmatprep.subr.mxu0 0.0
    %1598 = vmatpush1.xpose.msra.mxu0 0.0
    %1599 = vmatprep.subr.mxu0 0.0
    %1600 = vmatpush1.xpose.msra.mxu0 0.0
    %1601 = vmatprep.subr.mxu0 0.0
    %1602 = vmatpush1.xpose.msra.mxu0 0.0
    %1603 = vmatprep.subr.mxu0 0.0
    %1604 = vmatpush1.xpose.msra.mxu0 0.0
    %1605 = vmatprep.subr.mxu0 0.0
    %1606 = vmatpush1.xpose.msra.mxu0 0.0
    %1607 = vmatprep.subr.mxu0 0.0
    %1608 = vmatpush1.xpose.msra.mxu0 0.0
    %1609 = vmatprep.subr.mxu0 0.0
    %1610 = vmatpush1.xpose.msra.mxu0 0.0
    %1611 = vmatprep.subr.mxu0 0.0
    %1612 = vmatpush1.xpose.msra.mxu0 0.0
    %1613 = vmatprep.subr.mxu0 0.0
    %1614 = vmatpush1.xpose.msra.mxu0 0.0
    %1615 = vmatprep.subr.mxu0 0.0
    %1616 = vmatpush1.xpose.msra.mxu0 0.0
    %1617 = vmatprep.subr.mxu0 0.0
    %1618 = vmatpush1.xpose.msra.mxu0 0.0
    %1619 = vmatprep.subr.mxu0 0.0
    %1620 = vmatpush1.xpose.msra.mxu0 0.0
    %1621 = vmatprep.subr.mxu0 0.0
    %1622 = vmatpush1.xpose.msra.mxu0 0.0
    %1623 = vmatprep.subr.mxu0 0.0
    %1624 = vmatpush1.xpose.msra.mxu0 0.0
    %1625 = vmatprep.subr.mxu0 0.0
    %1626 = vmatpush1.xpose.msra.mxu0 0.0
    %1627 = vmatprep.subr.mxu0 0.0
    %1628 = vmatpush1.xpose.msra.mxu0 0.0
    %1629 = vmatprep.subr.mxu0 0.0
    %1630 = vmatpush1.xpose.msra.mxu0 0.0
    %1631 = vmatprep.subr.mxu0 0.0
    %1632 = vmatpush1.xpose.msra.mxu0 0.0
    %1633 = vmatprep.subr.mxu0 0.0
    %1634 = vmatpush1.xpose.msra.mxu0 0.0
    %1635 = vmatprep.subr.mxu0 0.0
    %1636 = vmatpush1.xpose.msra.mxu0 0.0
    %1637 = vmatprep.subr.mxu0 0.0
    %1638 = vmatpush1.xpose.msra.mxu0 0.0
    %1639 = vmatprep.subr.mxu0 0.0
    %1640 = vmatpush1.xpose.msra.mxu0 0.0
    %1641 = vmatprep.subr.mxu0 0.0
    %1642 = vmatpush1.xpose.msra.mxu0 0.0
    %1643 = vmatprep.subr.mxu0 0.0
    %1644 = vmatpush1.xpose.msra.mxu0 0.0
    %1645 = vmatprep.subr.mxu0 0.0
    %1646 = vmatpush1.xpose.msra.mxu0 0.0
    %1647 = vmatprep.subr.mxu0 0.0
    %1648 = vmatpush1.xpose.msra.mxu0 0.0
    %1649 = vmatprep.subr.mxu0 0.0
    %1650 = vmatpush1.xpose.msra.mxu0 0.0
    %1651 = vmatprep.subr.mxu0 0.0
    %1652 = vmatpush1.xpose.msra.mxu0 0.0
    %1653 = vmatprep.subr.mxu0 0.0
    %1654 = vmatpush1.xpose.msra.mxu0 0.0
    %1655 = vmatprep.subr.mxu0 0.0
    %1656 = vmatpush1.xpose.msra.mxu0 0.0
    %1657 = vmatprep.mubr.f32.mxu0 0.0
    %1658 = vmatmul.mubr.f32.gmra.mrb[0].mxu0 %v1585
    %v1659 = vpop.f32.mrb[0].mxu0
    %v1660 = vadd.f32 %v150, %v1659
    %v1661 = vpop.f32.mrb[0].mxu0
    %1662 = vmatprep.mubr.f32.mxu0 0.0
    %1663 = vmatmul.mubr.f32.gmra.mrb[0].mxu0 %v1587
    %v1664 = vpop.f32.mrb[0].mxu0
    %v1665 = vadd.f32 %v151, %v1664
    %v1666 = vpop.f32.mrb[0].mxu0
    %1667 = vdwg.mxu0
    %v1668 = vsel %vm364, %v1660, -inf
    %1669 = vmax.xlane.f32.xlu0 %v1668
    %v1670 = vpop.xlane.xlu0 %1669
    %v1671 = vsel %vm364, %v1665, -inf
    %1672 = vmax.xlane.f32.xlu0 %v1671
    %v1673 = vpop.xlane.xlu0 %1672
    %v1674 = vsub.f32 %v1660, %v1670
    %v1675 = vsub.f32 %v1665, %v1673
    %v1676 = vmul.f32 %v1674, 1.442695
    %v1677 = vpow.pop %v1676
    %v1678 = vmul.f32 %v1675, 1.442695
    %v1679 = vpow.pop %v1678
    %v1680 = vsel %vm364, %v1677, 0.0
    %1681 = vadd.xlane.f32.xlu0 %v1680
    %v1682 = vpop.xlane.xlu0 %1681
    %v1683 = vsel %vm364, %v1679, 0.0
    %1684 = vadd.xlane.f32.xlu0 %v1683
    %v1685 = vpop.xlane.xlu0 %1684
    %v1686 = vrcp.pop %v1682
    %v1687 = vrcp.pop %v1685
    %v1688 = vmul.f32 %v1677, %v1686
    %v1689 = vmul.f32 %v1679, %v1687
    %1690 = vrot.lane.b32.xlu0 %v1571, 64
    %v1691 = vpop.permute.xlu0 %1690
    %1692 = vrot.lane.b32.xlu0 %v1576, 64
    %v1693 = vpop.permute.xlu0 %1692
    %v1697 = vsel %vm364, %v1688, 0
    %v1700 = vsel %vm364, %v1689, 0
    %1702 = vmatprep.subr.mxu0 0.0
    %1703 = vmatpush1.msra.mxu0 %v1691
    %1704 = vmatprep.subr.mxu0 0.0
    %1705 = vmatpush1.msra.mxu0 %v1693
    %1706 = vmatprep.subr.mxu0 0.0
    %1707 = vmatpush1.msra.mxu0 0.0
    %1708 = vmatprep.subr.mxu0 0.0
    %1709 = vmatpush1.msra.mxu0 0.0
    %1710 = vmatprep.subr.mxu0 0.0
    %1711 = vmatpush1.msra.mxu0 0.0
    %1712 = vmatprep.subr.mxu0 0.0
    %1713 = vmatpush1.msra.mxu0 0.0
    %1714 = vmatprep.subr.mxu0 0.0
    %1715 = vmatpush1.msra.mxu0 0.0
    %1716 = vmatprep.subr.mxu0 0.0
    %1717 = vmatpush1.msra.mxu0 0.0
    %1718 = vmatprep.subr.mxu0 0.0
    %1719 = vmatpush1.msra.mxu0 0.0
    %1720 = vmatprep.subr.mxu0 0.0
    %1721 = vmatpush1.msra.mxu0 0.0
    %1722 = vmatprep.subr.mxu0 0.0
    %1723 = vmatpush1.msra.mxu0 0.0
    %1724 = vmatprep.subr.mxu0 0.0
    %1725 = vmatpush1.msra.mxu0 0.0
    %1726 = vmatprep.subr.mxu0 0.0
    %1727 = vmatpush1.msra.mxu0 0.0
    %1728 = vmatprep.subr.mxu0 0.0
    %1729 = vmatpush1.msra.mxu0 0.0
    %1730 = vmatprep.subr.mxu0 0.0
    %1731 = vmatpush1.msra.mxu0 0.0
    %1732 = vmatprep.subr.mxu0 0.0
    %1733 = vmatpush1.msra.mxu0 0.0
    %1734 = vmatprep.subr.mxu0 0.0
    %1735 = vmatpush1.msra.mxu0 0.0
    %1736 = vmatprep.subr.mxu0 0.0
    %1737 = vmatpush1.msra.mxu0 0.0
    %1738 = vmatprep.subr.mxu0 0.0
    %1739 = vmatpush1.msra.mxu0 0.0
    %1740 = vmatprep.subr.mxu0 0.0
    %1741 = vmatpush1.msra.mxu0 0.0
    %1742 = vmatprep.subr.mxu0 0.0
    %1743 = vmatpush1.msra.mxu0 0.0
    %1744 = vmatprep.subr.mxu0 0.0
    %1745 = vmatpush1.msra.mxu0 0.0
    %1746 = vmatprep.subr.mxu0 0.0
    %1747 = vmatpush1.msra.mxu0 0.0
    %1748 = vmatprep.subr.mxu0 0.0
    %1749 = vmatpush1.msra.mxu0 0.0
    %1750 = vmatprep.subr.mxu0 0.0
    %1751 = vmatpush1.msra.mxu0 0.0
    %1752 = vmatprep.subr.mxu0 0.0
    %1753 = vmatpush1.msra.mxu0 0.0
    %1754 = vmatprep.subr.mxu0 0.0
    %1755 = vmatpush1.msra.mxu0 0.0
    %1756 = vmatprep.subr.mxu0 0.0
    %1757 = vmatpush1.msra.mxu0 0.0
    %1758 = vmatprep.subr.mxu0 0.0
    %1759 = vmatpush1.msra.mxu0 0.0
    %1760 = vmatprep.subr.mxu0 0.0
    %1761 = vmatpush1.msra.mxu0 0.0
    %1762 = vmatprep.subr.mxu0 0.0
    %1763 = vmatpush1.msra.mxu0 0.0
    %1764 = vmatprep.subr.mxu0 0.0
    %1765 = vmatpush1.msra.mxu0 0.0
    %1766 = vmatprep.mubr.f32.mxu0 0.0
    %1767 = vmatmul.mubr.f32.gmra.mrb[0].mxu0 %v1697
    %v1768 = vpop.f32.mrb[0].mxu0
    %v1769 = vadd.f32 0.0, %v1768
    %v1770 = vpop.f32.mrb[0].mxu0
    %1771 = vmatprep.mubr.f32.mxu0 0.0
    %1772 = vmatmul.mubr.f32.gmra.mrb[0].mxu0 %v1700
    %v1773 = vpop.f32.mrb[0].mxu0
    %v1774 = vadd.f32 0.0, %v1773
    %v1775 = vpop.f32.mrb[0].mxu0
    %1776 = vdwg.mxu0
    %1777 = vrot.lane.b32.xlu0 %v1571, 120
    %v1778 = vpop.permute.xlu0 %1777
    %1779 = vrot.lane.b32.xlu0 %v1576, 120
    %v1780 = vpop.permute.xlu0 %1779
    %1781 = vrot.lane.b32.xlu0 %v1571, 88
    %v1782 = vpop.permute.xlu0 %1781
    %1783 = vrot.lane.b32.xlu0 %v1576, 88
    %v1784 = vpop.permute.xlu0 %1783
    %v1785 = vsel %vm280, %v1778, 0
    %v1787 = vsel %vm280, %v1780, 0
    %v1789 = vsel %vm280, %v1782, 0
    %v1791 = vsel %vm280, %v1784, 0
    %1793 = vmatprep.subr.mxu0 0.0
    %1794 = vmatpush1.xpose.msra.mxu0 %v1789
    %1795 = vmatprep.subr.mxu0 0.0
    %1796 = vmatpush1.xpose.msra.mxu0 %v1791
    %1797 = vmatprep.subr.mxu0 0.0
    %1798 = vmatpush1.xpose.msra.mxu0 0.0
    %1799 = vmatprep.subr.mxu0 0.0
    %1800 = vmatpush1.xpose.msra.mxu0 0.0
    %1801 = vmatprep.subr.mxu0 0.0
    %1802 = vmatpush1.xpose.msra.mxu0 0.0
    %1803 = vmatprep.subr.mxu0 0.0
    %1804 = vmatpush1.xpose.msra.mxu0 0.0
    %1805 = vmatprep.subr.mxu0 0.0
    %1806 = vmatpush1.xpose.msra.mxu0 0.0
    %1807 = vmatprep.subr.mxu0 0.0
    %1808 = vmatpush1.xpose.msra.mxu0 0.0
    %1809 = vmatprep.subr.mxu0 0.0
    %1810 = vmatpush1.xpose.msra.mxu0 0.0
    %1811 = vmatprep.subr.mxu0 0.0
    %1812 = vmatpush1.xpose.msra.mxu0 0.0
    %1813 = vmatprep.subr.mxu0 0.0
    %1814 = vmatpush1.xpose.msra.mxu0 0.0
    %1815 = vmatprep.subr.mxu0 0.0
    %1816 = vmatpush1.xpose.msra.mxu0 0.0
    %1817 = vmatprep.subr.mxu0 0.0
    %1818 = vmatpush1.xpose.msra.mxu0 0.0
    %1819 = vmatprep.subr.mxu0 0.0
    %1820 = vmatpush1.xpose.msra.mxu0 0.0
    %1821 = vmatprep.subr.mxu0 0.0
    %1822 = vmatpush1.xpose.msra.mxu0 0.0
    %1823 = vmatprep.subr.mxu0 0.0
    %1824 = vmatpush1.xpose.msra.mxu0 0.0
    %1825 = vmatprep.subr.mxu0 0.0
    %1826 = vmatpush1.xpose.msra.mxu0 0.0
    %1827 = vmatprep.subr.mxu0 0.0
    %1828 = vmatpush1.xpose.msra.mxu0 0.0
    %1829 = vmatprep.subr.mxu0 0.0
    %1830 = vmatpush1.xpose.msra.mxu0 0.0
    %1831 = vmatprep.subr.mxu0 0.0
    %1832 = vmatpush1.xpose.msra.mxu0 0.0
    %1833 = vmatprep.subr.mxu0 0.0
    %1834 = vmatpush1.xpose.msra.mxu0 0.0
    %1835 = vmatprep.subr.mxu0 0.0
    %1836 = vmatpush1.xpose.msra.mxu0 0.0
    %1837 = vmatprep.subr.mxu0 0.0
    %1838 = vmatpush1.xpose.msra.mxu0 0.0
    %1839 = vmatprep.subr.mxu0 0.0
    %1840 = vmatpush1.xpose.msra.mxu0 0.0
    %1841 = vmatprep.subr.mxu0 0.0
    %1842 = vmatpush1.xpose.msra.mxu0 0.0
    %1843 = vmatprep.subr.mxu0 0.0
    %1844 = vmatpush1.xpose.msra.mxu0 0.0
    %1845 = vmatprep.subr.mxu0 0.0
    %1846 = vmatpush1.xpose.msra.mxu0 0.0
    %1847 = vmatprep.subr.mxu0 0.0
    %1848 = vmatpush1.xpose.msra.mxu0 0.0
    %1849 = vmatprep.subr.mxu0 0.0
    %1850 = vmatpush1.xpose.msra.mxu0 0.0
    %1851 = vmatprep.subr.mxu0 0.0
    %1852 = vmatpush1.xpose.msra.mxu0 0.0
    %1853 = vmatprep.subr.mxu0 0.0
    %1854 = vmatpush1.xpose.msra.mxu0 0.0
    %1855 = vmatprep.subr.mxu0 0.0
    %1856 = vmatpush1.xpose.msra.mxu0 0.0
    %1857 = vmatprep.mubr.f32.mxu0 0.0
    %1858 = vmatmul.mubr.f32.gmra.mrb[0].mxu0 %v1785
    %v1859 = vpop.f32.mrb[0].mxu0
    %v1860 = vadd.f32 %v150, %v1859
    %v1861 = vpop.f32.mrb[0].mxu0
    %1862 = vmatprep.mubr.f32.mxu0 0.0
    %1863 = vmatmul.mubr.f32.gmra.mrb[0].mxu0 %v1787
    %v1864 = vpop.f32.mrb[0].mxu0
    %v1865 = vadd.f32 %v151, %v1864
    %v1866 = vpop.f32.mrb[0].mxu0
    %1867 = vdwg.mxu0
    %v1868 = vsel %vm364, %v1860, -inf
    %1869 = vmax.xlane.f32.xlu0 %v1868
    %v1870 = vpop.xlane.xlu0 %1869
    %v1871 = vsel %vm364, %v1865, -inf
    %1872 = vmax.xlane.f32.xlu0 %v1871
    %v1873 = vpop.xlane.xlu0 %1872
    %v1874 = vsub.f32 %v1860, %v1870
    %v1875 = vsub.f32 %v1865, %v1873
    %v1876 = vmul.f32 %v1874, 1.442695
    %v1877 = vpow.pop %v1876
    %v1878 = vmul.f32 %v1875, 1.442695
    %v1879 = vpow.pop %v1878
    %v1880 = vsel %vm364, %v1877, 0.0
    %1881 = vadd.xlane.f32.xlu0 %v1880
    %v1882 = vpop.xlane.xlu0 %1881
    %v1883 = vsel %vm364, %v1879, 0.0
    %1884 = vadd.xlane.f32.xlu0 %v1883
    %v1885 = vpop.xlane.xlu0 %1884
    %v1886 = vrcp.pop %v1882
    %v1887 = vrcp.pop %v1885
    %v1888 = vmul.f32 %v1877, %v1886
    %v1889 = vmul.f32 %v1879, %v1887
    %1890 = vrot.lane.b32.xlu0 %v1571, 56
    %v1891 = vpop.permute.xlu0 %1890
    %1892 = vrot.lane.b32.xlu0 %v1576, 56
    %v1893 = vpop.permute.xlu0 %1892
    %v1897 = vsel %vm364, %v1888, 0
    %v1900 = vsel %vm364, %v1889, 0
    %1902 = vmatprep.subr.mxu0 0.0
    %1903 = vmatpush1.msra.mxu0 %v1891
    %1904 = vmatprep.subr.mxu0 0.0
    %1905 = vmatpush1.msra.mxu0 %v1893
    %1906 = vmatprep.subr.mxu0 0.0
    %1907 = vmatpush1.msra.mxu0 0.0
    %1908 = vmatprep.subr.mxu0 0.0
    %1909 = vmatpush1.msra.mxu0 0.0
    %1910 = vmatprep.subr.mxu0 0.0
    %1911 = vmatpush1.msra.mxu0 0.0
    %1912 = vmatprep.subr.mxu0 0.0
    %1913 = vmatpush1.msra.mxu0 0.0
    %1914 = vmatprep.subr.mxu0 0.0
    %1915 = vmatpush1.msra.mxu0 0.0
    %1916 = vmatprep.subr.mxu0 0.0
    %1917 = vmatpush1.msra.mxu0 0.0
    %1918 = vmatprep.subr.mxu0 0.0
    %1919 = vmatpush1.msra.mxu0 0.0
    %1920 = vmatprep.subr.mxu0 0.0
    %1921 = vmatpush1.msra.mxu0 0.0
    %1922 = vmatprep.subr.mxu0 0.0
    %1923 = vmatpush1.msra.mxu0 0.0
    %1924 = vmatprep.subr.mxu0 0.0
    %1925 = vmatpush1.msra.mxu0 0.0
    %1926 = vmatprep.subr.mxu0 0.0
    %1927 = vmatpush1.msra.mxu0 0.0
    %1928 = vmatprep.subr.mxu0 0.0
    %1929 = vmatpush1.msra.mxu0 0.0
    %1930 = vmatprep.subr.mxu0 0.0
    %1931 = vmatpush1.msra.mxu0 0.0
    %1932 = vmatprep.subr.mxu0 0.0
    %1933 = vmatpush1.msra.mxu0 0.0
    %1934 = vmatprep.subr.mxu0 0.0
    %1935 = vmatpush1.msra.mxu0 0.0
    %1936 = vmatprep.subr.mxu0 0.0
    %1937 = vmatpush1.msra.mxu0 0.0
    %1938 = vmatprep.subr.mxu0 0.0
    %1939 = vmatpush1.msra.mxu0 0.0
    %1940 = vmatprep.subr.mxu0 0.0
    %1941 = vmatpush1.msra.mxu0 0.0
    %1942 = vmatprep.subr.mxu0 0.0
    %1943 = vmatpush1.msra.mxu0 0.0
    %1944 = vmatprep.subr.mxu0 0.0
    %1945 = vmatpush1.msra.mxu0 0.0
    %1946 = vmatprep.subr.mxu0 0.0
    %1947 = vmatpush1.msra.mxu0 0.0
    %1948 = vmatprep.subr.mxu0 0.0
    %1949 = vmatpush1.msra.mxu0 0.0
    %1950 = vmatprep.subr.mxu0 0.0
    %1951 = vmatpush1.msra.mxu0 0.0
    %1952 = vmatprep.subr.mxu0 0.0
    %1953 = vmatpush1.msra.mxu0 0.0
    %1954 = vmatprep.subr.mxu0 0.0
    %1955 = vmatpush1.msra.mxu0 0.0
    %1956 = vmatprep.subr.mxu0 0.0
    %1957 = vmatpush1.msra.mxu0 0.0
    %1958 = vmatprep.subr.mxu0 0.0
    %1959 = vmatpush1.msra.mxu0 0.0
    %1960 = vmatprep.subr.mxu0 0.0
    %1961 = vmatpush1.msra.mxu0 0.0
    %1962 = vmatprep.subr.mxu0 0.0
    %1963 = vmatpush1.msra.mxu0 0.0
    %1964 = vmatprep.subr.mxu0 0.0
    %1965 = vmatpush1.msra.mxu0 0.0
    %1966 = vmatprep.mubr.f32.mxu0 0.0
    %1967 = vmatmul.mubr.f32.gmra.mrb[0].mxu0 %v1897
    %v1968 = vpop.f32.mrb[0].mxu0
    %v1969 = vadd.f32 0.0, %v1968
    %v1970 = vpop.f32.mrb[0].mxu0
    %1971 = vmatprep.mubr.f32.mxu0 0.0
    %1972 = vmatmul.mubr.f32.gmra.mrb[0].mxu0 %v1900
    %v1973 = vpop.f32.mrb[0].mxu0
    %v1974 = vadd.f32 0.0, %v1973
    %v1975 = vpop.f32.mrb[0].mxu0
    %1976 = vdwg.mxu0
    %1977 = vrot.lane.b32.xlu0 %v1571, 112
    %v1978 = vpop.permute.xlu0 %1977
    %1979 = vrot.lane.b32.xlu0 %v1576, 112
    %v1980 = vpop.permute.xlu0 %1979
    %1981 = vrot.lane.b32.xlu0 %v1571, 80
    %v1982 = vpop.permute.xlu0 %1981
    %1983 = vrot.lane.b32.xlu0 %v1576, 80
    %v1984 = vpop.permute.xlu0 %1983
    %v1985 = vsel %vm280, %v1978, 0
    %v1987 = vsel %vm280, %v1980, 0
    %v1989 = vsel %vm280, %v1982, 0
    %v1991 = vsel %vm280, %v1984, 0
    %1993 = vmatprep.subr.mxu0 0.0
    %1994 = vmatpush1.xpose.msra.mxu0 %v1989
    %1995 = vmatprep.subr.mxu0 0.0
    %1996 = vmatpush1.xpose.msra.mxu0 %v1991
    %1997 = vmatprep.subr.mxu0 0.0
    %1998 = vmatpush1.xpose.msra.mxu0 0.0
    %1999 = vmatprep.subr.mxu0 0.0
    %2000 = vmatpush1.xpose.msra.mxu0 0.0
    %2001 = vmatprep.subr.mxu0 0.0
    %2002 = vmatpush1.xpose.msra.mxu0 0.0
    %2003 = vmatprep.subr.mxu0 0.0
    %2004 = vmatpush1.xpose.msra.mxu0 0.0
    %2005 = vmatprep.subr.mxu0 0.0
    %2006 = vmatpush1.xpose.msra.mxu0 0.0
    %2007 = vmatprep.subr.mxu0 0.0
    %2008 = vmatpush1.xpose.msra.mxu0 0.0
    %2009 = vmatprep.subr.mxu0 0.0
    %2010 = vmatpush1.xpose.msra.mxu0 0.0
    %2011 = vmatprep.subr.mxu0 0.0
    %2012 = vmatpush1.xpose.msra.mxu0 0.0
    %2013 = vmatprep.subr.mxu0 0.0
    %2014 = vmatpush1.xpose.msra.mxu0 0.0
    %2015 = vmatprep.subr.mxu0 0.0
    %2016 = vmatpush1.xpose.msra.mxu0 0.0
    %2017 = vmatprep.subr.mxu0 0.0
    %2018 = vmatpush1.xpose.msra.mxu0 0.0
    %2019 = vmatprep.subr.mxu0 0.0
    %2020 = vmatpush1.xpose.msra.mxu0 0.0
    %2021 = vmatprep.subr.mxu0 0.0
    %2022 = vmatpush1.xpose.msra.mxu0 0.0
    %2023 = vmatprep.subr.mxu0 0.0
    %2024 = vmatpush1.xpose.msra.mxu0 0.0
    %2025 = vmatprep.subr.mxu0 0.0
    %2026 = vmatpush1.xpose.msra.mxu0 0.0
    %2027 = vmatprep.subr.mxu0 0.0
    %2028 = vmatpush1.xpose.msra.mxu0 0.0
    %2029 = vmatprep.subr.mxu0 0.0
    %2030 = vmatpush1.xpose.msra.mxu0 0.0
    %2031 = vmatprep.subr.mxu0 0.0
    %2032 = vmatpush1.xpose.msra.mxu0 0.0
    %2033 = vmatprep.subr.mxu0 0.0
    %2034 = vmatpush1.xpose.msra.mxu0 0.0
    %2035 = vmatprep.subr.mxu0 0.0
    %2036 = vmatpush1.xpose.msra.mxu0 0.0
    %2037 = vmatprep.subr.mxu0 0.0
    %2038 = vmatpush1.xpose.msra.mxu0 0.0
    %2039 = vmatprep.subr.mxu0 0.0
    %2040 = vmatpush1.xpose.msra.mxu0 0.0
    %2041 = vmatprep.subr.mxu0 0.0
    %2042 = vmatpush1.xpose.msra.mxu0 0.0
    %2043 = vmatprep.subr.mxu0 0.0
    %2044 = vmatpush1.xpose.msra.mxu0 0.0
    %2045 = vmatprep.subr.mxu0 0.0
    %2046 = vmatpush1.xpose.msra.mxu0 0.0
    %2047 = vmatprep.subr.mxu0 0.0
    %2048 = vmatpush1.xpose.msra.mxu0 0.0
    %2049 = vmatprep.subr.mxu0 0.0
    %2050 = vmatpush1.xpose.msra.mxu0 0.0
    %2051 = vmatprep.subr.mxu0 0.0
    %2052 = vmatpush1.xpose.msra.mxu0 0.0
    %2053 = vmatprep.subr.mxu0 0.0
    %2054 = vmatpush1.xpose.msra.mxu0 0.0
    %2055 = vmatprep.subr.mxu0 0.0
    %2056 = vmatpush1.xpose.msra.mxu0 0.0
    %2057 = vmatprep.mubr.f32.mxu0 0.0
    %2058 = vmatmul.mubr.f32.gmra.mrb[0].mxu0 %v1985
    %v2059 = vpop.f32.mrb[0].mxu0
    %v2060 = vadd.f32 %v150, %v2059
    %v2061 = vpop.f32.mrb[0].mxu0
    %2062 = vmatprep.mubr.f32.mxu0 0.0
    %2063 = vmatmul.mubr.f32.gmra.mrb[0].mxu0 %v1987
    %v2064 = vpop.f32.mrb[0].mxu0
    %v2065 = vadd.f32 %v151, %v2064
    %v2066 = vpop.f32.mrb[0].mxu0
    %2067 = vdwg.mxu0
    %v2068 = vsel %vm364, %v2060, -inf
    %2069 = vmax.xlane.f32.xlu0 %v2068
    %v2070 = vpop.xlane.xlu0 %2069
    %v2071 = vsel %vm364, %v2065, -inf
    %2072 = vmax.xlane.f32.xlu0 %v2071
    %v2073 = vpop.xlane.xlu0 %2072
    %v2074 = vsub.f32 %v2060, %v2070
    %v2075 = vsub.f32 %v2065, %v2073
    %v2076 = vmul.f32 %v2074, 1.442695
    %v2077 = vpow.pop %v2076
    %v2078 = vmul.f32 %v2075, 1.442695
    %v2079 = vpow.pop %v2078
    %v2080 = vsel %vm364, %v2077, 0.0
    %2081 = vadd.xlane.f32.xlu0 %v2080
    %v2082 = vpop.xlane.xlu0 %2081
    %v2083 = vsel %vm364, %v2079, 0.0
    %2084 = vadd.xlane.f32.xlu0 %v2083
    %v2085 = vpop.xlane.xlu0 %2084
    %v2086 = vrcp.pop %v2082
    %v2087 = vrcp.pop %v2085
    %v2088 = vmul.f32 %v2077, %v2086
    %v2089 = vmul.f32 %v2079, %v2087
    %2090 = vrot.lane.b32.xlu0 %v1571, 48
    %v2091 = vpop.permute.xlu0 %2090
    %2092 = vrot.lane.b32.xlu0 %v1576, 48
    %v2093 = vpop.permute.xlu0 %2092
    %v2097 = vsel %vm364, %v2088, 0
    %v2100 = vsel %vm364, %v2089, 0
    %2102 = vmatprep.subr.mxu0 0.0
    %2103 = vmatpush1.msra.mxu0 %v2091
    %2104 = vmatprep.subr.mxu0 0.0
    %2105 = vmatpush1.msra.mxu0 %v2093
    %2106 = vmatprep.subr.mxu0 0.0
    %2107 = vmatpush1.msra.mxu0 0.0
    %2108 = vmatprep.subr.mxu0 0.0
    %2109 = vmatpush1.msra.mxu0 0.0
    %2110 = vmatprep.subr.mxu0 0.0
    %2111 = vmatpush1.msra.mxu0 0.0
    %2112 = vmatprep.subr.mxu0 0.0
    %2113 = vmatpush1.msra.mxu0 0.0
    %2114 = vmatprep.subr.mxu0 0.0
    %2115 = vmatpush1.msra.mxu0 0.0
    %2116 = vmatprep.subr.mxu0 0.0
    %2117 = vmatpush1.msra.mxu0 0.0
    %2118 = vmatprep.subr.mxu0 0.0
    %2119 = vmatpush1.msra.mxu0 0.0
    %2120 = vmatprep.subr.mxu0 0.0
    %2121 = vmatpush1.msra.mxu0 0.0
    %2122 = vmatprep.subr.mxu0 0.0
    %2123 = vmatpush1.msra.mxu0 0.0
    %2124 = vmatprep.subr.mxu0 0.0
    %2125 = vmatpush1.msra.mxu0 0.0
    %2126 = vmatprep.subr.mxu0 0.0
    %2127 = vmatpush1.msra.mxu0 0.0
    %2128 = vmatprep.subr.mxu0 0.0
    %2129 = vmatpush1.msra.mxu0 0.0
    %2130 = vmatprep.subr.mxu0 0.0
    %2131 = vmatpush1.msra.mxu0 0.0
    %2132 = vmatprep.subr.mxu0 0.0
    %2133 = vmatpush1.msra.mxu0 0.0
    %2134 = vmatprep.subr.mxu0 0.0
    %2135 = vmatpush1.msra.mxu0 0.0
    %2136 = vmatprep.subr.mxu0 0.0
    %2137 = vmatpush1.msra.mxu0 0.0
    %2138 = vmatprep.subr.mxu0 0.0
    %2139 = vmatpush1.msra.mxu0 0.0
    %2140 = vmatprep.subr.mxu0 0.0
    %2141 = vmatpush1.msra.mxu0 0.0
    %2142 = vmatprep.subr.mxu0 0.0
    %2143 = vmatpush1.msra.mxu0 0.0
    %2144 = vmatprep.subr.mxu0 0.0
    %2145 = vmatpush1.msra.mxu0 0.0
    %2146 = vmatprep.subr.mxu0 0.0
    %2147 = vmatpush1.msra.mxu0 0.0
    %2148 = vmatprep.subr.mxu0 0.0
    %2149 = vmatpush1.msra.mxu0 0.0
    %2150 = vmatprep.subr.mxu0 0.0
    %2151 = vmatpush1.msra.mxu0 0.0
    %2152 = vmatprep.subr.mxu0 0.0
    %2153 = vmatpush1.msra.mxu0 0.0
    %2154 = vmatprep.subr.mxu0 0.0
    %2155 = vmatpush1.msra.mxu0 0.0
    %2156 = vmatprep.subr.mxu0 0.0
    %2157 = vmatpush1.msra.mxu0 0.0
    %2158 = vmatprep.subr.mxu0 0.0
    %2159 = vmatpush1.msra.mxu0 0.0
    %2160 = vmatprep.subr.mxu0 0.0
    %2161 = vmatpush1.msra.mxu0 0.0
    %2162 = vmatprep.subr.mxu0 0.0
    %2163 = vmatpush1.msra.mxu0 0.0
    %2164 = vmatprep.subr.mxu0 0.0
    %2165 = vmatpush1.msra.mxu0 0.0
    %2166 = vmatprep.mubr.f32.mxu0 0.0
    %2167 = vmatmul.mubr.f32.gmra.mrb[0].mxu0 %v2097
    %v2168 = vpop.f32.mrb[0].mxu0
    %v2169 = vadd.f32 0.0, %v2168
    %v2170 = vpop.f32.mrb[0].mxu0
    %2171 = vmatprep.mubr.f32.mxu0 0.0
    %2172 = vmatmul.mubr.f32.gmra.mrb[0].mxu0 %v2100
    %v2173 = vpop.f32.mrb[0].mxu0
    %v2174 = vadd.f32 0.0, %v2173
    %v2175 = vpop.f32.mrb[0].mxu0
    %2176 = vdwg.mxu0
    %2177 = vrot.lane.b32.xlu0 %v1571, 104
    %v2178 = vpop.permute.xlu0 %2177
    %2179 = vrot.lane.b32.xlu0 %v1576, 104
    %v2180 = vpop.permute.xlu0 %2179
    %2181 = vrot.lane.b32.xlu0 %v1571, 72
    %v2182 = vpop.permute.xlu0 %2181
    %2183 = vrot.lane.b32.xlu0 %v1576, 72
    %v2184 = vpop.permute.xlu0 %2183
    %v2185 = vsel %vm280, %v2178, 0
    %v2187 = vsel %vm280, %v2180, 0
    %v2189 = vsel %vm280, %v2182, 0
    %v2191 = vsel %vm280, %v2184, 0
    %2193 = vmatprep.subr.mxu0 0.0
    %2194 = vmatpush1.xpose.msra.mxu0 %v2189
    %2195 = vmatprep.subr.mxu0 0.0
    %2196 = vmatpush1.xpose.msra.mxu0 %v2191
    %2197 = vmatprep.subr.mxu0 0.0
    %2198 = vmatpush1.xpose.msra.mxu0 0.0
    %2199 = vmatprep.subr.mxu0 0.0
    %2200 = vmatpush1.xpose.msra.mxu0 0.0
    %2201 = vmatprep.subr.mxu0 0.0
    %2202 = vmatpush1.xpose.msra.mxu0 0.0
    %2203 = vmatprep.subr.mxu0 0.0
    %2204 = vmatpush1.xpose.msra.mxu0 0.0
    %2205 = vmatprep.subr.mxu0 0.0
    %2206 = vmatpush1.xpose.msra.mxu0 0.0
    %2207 = vmatprep.subr.mxu0 0.0
    %2208 = vmatpush1.xpose.msra.mxu0 0.0
    %2209 = vmatprep.subr.mxu0 0.0
    %2210 = vmatpush1.xpose.msra.mxu0 0.0
    %2211 = vmatprep.subr.mxu0 0.0
    %2212 = vmatpush1.xpose.msra.mxu0 0.0
    %2213 = vmatprep.subr.mxu0 0.0
    %2214 = vmatpush1.xpose.msra.mxu0 0.0
    %2215 = vmatprep.subr.mxu0 0.0
    %2216 = vmatpush1.xpose.msra.mxu0 0.0
    %2217 = vmatprep.subr.mxu0 0.0
    %2218 = vmatpush1.xpose.msra.mxu0 0.0
    %2219 = vmatprep.subr.mxu0 0.0
    %2220 = vmatpush1.xpose.msra.mxu0 0.0
    %2221 = vmatprep.subr.mxu0 0.0
    %2222 = vmatpush1.xpose.msra.mxu0 0.0
    %2223 = vmatprep.subr.mxu0 0.0
    %2224 = vmatpush1.xpose.msra.mxu0 0.0
    %2225 = vmatprep.subr.mxu0 0.0
    %2226 = vmatpush1.xpose.msra.mxu0 0.0
    %2227 = vmatprep.subr.mxu0 0.0
    %2228 = vmatpush1.xpose.msra.mxu0 0.0
    %2229 = vmatprep.subr.mxu0 0.0
    %2230 = vmatpush1.xpose.msra.mxu0 0.0
    %2231 = vmatprep.subr.mxu0 0.0
    %2232 = vmatpush1.xpose.msra.mxu0 0.0
    %2233 = vmatprep.subr.mxu0 0.0
    %2234 = vmatpush1.xpose.msra.mxu0 0.0
    %2235 = vmatprep.subr.mxu0 0.0
    %2236 = vmatpush1.xpose.msra.mxu0 0.0
    %2237 = vmatprep.subr.mxu0 0.0
    %2238 = vmatpush1.xpose.msra.mxu0 0.0
    %2239 = vmatprep.subr.mxu0 0.0
    %2240 = vmatpush1.xpose.msra.mxu0 0.0
    %2241 = vmatprep.subr.mxu0 0.0
    %2242 = vmatpush1.xpose.msra.mxu0 0.0
    %2243 = vmatprep.subr.mxu0 0.0
    %2244 = vmatpush1.xpose.msra.mxu0 0.0
    %2245 = vmatprep.subr.mxu0 0.0
    %2246 = vmatpush1.xpose.msra.mxu0 0.0
    %2247 = vmatprep.subr.mxu0 0.0
    %2248 = vmatpush1.xpose.msra.mxu0 0.0
    %2249 = vmatprep.subr.mxu0 0.0
    %2250 = vmatpush1.xpose.msra.mxu0 0.0
    %2251 = vmatprep.subr.mxu0 0.0
    %2252 = vmatpush1.xpose.msra.mxu0 0.0
    %2253 = vmatprep.subr.mxu0 0.0
    %2254 = vmatpush1.xpose.msra.mxu0 0.0
    %2255 = vmatprep.subr.mxu0 0.0
    %2256 = vmatpush1.xpose.msra.mxu0 0.0
    %2257 = vmatprep.mubr.f32.mxu0 0.0
    %2258 = vmatmul.mubr.f32.gmra.mrb[0].mxu0 %v2185
    %v2259 = vpop.f32.mrb[0].mxu0
    %v2260 = vadd.f32 %v150, %v2259
    %v2261 = vpop.f32.mrb[0].mxu0
    %2262 = vmatprep.mubr.f32.mxu0 0.0
    %2263 = vmatmul.mubr.f32.gmra.mrb[0].mxu0 %v2187
    %v2264 = vpop.f32.mrb[0].mxu0
    %v2265 = vadd.f32 %v151, %v2264
    %v2266 = vpop.f32.mrb[0].mxu0
    %2267 = vdwg.mxu0
    %v2268 = vsel %vm364, %v2260, -inf
    %2269 = vmax.xlane.f32.xlu0 %v2268
    %v2270 = vpop.xlane.xlu0 %2269
    %v2271 = vsel %vm364, %v2265, -inf
    %2272 = vmax.xlane.f32.xlu0 %v2271
    %v2273 = vpop.xlane.xlu0 %2272
    %v2274 = vsub.f32 %v2260, %v2270
    %v2275 = vsub.f32 %v2265, %v2273
    %v2276 = vmul.f32 %v2274, 1.442695
    %v2277 = vpow.pop %v2276
    %v2278 = vmul.f32 %v2275, 1.442695
    %v2279 = vpow.pop %v2278
    %v2280 = vsel %vm364, %v2277, 0.0
    %2281 = vadd.xlane.f32.xlu0 %v2280
    %v2282 = vpop.xlane.xlu0 %2281
    %v2283 = vsel %vm364, %v2279, 0.0
    %2284 = vadd.xlane.f32.xlu0 %v2283
    %v2285 = vpop.xlane.xlu0 %2284
    %v2286 = vrcp.pop %v2282
    %v2287 = vrcp.pop %v2285
    %v2288 = vmul.f32 %v2277, %v2286
    %v2289 = vmul.f32 %v2279, %v2287
    %2290 = vrot.lane.b32.xlu0 %v1571, 40
    %v2291 = vpop.permute.xlu0 %2290
    %2292 = vrot.lane.b32.xlu0 %v1576, 40
    %v2293 = vpop.permute.xlu0 %2292
    %v2297 = vsel %vm364, %v2288, 0
    %v2300 = vsel %vm364, %v2289, 0
    %2302 = vmatprep.subr.mxu0 0.0
    %2303 = vmatpush1.msra.mxu0 %v2291
    %2304 = vmatprep.subr.mxu0 0.0
    %2305 = vmatpush1.msra.mxu0 %v2293
    %2306 = vmatprep.subr.mxu0 0.0
    %2307 = vmatpush1.msra.mxu0 0.0
    %2308 = vmatprep.subr.mxu0 0.0
    %2309 = vmatpush1.msra.mxu0 0.0
    %2310 = vmatprep.subr.mxu0 0.0
    %2311 = vmatpush1.msra.mxu0 0.0
    %2312 = vmatprep.subr.mxu0 0.0
    %2313 = vmatpush1.msra.mxu0 0.0
    %2314 = vmatprep.subr.mxu0 0.0
    %2315 = vmatpush1.msra.mxu0 0.0
    %2316 = vmatprep.subr.mxu0 0.0
    %2317 = vmatpush1.msra.mxu0 0.0
    %2318 = vmatprep.subr.mxu0 0.0
    %2319 = vmatpush1.msra.mxu0 0.0
    %2320 = vmatprep.subr.mxu0 0.0
    %2321 = vmatpush1.msra.mxu0 0.0
    %2322 = vmatprep.subr.mxu0 0.0
    %2323 = vmatpush1.msra.mxu0 0.0
    %2324 = vmatprep.subr.mxu0 0.0
    %2325 = vmatpush1.msra.mxu0 0.0
    %2326 = vmatprep.subr.mxu0 0.0
    %2327 = vmatpush1.msra.mxu0 0.0
    %2328 = vmatprep.subr.mxu0 0.0
    %2329 = vmatpush1.msra.mxu0 0.0
    %2330 = vmatprep.subr.mxu0 0.0
    %2331 = vmatpush1.msra.mxu0 0.0
    %2332 = vmatprep.subr.mxu0 0.0
    %2333 = vmatpush1.msra.mxu0 0.0
    %2334 = vmatprep.subr.mxu0 0.0
    %2335 = vmatpush1.msra.mxu0 0.0
    %2336 = vmatprep.subr.mxu0 0.0
    %2337 = vmatpush1.msra.mxu0 0.0
    %2338 = vmatprep.subr.mxu0 0.0
    %2339 = vmatpush1.msra.mxu0 0.0
    %2340 = vmatprep.subr.mxu0 0.0
    %2341 = vmatpush1.msra.mxu0 0.0
    %2342 = vmatprep.subr.mxu0 0.0
    %2343 = vmatpush1.msra.mxu0 0.0
    %2344 = vmatprep.subr.mxu0 0.0
    %2345 = vmatpush1.msra.mxu0 0.0
    %2346 = vmatprep.subr.mxu0 0.0
    %2347 = vmatpush1.msra.mxu0 0.0
    %2348 = vmatprep.subr.mxu0 0.0
    %2349 = vmatpush1.msra.mxu0 0.0
    %2350 = vmatprep.subr.mxu0 0.0
    %2351 = vmatpush1.msra.mxu0 0.0
    %2352 = vmatprep.subr.mxu0 0.0
    %2353 = vmatpush1.msra.mxu0 0.0
    %2354 = vmatprep.subr.mxu0 0.0
    %2355 = vmatpush1.msra.mxu0 0.0
    %2356 = vmatprep.subr.mxu0 0.0
    %2357 = vmatpush1.msra.mxu0 0.0
    %2358 = vmatprep.subr.mxu0 0.0
    %2359 = vmatpush1.msra.mxu0 0.0
    %2360 = vmatprep.subr.mxu0 0.0
    %2361 = vmatpush1.msra.mxu0 0.0
    %2362 = vmatprep.subr.mxu0 0.0
    %2363 = vmatpush1.msra.mxu0 0.0
    %2364 = vmatprep.subr.mxu0 0.0
    %2365 = vmatpush1.msra.mxu0 0.0
    %2366 = vmatprep.mubr.f32.mxu0 0.0
    %2367 = vmatmul.mubr.f32.gmra.mrb[0].mxu0 %v2297
    %v2368 = vpop.f32.mrb[0].mxu0
    %v2369 = vadd.f32 0.0, %v2368
    %v2370 = vpop.f32.mrb[0].mxu0
    %2371 = vmatprep.mubr.f32.mxu0 0.0
    %2372 = vmatmul.mubr.f32.gmra.mrb[0].mxu0 %v2300
    %v2373 = vpop.f32.mrb[0].mxu0
    %v2374 = vadd.f32 0.0, %v2373
    %v2375 = vpop.f32.mrb[0].mxu0
    %2376 = vdwg.mxu0
    %2379 = vrot.lane.b32.xlu0 %v1969, 8
    %v2380 = vpop.permute.xlu0 %2379
    %2381 = vrot.lane.b32.xlu0 %v1974, 8
    %v2382 = vpop.permute.xlu0 %2381
    %2387 = vrot.lane.b32.xlu0 %v2169, 16
    %v2388 = vpop.permute.xlu0 %2387
    %2389 = vrot.lane.b32.xlu0 %v2174, 16
    %v2390 = vpop.permute.xlu0 %2389
    %2395 = vrot.lane.b32.xlu0 %v2369, 24
    %v2396 = vpop.permute.xlu0 %2395
    %2397 = vrot.lane.b32.xlu0 %v2374, 24
    %v2398 = vpop.permute.xlu0 %2397
    %v2401 = vsel %vm280, %v1769, %v2380
    %v2402 = vsel %vm280, %v1774, %v2382
    %v2403 = vsel %vm364, %v2401, %v2388
    %v2404 = vsel %vm364, %v2402, %v2390
    %v2405 = vsel %vm1102, %v2403, %v2396
    %v2406 = vsel %vm1102, %v2404, %v2398
    %s2407 = scalar_lea.vmem %s7, 32
    %v2408 = vld [vmem:[%s2407] sm:$0xff]
    %v2409 = vld [vmem:[%s2407 + $0x8] sm:$0xff]
    %v2410 = vld [vmem:[%s2407 + $0x10] sm:$0xff]
    %v2411 = vld [vmem:[%s2407 + $0x18] sm:$0xff]
    %v2413 = vsel %vm153, %v2405, 0
    %v2416 = vsel %vm153, %v2406, 0
    %2418 = vmatprep.subr.mxu0 0.0
    %2419 = vmatpush1.msra.mxu0 %v2408
    %2420 = vmatprep.subr.mxu0 0.0
    %2421 = vmatpush1.msra.mxu0 %v2409
    %2422 = vmatprep.subr.mxu0 0.0
    %2423 = vmatpush1.msra.mxu0 %v2410
    %2424 = vmatprep.subr.mxu0 0.0
    %2425 = vmatpush1.msra.mxu0 %v2411
    %2426 = vmatprep.subr.mxu0 0.0
    %2427 = vmatpush1.msra.mxu0 0.0
    %2428 = vmatprep.subr.mxu0 0.0
    %2429 = vmatpush1.msra.mxu0 0.0
    %2430 = vmatprep.subr.mxu0 0.0
    %2431 = vmatpush1.msra.mxu0 0.0
    %2432 = vmatprep.subr.mxu0 0.0
    %2433 = vmatpush1.msra.mxu0 0.0
    %2434 = vmatprep.subr.mxu0 0.0
    %2435 = vmatpush1.msra.mxu0 0.0
    %2436 = vmatprep.subr.mxu0 0.0
    %2437 = vmatpush1.msra.mxu0 0.0
    %2438 = vmatprep.subr.mxu0 0.0
    %2439 = vmatpush1.msra.mxu0 0.0
    %2440 = vmatprep.subr.mxu0 0.0
    %2441 = vmatpush1.msra.mxu0 0.0
    %2442 = vmatprep.subr.mxu0 0.0
    %2443 = vmatpush1.msra.mxu0 0.0
    %2444 = vmatprep.subr.mxu0 0.0
    %2445 = vmatpush1.msra.mxu0 0.0
    %2446 = vmatprep.subr.mxu0 0.0
    %2447 = vmatpush1.msra.mxu0 0.0
    %2448 = vmatprep.subr.mxu0 0.0
    %2449 = vmatpush1.msra.mxu0 0.0
    %2450 = vmatprep.subr.mxu0 0.0
    %2451 = vmatpush1.msra.mxu0 0.0
    %2452 = vmatprep.subr.mxu0 0.0
    %2453 = vmatpush1.msra.mxu0 0.0
    %2454 = vmatprep.subr.mxu0 0.0
    %2455 = vmatpush1.msra.mxu0 0.0
    %2456 = vmatprep.subr.mxu0 0.0
    %2457 = vmatpush1.msra.mxu0 0.0
    %2458 = vmatprep.subr.mxu0 0.0
    %2459 = vmatpush1.msra.mxu0 0.0
    %2460 = vmatprep.subr.mxu0 0.0
    %2461 = vmatpush1.msra.mxu0 0.0
    %2462 = vmatprep.subr.mxu0 0.0
    %2463 = vmatpush1.msra.mxu0 0.0
    %2464 = vmatprep.subr.mxu0 0.0
    %2465 = vmatpush1.msra.mxu0 0.0
    %2466 = vmatprep.subr.mxu0 0.0
    %2467 = vmatpush1.msra.mxu0 0.0
    %2468 = vmatprep.subr.mxu0 0.0
    %2469 = vmatpush1.msra.mxu0 0.0
    %2470 = vmatprep.subr.mxu0 0.0
    %2471 = vmatpush1.msra.mxu0 0.0
    %2472 = vmatprep.subr.mxu0 0.0
    %2473 = vmatpush1.msra.mxu0 0.0
    %2474 = vmatprep.subr.mxu0 0.0
    %2475 = vmatpush1.msra.mxu0 0.0
    %2476 = vmatprep.subr.mxu0 0.0
    %2477 = vmatpush1.msra.mxu0 0.0
    %2478 = vmatprep.subr.mxu0 0.0
    %2479 = vmatpush1.msra.mxu0 0.0
    %2480 = vmatprep.subr.mxu0 0.0
    %2481 = vmatpush1.msra.mxu0 0.0
    %2482 = vmatprep.mubr.f32.mxu0 0.0
    %2483 = vmatmul.mubr.f32.gmra.mrb[0].mxu0 %v2413
    %v2484 = vpop.f32.mrb[0].mxu0
    %v2485 = vadd.f32 0.0, %v2484
    %v2486 = vpop.f32.mrb[0].mxu0
    %2487 = vmatprep.mubr.f32.mxu0 0.0
    %2488 = vmatmul.mubr.f32.gmra.mrb[0].mxu0 %v2416
    %v2489 = vpop.f32.mrb[0].mxu0
    %v2490 = vadd.f32 0.0, %v2489
    %v2491 = vpop.f32.mrb[0].mxu0
    %2492 = vdwg.mxu0
    %v2493 = vadd.f32 %v1455, %v2485
    %v2494 = vadd.f32 %v1456, %v2490
    %s2495 = scalar_lea.vmem %s8, 1
    %v2496 = vld [vmem:[%s2495] sm:$0x1]
    %v2497 = vsel %vm153, %v2493, 0.0
    %2498 = vadd.xlane.f32.xlu0 %v2497
    %v2499 = vpop.xlane.xlu0 %2498
    %v2500 = vsel %vm153, %v2494, 0.0
    %2501 = vadd.xlane.f32.xlu0 %v2500
    %v2502 = vpop.xlane.xlu0 %2501
    %v2503 = vmul.f32 %v2499, %v160
    %v2504 = vmul.f32 %v2502, %v160
    %v2505 = vsub.f32 %v2493, %v2503
    %v2506 = vsub.f32 %v2494, %v2504
    %v2507 = vmul.f32 %v2505, %v2505
    %v2508 = vmul.f32 %v2506, %v2506
    %v2509 = vsel %vm153, %v2507, 0.0
    %2510 = vadd.xlane.f32.xlu0 %v2509
    %v2511 = vpop.xlane.xlu0 %2510
    %v2512 = vsel %vm153, %v2508, 0.0
    %2513 = vadd.xlane.f32.xlu0 %v2512
    %v2514 = vpop.xlane.xlu0 %2513
    %v2515 = vmul.f32 %v2511, %v160
    %v2516 = vmul.f32 %v2514, %v160
    %v2517 = vadd.f32 %v2515, 1e-05
    %v2518 = vadd.f32 %v2516, 1e-05
    %v2519 = vrsqrt.pop %v2517
    %v2520 = vrsqrt.pop %v2518
    %v2521 = vmul.f32 %v2505, %v2519
    %v2522 = vmul.f32 %v2506, %v2520
    %v2524 = vlaneseq
    %v2525 = vshrl.u32 %v2524, 7
    %v2526 = vsub.s32 0, %v2525
    %v2527 = vrot.slane %v2496, %v2526
    %v2529 = vmul.f32 %v2521, %v2527
    %v2530 = vmul.f32 %v2522, %v2527
    %s2531 = scalar_lea.vmem %s9, 32
    %v2532 = vld [vmem:[%s2531] sm:$0xff]
    %v2533 = vld [vmem:[%s2531 + $0x8] sm:$0xff]
    %v2534 = vld [vmem:[%s2531 + $0x10] sm:$0xff]
    %v2535 = vld [vmem:[%s2531 + $0x18] sm:$0xff]
    %v2537 = vsel %vm153, %v2529, 0
    %v2540 = vsel %vm153, %v2530, 0
    %2542 = vmatprep.subr.mxu0 0.0
    %2543 = vmatpush1.msra.mxu0 %v2532
    %2544 = vmatprep.subr.mxu0 0.0
    %2545 = vmatpush1.msra.mxu0 %v2533
    %2546 = vmatprep.subr.mxu0 0.0
    %2547 = vmatpush1.msra.mxu0 %v2534
    %2548 = vmatprep.subr.mxu0 0.0
    %2549 = vmatpush1.msra.mxu0 %v2535
    %2550 = vmatprep.subr.mxu0 0.0
    %2551 = vmatpush1.msra.mxu0 0.0
    %2552 = vmatprep.subr.mxu0 0.0
    %2553 = vmatpush1.msra.mxu0 0.0
    %2554 = vmatprep.subr.mxu0 0.0
    %2555 = vmatpush1.msra.mxu0 0.0
    %2556 = vmatprep.subr.mxu0 0.0
    %2557 = vmatpush1.msra.mxu0 0.0
    %2558 = vmatprep.subr.mxu0 0.0
    %2559 = vmatpush1.msra.mxu0 0.0
    %2560 = vmatprep.subr.mxu0 0.0
    %2561 = vmatpush1.msra.mxu0 0.0
    %2562 = vmatprep.subr.mxu0 0.0
    %2563 = vmatpush1.msra.mxu0 0.0
    %2564 = vmatprep.subr.mxu0 0.0
    %2565 = vmatpush1.msra.mxu0 0.0
    %2566 = vmatprep.subr.mxu0 0.0
    %2567 = vmatpush1.msra.mxu0 0.0
    %2568 = vmatprep.subr.mxu0 0.0
    %2569 = vmatpush1.msra.mxu0 0.0
    %2570 = vmatprep.subr.mxu0 0.0
    %2571 = vmatpush1.msra.mxu0 0.0
    %2572 = vmatprep.subr.mxu0 0.0
    %2573 = vmatpush1.msra.mxu0 0.0
    %2574 = vmatprep.subr.mxu0 0.0
    %2575 = vmatpush1.msra.mxu0 0.0
    %2576 = vmatprep.subr.mxu0 0.0
    %2577 = vmatpush1.msra.mxu0 0.0
    %2578 = vmatprep.subr.mxu0 0.0
    %2579 = vmatpush1.msra.mxu0 0.0
    %2580 = vmatprep.subr.mxu0 0.0
    %2581 = vmatpush1.msra.mxu0 0.0
    %2582 = vmatprep.subr.mxu0 0.0
    %2583 = vmatpush1.msra.mxu0 0.0
    %2584 = vmatprep.subr.mxu0 0.0
    %2585 = vmatpush1.msra.mxu0 0.0
    %2586 = vmatprep.subr.mxu0 0.0
    %2587 = vmatpush1.msra.mxu0 0.0
    %2588 = vmatprep.subr.mxu0 0.0
    %2589 = vmatpush1.msra.mxu0 0.0
    %2590 = vmatprep.subr.mxu0 0.0
    %2591 = vmatpush1.msra.mxu0 0.0
    %2592 = vmatprep.subr.mxu0 0.0
    %2593 = vmatpush1.msra.mxu0 0.0
    %2594 = vmatprep.subr.mxu0 0.0
    %2595 = vmatpush1.msra.mxu0 0.0
    %2596 = vmatprep.subr.mxu0 0.0
    %2597 = vmatpush1.msra.mxu0 0.0
    %2598 = vmatprep.subr.mxu0 0.0
    %2599 = vmatpush1.msra.mxu0 0.0
    %2600 = vmatprep.subr.mxu0 0.0
    %2601 = vmatpush1.msra.mxu0 0.0
    %2602 = vmatprep.subr.mxu0 0.0
    %2603 = vmatpush1.msra.mxu0 0.0
    %2604 = vmatprep.subr.mxu0 0.0
    %2605 = vmatpush1.msra.mxu0 0.0
    %2606 = vmatprep.mubr.f32.mxu0 0.0
    %2607 = vmatmul.mubr.f32.gmra.mrb[0].mxu0 %v2537
    %v2608 = vpop.f32.mrb[0].mxu0
    %v2609 = vadd.f32 0.0, %v2608
    %v2610 = vpop.f32.mrb[0].mxu0
    %2611 = vmatprep.mubr.f32.mxu0 0.0
    %2612 = vmatmul.mubr.f32.gmra.mrb[0].mxu0 %v2540
    %v2613 = vpop.f32.mrb[0].mxu0
    %v2614 = vadd.f32 0.0, %v2613
    %v2615 = vpop.f32.mrb[0].mxu0
    %2616 = vdwg.mxu0
    %v2617 = vmul.f32 %v2609, 0.5
    %v2618 = vmul.f32 %v2614, 0.5
    %v2619 = vmul.f32 %v2609, 0.70710677
    %v2620 = vmul.f32 %v2614, 0.70710677
    %vm2621 = vcmp.ge.f32.partialorder %v2619, 0.0
    %vm2622 = vcmp.ge.f32.partialorder %v2620, 0.0
    %v2623 = vsel %vm2621, 1.0, -1.0
    %v2624 = vsel %vm2622, 1.0, -1.0
    %v2625 = vand.u32 2147483647, %v2619
    %v2626 = vand.u32 2147483647, %v2620
    %v2627 = vmul.f32 %v2625, 0.3275911
    %v2628 = vmul.f32 %v2626, 0.3275911
    %v2629 = vadd.f32 %v2627, 1.0
    %v2630 = vadd.f32 %v2628, 1.0
    %v2631 = vrcp.pop %v2629
    %v2632 = vrcp.pop %v2630
    %v2633 = vmul.f32 %v2631, 1.0614054
    %v2634 = vmul.f32 %v2632, 1.0614054
    %v2635 = vadd.f32 %v2633, -1.4531521
    %v2636 = vadd.f32 %v2634, -1.4531521
    %v2637 = vmul.f32 %v2635, %v2631
    %v2638 = vmul.f32 %v2636, %v2632
    %v2639 = vadd.f32 %v2637, 1.4214138
    %v2640 = vadd.f32 %v2638, 1.4214138
    %v2641 = vmul.f32 %v2639, %v2631
    %v2642 = vmul.f32 %v2640, %v2632
    %v2643 = vadd.f32 %v2641, -0.28449672
    %v2644 = vadd.f32 %v2642, -0.28449672
    %v2645 = vmul.f32 %v2643, %v2631
    %v2646 = vmul.f32 %v2644, %v2632
    %v2647 = vadd.f32 %v2645, 0.2548296
    %v2648 = vadd.f32 %v2646, 0.2548296
    %v2649 = vmul.f32 %v2647, %v2631
    %v2650 = vmul.f32 %v2648, %v2632
    %v2651 = vsub.f32 0.0, %v2625
    %v2652 = vsub.f32 0.0, %v2626
    %v2653 = vmul.f32 %v2651, %v2625
    %v2654 = vmul.f32 %v2652, %v2626
    %v2655 = vmul.f32 %v2653, 1.442695
    %v2656 = vpow.pop %v2655
    %v2657 = vmul.f32 %v2654, 1.442695
    %v2658 = vpow.pop %v2657
    %v2659 = vmul.f32 %v2649, %v2656
    %v2660 = vmul.f32 %v2650, %v2658
    %v2661 = vsub.f32 1.0, %v2659
    %v2662 = vsub.f32 1.0, %v2660
    %v2663 = vmul.f32 %v2623, %v2661
    %v2664 = vmul.f32 %v2624, %v2662
    %v2665 = vadd.f32 %v2663, 1.0
    %v2666 = vadd.f32 %v2664, 1.0
    %v2667 = vmul.f32 %v2617, %v2665
    %v2668 = vmul.f32 %v2618, %v2666
    %s2669 = scalar_lea.vmem %s10, 128
    %v2670 = vld [vmem:[%s2669] sm:$0xff]
    %v2671 = vld [vmem:[%s2669 + $0x8] sm:$0xff]
    %v2672 = vld [vmem:[%s2669 + $0x10] sm:$0xff]
    %v2673 = vld [vmem:[%s2669 + $0x18] sm:$0xff]
    %v2674 = vld [vmem:[%s2669 + $0x20] sm:$0xff]
    %v2675 = vld [vmem:[%s2669 + $0x28] sm:$0xff]
    %v2676 = vld [vmem:[%s2669 + $0x30] sm:$0xff]
    %v2677 = vld [vmem:[%s2669 + $0x38] sm:$0xff]
    %v2678 = vld [vmem:[%s2669 + $0x40] sm:$0xff]
    %v2679 = vld [vmem:[%s2669 + $0x48] sm:$0xff]
    %v2680 = vld [vmem:[%s2669 + $0x50] sm:$0xff]
    %v2681 = vld [vmem:[%s2669 + $0x58] sm:$0xff]
    %v2682 = vld [vmem:[%s2669 + $0x60] sm:$0xff]
    %v2683 = vld [vmem:[%s2669 + $0x68] sm:$0xff]
    %v2684 = vld [vmem:[%s2669 + $0x70] sm:$0xff]
    %v2685 = vld [vmem:[%s2669 + $0x78] sm:$0xff]
    %2686 = vmatprep.subr.mxu0 0.0
    %2687 = vmatpush1.msra.mxu0 %v2670
    %2688 = vmatprep.subr.mxu0 0.0
    %2689 = vmatpush1.msra.mxu0 %v2671
    %2690 = vmatprep.subr.mxu0 0.0
    %2691 = vmatpush1.msra.mxu0 %v2672
    %2692 = vmatprep.subr.mxu0 0.0
    %2693 = vmatpush1.msra.mxu0 %v2673
    %2694 = vmatprep.subr.mxu0 0.0
    %2695 = vmatpush1.msra.mxu0 %v2674
    %2696 = vmatprep.subr.mxu0 0.0
    %2697 = vmatpush1.msra.mxu0 %v2675
    %2698 = vmatprep.subr.mxu0 0.0
    %2699 = vmatpush1.msra.mxu0 %v2676
    %2700 = vmatprep.subr.mxu0 0.0
    %2701 = vmatpush1.msra.mxu0 %v2677
    %2702 = vmatprep.subr.mxu0 0.0
    %2703 = vmatpush1.msra.mxu0 %v2678
    %2704 = vmatprep.subr.mxu0 0.0
    %2705 = vmatpush1.msra.mxu0 %v2679
    %2706 = vmatprep.subr.mxu0 0.0
    %2707 = vmatpush1.msra.mxu0 %v2680
    %2708 = vmatprep.subr.mxu0 0.0
    %2709 = vmatpush1.msra.mxu0 %v2681
    %2710 = vmatprep.subr.mxu0 0.0
    %2711 = vmatpush1.msra.mxu0 %v2682
    %2712 = vmatprep.subr.mxu0 0.0
    %2713 = vmatpush1.msra.mxu0 %v2683
    %2714 = vmatprep.subr.mxu0 0.0
    %2715 = vmatpush1.msra.mxu0 %v2684
    %2716 = vmatprep.subr.mxu0 0.0
    %2717 = vmatpush1.msra.mxu0 %v2685
    %2718 = vmatprep.subr.mxu0 0.0
    %2719 = vmatpush1.msra.mxu0 0.0
    %2720 = vmatprep.subr.mxu0 0.0
    %2721 = vmatpush1.msra.mxu0 0.0
    %2722 = vmatprep.subr.mxu0 0.0
    %2723 = vmatpush1.msra.mxu0 0.0
    %2724 = vmatprep.subr.mxu0 0.0
    %2725 = vmatpush1.msra.mxu0 0.0
    %2726 = vmatprep.subr.mxu0 0.0
    %2727 = vmatpush1.msra.mxu0 0.0
    %2728 = vmatprep.subr.mxu0 0.0
    %2729 = vmatpush1.msra.mxu0 0.0
    %2730 = vmatprep.subr.mxu0 0.0
    %2731 = vmatpush1.msra.mxu0 0.0
    %2732 = vmatprep.subr.mxu0 0.0
    %2733 = vmatpush1.msra.mxu0 0.0
    %2734 = vmatprep.subr.mxu0 0.0
    %2735 = vmatpush1.msra.mxu0 0.0
    %2736 = vmatprep.subr.mxu0 0.0
    %2737 = vmatpush1.msra.mxu0 0.0
    %2738 = vmatprep.subr.mxu0 0.0
    %2739 = vmatpush1.msra.mxu0 0.0
    %2740 = vmatprep.subr.mxu0 0.0
    %2741 = vmatpush1.msra.mxu0 0.0
    %2742 = vmatprep.subr.mxu0 0.0
    %2743 = vmatpush1.msra.mxu0 0.0
    %2744 = vmatprep.subr.mxu0 0.0
    %2745 = vmatpush1.msra.mxu0 0.0
    %2746 = vmatprep.subr.mxu0 0.0
    %2747 = vmatpush1.msra.mxu0 0.0
    %2748 = vmatprep.subr.mxu0 0.0
    %2749 = vmatpush1.msra.mxu0 0.0
    %2750 = vmatprep.mubr.f32.mxu0 0.0
    %2751 = vmatmul.mubr.f32.gmra.mrb[0].mxu0 %v2667
    %v2752 = vpop.f32.mrb[0].mxu0
    %v2753 = vadd.f32 0.0, %v2752
    %v2754 = vpop.f32.mrb[0].mxu0
    %2755 = vmatprep.mubr.f32.mxu0 0.0
    %2756 = vmatmul.mubr.f32.gmra.mrb[0].mxu0 %v2668
    %v2757 = vpop.f32.mrb[0].mxu0
    %v2758 = vadd.f32 0.0, %v2757
    %v2759 = vpop.f32.mrb[0].mxu0
    %2760 = vdwg.mxu0
    %v2761 = vadd.f32 %v2493, %v2753
    %v2762 = vadd.f32 %v2494, %v2758
    %v2763 = vld [vmem:[%s11] sm:$0x1]
    %v2764 = vsel %vm153, %v2761, 0.0
    %2765 = vadd.xlane.f32.xlu0 %v2764
    %v2766 = vpop.xlane.xlu0 %2765
    %v2767 = vsel %vm153, %v2762, 0.0
    %2768 = vadd.xlane.f32.xlu0 %v2767
    %v2769 = vpop.xlane.xlu0 %2768
    %v2770 = vmul.f32 %v2766, %v160
    %v2771 = vmul.f32 %v2769, %v160
    %v2772 = vsub.f32 %v2761, %v2770
    %v2773 = vsub.f32 %v2762, %v2771
    %v2774 = vmul.f32 %v2772, %v2772
    %v2775 = vmul.f32 %v2773, %v2773
    %v2776 = vsel %vm153, %v2774, 0.0
    %2777 = vadd.xlane.f32.xlu0 %v2776
    %v2778 = vpop.xlane.xlu0 %2777
    %v2779 = vsel %vm153, %v2775, 0.0
    %2780 = vadd.xlane.f32.xlu0 %v2779
    %v2781 = vpop.xlane.xlu0 %2780
    %v2782 = vmul.f32 %v2778, %v160
    %v2783 = vmul.f32 %v2781, %v160
    %v2784 = vadd.f32 %v2782, 1e-05
    %v2785 = vadd.f32 %v2783, 1e-05
    %v2786 = vrsqrt.pop %v2784
    %v2787 = vrsqrt.pop %v2785
    %v2788 = vmul.f32 %v2772, %v2786
    %v2789 = vmul.f32 %v2773, %v2787
    %v2791 = vlaneseq
    %v2792 = vshrl.u32 %v2791, 7
    %v2793 = vsub.s32 0, %v2792
    %v2794 = vrot.slane %v2763, %v2793
    %v2796 = vmul.f32 %v2788, %v2794
    %v2797 = vmul.f32 %v2789, %v2794
    %v2798 = vld [vmem:[%s2] sm:$0xff]
    %v2799 = vld [vmem:[%s2 + $0x8] sm:$0xff]
    %v2800 = vld [vmem:[%s2 + $0x10] sm:$0xff]
    %v2801 = vld [vmem:[%s2 + $0x18] sm:$0xff]
    %v2803 = vsel %vm153, %v2796, 0
    %v2806 = vsel %vm153, %v2797, 0
    %2808 = vmatprep.subr.mxu0 0.0
    %2809 = vmatpush1.msra.mxu0 %v2798
    %2810 = vmatprep.subr.mxu0 0.0
    %2811 = vmatpush1.msra.mxu0 %v2799
    %2812 = vmatprep.subr.mxu0 0.0
    %2813 = vmatpush1.msra.mxu0 %v2800
    %2814 = vmatprep.subr.mxu0 0.0
    %2815 = vmatpush1.msra.mxu0 %v2801
    %2816 = vmatprep.subr.mxu0 0.0
    %2817 = vmatpush1.msra.mxu0 0.0
    %2818 = vmatprep.subr.mxu0 0.0
    %2819 = vmatpush1.msra.mxu0 0.0
    %2820 = vmatprep.subr.mxu0 0.0
    %2821 = vmatpush1.msra.mxu0 0.0
    %2822 = vmatprep.subr.mxu0 0.0
    %2823 = vmatpush1.msra.mxu0 0.0
    %2824 = vmatprep.subr.mxu0 0.0
    %2825 = vmatpush1.msra.mxu0 0.0
    %2826 = vmatprep.subr.mxu0 0.0
    %2827 = vmatpush1.msra.mxu0 0.0
    %2828 = vmatprep.subr.mxu0 0.0
    %2829 = vmatpush1.msra.mxu0 0.0
    %2830 = vmatprep.subr.mxu0 0.0
    %2831 = vmatpush1.msra.mxu0 0.0
    %2832 = vmatprep.subr.mxu0 0.0
    %2833 = vmatpush1.msra.mxu0 0.0
    %2834 = vmatprep.subr.mxu0 0.0
    %2835 = vmatpush1.msra.mxu0 0.0
    %2836 = vmatprep.subr.mxu0 0.0
    %2837 = vmatpush1.msra.mxu0 0.0
    %2838 = vmatprep.subr.mxu0 0.0
    %2839 = vmatpush1.msra.mxu0 0.0
    %2840 = vmatprep.subr.mxu0 0.0
    %2841 = vmatpush1.msra.mxu0 0.0
    %2842 = vmatprep.subr.mxu0 0.0
    %2843 = vmatpush1.msra.mxu0 0.0
    %2844 = vmatprep.subr.mxu0 0.0
    %2845 = vmatpush1.msra.mxu0 0.0
    %2846 = vmatprep.subr.mxu0 0.0
    %2847 = vmatpush1.msra.mxu0 0.0
    %2848 = vmatprep.subr.mxu0 0.0
    %2849 = vmatpush1.msra.mxu0 0.0
    %2850 = vmatprep.subr.mxu0 0.0
    %2851 = vmatpush1.msra.mxu0 0.0
    %2852 = vmatprep.subr.mxu0 0.0
    %2853 = vmatpush1.msra.mxu0 0.0
    %2854 = vmatprep.subr.mxu0 0.0
    %2855 = vmatpush1.msra.mxu0 0.0
    %2856 = vmatprep.subr.mxu0 0.0
    %2857 = vmatpush1.msra.mxu0 0.0
    %2858 = vmatprep.subr.mxu0 0.0
    %2859 = vmatpush1.msra.mxu0 0.0
    %2860 = vmatprep.subr.mxu0 0.0
    %2861 = vmatpush1.msra.mxu0 0.0
    %2862 = vmatprep.subr.mxu0 0.0
    %2863 = vmatpush1.msra.mxu0 0.0
    %2864 = vmatprep.subr.mxu0 0.0
    %2865 = vmatpush1.msra.mxu0 0.0
    %2866 = vmatprep.subr.mxu0 0.0
    %2867 = vmatpush1.msra.mxu0 0.0
    %2868 = vmatprep.subr.mxu0 0.0
    %2869 = vmatpush1.msra.mxu0 0.0
    %2870 = vmatprep.subr.mxu0 0.0
    %2871 = vmatpush1.msra.mxu0 0.0
    %2872 = vmatprep.mubr.f32.mxu0 0.0
    %2873 = vmatmul.mubr.f32.gmra.mrb[0].mxu0 %v2803
    %v2874 = vpop.f32.mrb[0].mxu0
    %v2875 = vadd.f32 0.0, %v2874
    %v2876 = vpop.f32.mrb[0].mxu0
    %2877 = vmatprep.mubr.f32.mxu0 0.0
    %2878 = vmatmul.mubr.f32.gmra.mrb[0].mxu0 %v2806
    %v2879 = vpop.f32.mrb[0].mxu0
    %v2880 = vadd.f32 0.0, %v2879
    %v2881 = vpop.f32.mrb[0].mxu0
    %2882 = vdwg.mxu0
    %v2884 = vrot.slane %v2875, 7
    %v2887 = vrot.slane %v2880, 6
    %vm2889 = vcmask 1040384
    %v2890 = vsel %vm2889, %v2884, %v2887
    %vm2891 = vcmask 517120
    %2892 = vst.msk [vmem:[#allocation2] sm:$0x3] %vm2891, %v2890
    // Predicated region
    $region50: #{gpt_forward.1} parent=1 // pred_check
      _
    $region51: #{gpt_forward.1} parent=1 // pred_check_branch
      %2894 = sbr.rel (0) target = $region53
    $region52: #{gpt_forward.1} parent=1 // pred_region
      %s2896 = ssub.s32 32, 32
      %2897 = vsyncadd [#allocation3], %s2896
      %s2899 = sshll.u32 [#allocation2], 4
      %s2900 = int_to_ptr.vmem [resolvable:$true] %s2899
      %2902 = dma.vmem_to_hbm [thread:$0]  %s2900, 32, %s12, [#allocation3]
    $region53: #{gpt_forward.1} parent=1 // pred_fallthru
      _
    // Predicated region
    $region54: #{gpt_forward.1} parent=1 // pred_check
      _
    $region55: #{gpt_forward.1} parent=1 // pred_check_branch
      %2904 = sbr.rel (0) target = $region57
    $region56: #{gpt_forward.1} parent=1 // pred_region
      %2905 = dma.done [#allocation3], 32
    $region57: #{gpt_forward.1} parent=1 // pred_fallthru
      _
    %2906 = vsyncpa [#allocation3], 1

</llo_original>
